<compile_context>
chip_gen: v5e
topology: v5e:2x2
jax: 0.10.0
libtpu: 0.0.40
codegen_flags: <defaults>
</compile_context>

<pallas_src>
import functools

import jax
import jax.numpy as jnp
from jax import lax
from jax.experimental import pallas as pl
from jax.experimental.pallas import tpu as pltpu

LN_EPS = 1e-5  # torch nn.LayerNorm default


def _layernorm(x, gamma, beta):
    mu = jnp.mean(x, axis=-1, keepdims=True)
    xc = x - mu
    var = jnp.mean(xc * xc, axis=-1, keepdims=True)
    return xc * lax.rsqrt(var + LN_EPS) * gamma + beta


def _gelu_tanh(x):
    # tanh-form GELU: the tanh goes to the EUP slot instead of a long erf VALU
    # polynomial; max abs deviation from exact erf-GELU is ~3e-4 (<< tolerance).
    c = 0.7978845608028654  # sqrt(2/pi)
    return 0.5 * x * (1.0 + jnp.tanh(c * (x + 0.044715 * x * x * x)))


def block_kernel(x_ref, g1_ref, be1_ref, wq_ref, wk_ref, wv_ref, wo_ref, bo_ref,
                 g2_ref, be2_ref, w1_ref, b1_ref, w2_ref, b2_ref, o_ref,
                 *, n_head, head_size):
    f32 = jnp.float32
    bf16 = jnp.bfloat16

    x = x_ref[...]                                      # (bt, D) f32 batch tile
    bt, d = x.shape

    # ---------------- x + attn(ln1(x)) ----------------
    xn = _layernorm(x, g1_ref[...], be1_ref[...])       # (bt, D) f32
    xb = jnp.broadcast_to(xn.astype(bf16), (n_head, bt, d))   # head-batched lhs

    # Per-head projections.  Weights are (n_head, hs, D) bf16 (lane-dense,
    # pre-split on host); contraction over D, batched over heads -- same einsum
    # pattern as the reference flash-attention kernel.  The 1/sqrt(n_embd)
    # attention scale is already folded into wq.
    q = jnp.einsum("hbd,hid->hbi", xb, wq_ref[...], preferred_element_type=f32)
    k = jnp.einsum("hbd,hid->hbi", xb, wk_ref[...], preferred_element_type=f32)
    v = jnp.einsum("hbd,hid->hbi", xb, wv_ref[...], preferred_element_type=f32)
    # q, k, v: (n_head, bt, hs) f32

    # out[h,b,i] = sum_j softmax_j(q[h,b,i]*k[h,b,j]) * v[h,b,j]
    # computed without materialising the (n_head, bt, hs, hs) score tensor:
    # the per-row max of q_i*k_j is max(q*max_j(k), q*min_j(k)); a short static
    # loop over the hs key positions accumulates numerator and denominator.
    kmax = jnp.max(k, axis=-1, keepdims=True)           # (n_head, bt, 1)
    kmin = jnp.min(k, axis=-1, keepdims=True)
    m = jnp.maximum(q * kmax, q * kmin)                 # (n_head, bt, hs)
    den = jnp.zeros_like(q)
    num = jnp.zeros_like(q)
    for j in range(head_size):                          # static unroll, hs steps
        kj = k[:, :, j:j + 1]                           # (n_head, bt, 1)
        vj = v[:, :, j:j + 1]
        p = jnp.exp(q * kj - m)                         # f32 scores / softmax
        den = den + p
        num = num + p * vj
    heads = num * pl.reciprocal(den, approx=True)       # (n_head, bt, hs) f32

    # Output projection: concat-over-heads folded into per-head row blocks of Wo.
    y = jnp.zeros((bt, d), f32)
    for h in range(n_head):
        y = y + jnp.dot(heads[h].astype(bf16), wo_ref[h],
                        preferred_element_type=f32)
    x1 = x + y + bo_ref[...]                            # residual 1

    # ---------------- x + ff(ln2(x)) ----------------
    xn2 = _layernorm(x1, g2_ref[...], be2_ref[...])
    h1 = jnp.dot(xn2.astype(bf16), w1_ref[...], preferred_element_type=f32)
    h1 = _gelu_tanh(h1 + b1_ref[...])                   # (bt, 4D) f32
    f = jnp.dot(h1.astype(bf16), w2_ref[...], preferred_element_type=f32)
    o_ref[...] = x1 + f + b2_ref[...]                   # residual 2, lane-dense


def block_forward(x, params, n_head, *, block_b=256):
    """x: (B, n_embd) f32 -> (B, n_embd) f32.  params from prepare_params()."""
    b, d = x.shape
    hs = d // n_head

    # Batch tile: as large as possible (256 fills the v6e/v7x MXU M dim; use 128
    # on v5e); must be a multiple of 8 when it does not cover the whole batch.
    bt = min(block_b, b)
    if bt < b:
        bt = max(8, (bt // 8) * 8)
    n_tiles = -(-b // bt)
    b_pad = n_tiles * bt
    xp = x if b_pad == b else jnp.concatenate(
        [x, jnp.zeros((b_pad - b, d), x.dtype)], axis=0)

    weights = tuple(params)  # (g1, be1, wq3, wk3, wv3, wo3, bo, g2, be2, w1, b1, w2, b2)

    def const_spec(a):  # resident (grid-invariant) weight block
        return pl.BlockSpec(a.shape, lambda i, _n=a.ndim: (0,) * _n)

    # Explicit scoped-VMEM budget: double-buffered resident weights plus a few
    # batch tiles of activations (largest live activation is the (bt, 4D) FF
    # hidden), clamped to stay inside every generation's physical VMEM.
    weight_bytes = sum(int(p.size) * p.dtype.itemsize for p in weights)
    act_bytes = bt * d * 4 * 12 + bt * 4 * d * 4 * 2
    vmem_limit = int(min(96 * 2 ** 20,
                         max(32 * 2 ** 20, 2 * weight_bytes + act_bytes)))

    out = pl.pallas_call(
        functools.partial(block_kernel, n_head=n_head, head_size=hs),
        out_shape=jax.ShapeDtypeStruct((b_pad, d), jnp.float32),
        grid_spec=pltpu.PrefetchScalarGridSpec(
            num_scalar_prefetch=0,
            grid=(n_tiles,),
            in_specs=[pl.BlockSpec((bt, d), lambda i: (i, 0))] +
                     [const_spec(a) for a in weights],
            out_specs=pl.BlockSpec((bt, d), lambda i: (i, 0)),
        ),
        compiler_params=pltpu.CompilerParams(
            # batch tiles are independent -> shard across both TCs on v7x
            dimension_semantics=("parallel",),
            vmem_limit_bytes=vmem_limit),
    )(xp, *weights)
    return out[:b]


def prepare_params(raw_params, d, n_head):
    """Convert torch-layout f32 params into the kernel layout:
    per-head (n_head, hs, D) bf16 q/k/v weights (scale folded into Wq),
    (n_head, hs, D) bf16 output projection, bf16 FF matrices, f32 LN/biases."""
    g1, be1, wq, wk, wv, wo, bo, g2, be2, w1, b1, w2, b2 = raw_params
    hs = d // n_head
    bf = jnp.bfloat16
    scale = float(d) ** -0.5  # torch: attn * N ** (-0.5), N = n_embd (faithful)

    def to_heads(w):          # (D, D) -> (n_head, hs, D), w3[h, i, d] = w[d, h*hs+i]
        return w.reshape(d, n_head, hs).transpose(1, 2, 0)

    wq3 = to_heads(wq * scale).astype(bf)
    wk3 = to_heads(wk).astype(bf)
    wv3 = to_heads(wv).astype(bf)
    wo3 = wo.reshape(n_head, hs, d).astype(bf)
    return (g1, be1, wq3, wk3, wv3, wo3, bo, g2, be2,
            w1.astype(bf), b1, w2.astype(bf), b2)


def block_reference(x, raw_params, n_head):
    """Pure-JAX f32 reference with the module's semantics (dropout = identity)."""
    g1, be1, wq, wk, wv, wo, bo, g2, be2, w1, b1, w2, b2 = raw_params
    b, d = x.shape
    hs = d // n_head

    def ln(z, g, bb):
        mu = z.mean(-1, keepdims=True)
        var = ((z - mu) ** 2).mean(-1, keepdims=True)
        return (z - mu) / jnp.sqrt(var + LN_EPS) * g + bb

    xn = ln(x, g1, be1)
    q = (xn @ wq).reshape(b, n_head, hs)
    k = (xn @ wk).reshape(b, n_head, hs)
    v = (xn @ wv).reshape(b, n_head, hs)
    att = jnp.einsum("bhi,bhj->bhij", q, k) * (float(d) ** -0.5)
    att = jax.nn.softmax(att, axis=-1)
    heads = jnp.einsum("bhij,bhj->bhi", att, v).reshape(b, d)
    x1 = x + (heads @ wo + bo)
    xn2 = ln(x1, g2, be2)
    h = jax.nn.gelu(xn2 @ w1 + b1, approximate=False)
    return x1 + (h @ w2 + b2)


def init_params(key, d, n_head):
    """torch-layout f32 parameters (nn.Linear-style uniform init)."""
    dh = 4 * d
    keys = jax.random.split(key, 9)

    def u(k, shape, fan_in):
        bound = 1.0 / (fan_in ** 0.5)
        return jax.random.uniform(k, shape, jnp.float32, -bound, bound)

    g1 = jnp.ones((1, d), jnp.float32)
    be1 = jnp.zeros((1, d), jnp.float32)
    g2 = jnp.ones((1, d), jnp.float32)
    be2 = jnp.zeros((1, d), jnp.float32)
    wq = u(keys[0], (d, d), d)    # per-head (D, hs) q-projections stacked column-wise
    wk = u(keys[1], (d, d), d)
    wv = u(keys[2], (d, d), d)
    wo = u(keys[3], (d, d), d)    # MultiHead output projection
    bo = u(keys[4], (1, d), d)
    w1 = u(keys[5], (d, dh), d)   # FeedForward
    b1 = u(keys[6], (1, dh), d)
    w2 = u(keys[7], (dh, d), dh)
    b2 = u(keys[8], (1, d), dh)
    return (g1, be1, wq, wk, wv, wo, bo, g2, be2, w1, b1, w2, b2)


if __name__ == "__main__":
    # Small stand-in for the real module (n_embd=784): D=112 keeps
    # n_embd % n_head == 0 with n_head=14 (head_size = 8).
    B = 48
    N_HEAD = 14
    D = 112

    key = jax.random.PRNGKey(0)
    kx, kp = jax.random.split(key)
    x = jax.random.normal(kx, (B, D), jnp.float32)
    raw = init_params(kp, D, N_HEAD)
    params = prepare_params(raw, D, N_HEAD)

    # block_b=16 exercises the multi-step batch-tiled grid at this small B;
    # leave the default (256) for realistic batch sizes.
    out = block_forward(x, params, N_HEAD, block_b=16)
    out = jax.block_until_ready(out)

    ref = block_reference(x, raw, N_HEAD)
    err = float(jnp.max(jnp.abs(out - ref)))
    assert out.shape == (B, D), out.shape
    assert err < 5e-2, f"max abs err vs reference: {err}"

    print("KERNEL_OK")
</pallas_src>

<mosaic_0001>
module attributes {stable_mosaic.version = 11 : i64} {
  func.func @block_kernel(%arg0: i32, %arg1: memref<16x112xf32, #tpu.memory_space<vmem>>, %arg2: memref<1x112xf32, #tpu.memory_space<vmem>>, %arg3: memref<1x112xf32, #tpu.memory_space<vmem>>, %arg4: memref<14x8x112xbf16, #tpu.memory_space<vmem>>, %arg5: memref<14x8x112xbf16, #tpu.memory_space<vmem>>, %arg6: memref<14x8x112xbf16, #tpu.memory_space<vmem>>, %arg7: memref<14x8x112xbf16, #tpu.memory_space<vmem>>, %arg8: memref<1x112xf32, #tpu.memory_space<vmem>>, %arg9: memref<1x112xf32, #tpu.memory_space<vmem>>, %arg10: memref<1x112xf32, #tpu.memory_space<vmem>>, %arg11: memref<112x448xbf16, #tpu.memory_space<vmem>>, %arg12: memref<1x448xf32, #tpu.memory_space<vmem>>, %arg13: memref<448x112xbf16, #tpu.memory_space<vmem>>, %arg14: memref<1x112xf32, #tpu.memory_space<vmem>>, %arg15: memref<16x112xf32, #tpu.memory_space<vmem>>) attributes {dimension_semantics = [#tpu.dimension_semantics<parallel>], iteration_bounds = array<i64: 3>, scalar_prefetch = 0 : i64, scratch_operands = 0 : i64, tpu.core_type = #tpu.core_type<tc>, window_params = [{transform_indices = @transform_0, window_bounds = array<i64: 16, 112>}, {pipeline_mode = #tpu.pipeline_mode<synchronous>, transform_indices = @transform_1, window_bounds = array<i64: 1, 112>}, {pipeline_mode = #tpu.pipeline_mode<synchronous>, transform_indices = @transform_2, window_bounds = array<i64: 1, 112>}, {pipeline_mode = #tpu.pipeline_mode<synchronous>, transform_indices = @transform_3, window_bounds = array<i64: 14, 8, 112>}, {pipeline_mode = #tpu.pipeline_mode<synchronous>, transform_indices = @transform_4, window_bounds = array<i64: 14, 8, 112>}, {pipeline_mode = #tpu.pipeline_mode<synchronous>, transform_indices = @transform_5, window_bounds = array<i64: 14, 8, 112>}, {pipeline_mode = #tpu.pipeline_mode<synchronous>, transform_indices = @transform_6, window_bounds = array<i64: 14, 8, 112>}, {pipeline_mode = #tpu.pipeline_mode<synchronous>, transform_indices = @transform_7, window_bounds = array<i64: 1, 112>}, {pipeline_mode = #tpu.pipeline_mode<synchronous>, transform_indices = @transform_8, window_bounds = array<i64: 1, 112>}, {pipeline_mode = #tpu.pipeline_mode<synchronous>, transform_indices = @transform_9, window_bounds = array<i64: 1, 112>}, {pipeline_mode = #tpu.pipeline_mode<synchronous>, transform_indices = @transform_10, window_bounds = array<i64: 112, 448>}, {pipeline_mode = #tpu.pipeline_mode<synchronous>, transform_indices = @transform_11, window_bounds = array<i64: 1, 448>}, {pipeline_mode = #tpu.pipeline_mode<synchronous>, transform_indices = @transform_12, window_bounds = array<i64: 448, 112>}, {pipeline_mode = #tpu.pipeline_mode<synchronous>, transform_indices = @transform_13, window_bounds = array<i64: 1, 112>}, {transform_indices = @transform_14, window_bounds = array<i64: 16, 112>}]} {
    %c0 = arith.constant 0 : index
    %c0_0 = arith.constant 0 : index
    %0 = vector.load %arg1[%c0, %c0_0] : memref<16x112xf32, #tpu.memory_space<vmem>>, vector<16x112xf32>
    %c0_1 = arith.constant 0 : index
    %c0_2 = arith.constant 0 : index
    %1 = vector.load %arg2[%c0_1, %c0_2] : memref<1x112xf32, #tpu.memory_space<vmem>>, vector<1x112xf32>
    %c0_3 = arith.constant 0 : index
    %c0_4 = arith.constant 0 : index
    %2 = vector.load %arg3[%c0_3, %c0_4] : memref<1x112xf32, #tpu.memory_space<vmem>>, vector<1x112xf32>
    %cst = arith.constant dense<0.000000e+00> : vector<16xf32>
    %3 = vector.multi_reduction <add>, %0, %cst [1] : vector<16x112xf32> to vector<16xf32>
    %4 = vector.shape_cast %3 : vector<16xf32> to vector<16x1xf32>
    %cst_5 = arith.constant 1.120000e+02 : f32
    %5 = vector.broadcast %cst_5 : f32 to vector<16x1xf32>
    %6 = arith.divf %4, %5 : vector<16x1xf32>
    %7 = vector.broadcast %6 : vector<16x1xf32> to vector<16x112xf32>
    %8 = arith.subf %0, %7 : vector<16x112xf32>
    %9 = arith.mulf %8, %8 : vector<16x112xf32>
    %cst_6 = arith.constant dense<0.000000e+00> : vector<16xf32>
    %10 = vector.multi_reduction <add>, %9, %cst_6 [1] : vector<16x112xf32> to vector<16xf32>
    %11 = vector.shape_cast %10 : vector<16xf32> to vector<16x1xf32>
    %cst_7 = arith.constant 1.120000e+02 : f32
    %12 = vector.broadcast %cst_7 : f32 to vector<16x1xf32>
    %13 = arith.divf %11, %12 : vector<16x1xf32>
    %cst_8 = arith.constant 9.99999974E-6 : f32
    %14 = vector.broadcast %cst_8 : f32 to vector<16x1xf32>
    %15 = arith.addf %13, %14 : vector<16x1xf32>
    %16 = math.rsqrt %15 : vector<16x1xf32>
    %17 = vector.broadcast %16 : vector<16x1xf32> to vector<16x112xf32>
    %18 = arith.mulf %8, %17 : vector<16x112xf32>
    %19 = vector.broadcast %1 : vector<1x112xf32> to vector<16x112xf32>
    %20 = arith.mulf %18, %19 : vector<16x112xf32>
    %21 = vector.broadcast %2 : vector<1x112xf32> to vector<16x112xf32>
    %22 = arith.addf %20, %21 : vector<16x112xf32>
    %23 = arith.truncf %22 : vector<16x112xf32> to vector<16x112xbf16>
    %24 = vector.shape_cast %23 : vector<16x112xbf16> to vector<1x16x112xbf16>
    %25 = vector.broadcast %24 : vector<1x16x112xbf16> to vector<14x16x112xbf16>
    %c0_9 = arith.constant 0 : index
    %c0_10 = arith.constant 0 : index
    %c0_11 = arith.constant 0 : index
    %26 = vector.load %arg4[%c0_9, %c0_10, %c0_11] : memref<14x8x112xbf16, #tpu.memory_space<vmem>>, vector<14x8x112xbf16>
    "tpu.trace_start"() <{level = 10 : i32, message = "hbd,hid->hbi"}> : () -> ()
    %cst_12 = arith.constant dense<0.000000e+00> : vector<14x16x8xf32>
    %27 = tpu.matmul %25, %26, %cst_12 {dimension_numbers = #tpu.dot_dimension_numbers<[2], [2], [1], [1], [0, 0, 0, 1, 1, 1], [0], [0]>} : vector<14x16x112xbf16>, vector<14x8x112xbf16>, vector<14x16x8xf32> -> vector<14x16x8xf32>
    "tpu.trace_stop"() : () -> ()
    %c0_13 = arith.constant 0 : index
    %c0_14 = arith.constant 0 : index
    %c0_15 = arith.constant 0 : index
    %28 = vector.load %arg5[%c0_13, %c0_14, %c0_15] : memref<14x8x112xbf16, #tpu.memory_space<vmem>>, vector<14x8x112xbf16>
    "tpu.trace_start"() <{level = 10 : i32, message = "hbd,hid->hbi"}> : () -> ()
    %cst_16 = arith.constant dense<0.000000e+00> : vector<14x16x8xf32>
    %29 = tpu.matmul %25, %28, %cst_16 {dimension_numbers = #tpu.dot_dimension_numbers<[2], [2], [1], [1], [0, 0, 0, 1, 1, 1], [0], [0]>} : vector<14x16x112xbf16>, vector<14x8x112xbf16>, vector<14x16x8xf32> -> vector<14x16x8xf32>
    "tpu.trace_stop"() : () -> ()
    %c0_17 = arith.constant 0 : index
    %c0_18 = arith.constant 0 : index
    %c0_19 = arith.constant 0 : index
    %30 = vector.load %arg6[%c0_17, %c0_18, %c0_19] : memref<14x8x112xbf16, #tpu.memory_space<vmem>>, vector<14x8x112xbf16>
    "tpu.trace_start"() <{level = 10 : i32, message = "hbd,hid->hbi"}> : () -> ()
    %cst_20 = arith.constant dense<0.000000e+00> : vector<14x16x8xf32>
    %31 = tpu.matmul %25, %30, %cst_20 {dimension_numbers = #tpu.dot_dimension_numbers<[2], [2], [1], [1], [0, 0, 0, 1, 1, 1], [0], [0]>} : vector<14x16x112xbf16>, vector<14x8x112xbf16>, vector<14x16x8xf32> -> vector<14x16x8xf32>
    "tpu.trace_stop"() : () -> ()
    %cst_21 = arith.constant dense<0xFF800000> : vector<14x16xf32>
    %32 = vector.multi_reduction <maximumf>, %29, %cst_21 [2] : vector<14x16x8xf32> to vector<14x16xf32>
    %33 = vector.shape_cast %32 : vector<14x16xf32> to vector<14x16x1xf32>
    %cst_22 = arith.constant dense<0x7F800000> : vector<14x16xf32>
    %34 = vector.multi_reduction <minimumf>, %29, %cst_22 [2] : vector<14x16x8xf32> to vector<14x16xf32>
    %35 = vector.shape_cast %34 : vector<14x16xf32> to vector<14x16x1xf32>
    %36 = vector.broadcast %33 : vector<14x16x1xf32> to vector<14x16x8xf32>
    %37 = arith.mulf %27, %36 : vector<14x16x8xf32>
    %38 = vector.broadcast %35 : vector<14x16x1xf32> to vector<14x16x8xf32>
    %39 = arith.mulf %27, %38 : vector<14x16x8xf32>
    %40 = arith.maximumf %37, %39 : vector<14x16x8xf32>
    %cst_23 = arith.constant 0.000000e+00 : f32
    %41 = vector.broadcast %cst_23 : f32 to vector<14x16x8xf32>
    %cst_24 = arith.constant 0.000000e+00 : f32
    %42 = vector.broadcast %cst_24 : f32 to vector<14x16x8xf32>
    %43 = vector.extract_strided_slice %29 {offsets = [0, 0, 0], sizes = [14, 16, 1], strides = [1, 1, 1]} : vector<14x16x8xf32> to vector<14x16x1xf32>
    %44 = vector.extract_strided_slice %31 {offsets = [0, 0, 0], sizes = [14, 16, 1], strides = [1, 1, 1]} : vector<14x16x8xf32> to vector<14x16x1xf32>
    %45 = vector.broadcast %43 : vector<14x16x1xf32> to vector<14x16x8xf32>
    %46 = arith.mulf %27, %45 : vector<14x16x8xf32>
    %47 = arith.subf %46, %40 : vector<14x16x8xf32>
    %48 = math.exp %47 : vector<14x16x8xf32>
    %49 = arith.addf %41, %48 : vector<14x16x8xf32>
    %50 = vector.broadcast %44 : vector<14x16x1xf32> to vector<14x16x8xf32>
    %51 = arith.mulf %48, %50 : vector<14x16x8xf32>
    %52 = arith.addf %42, %51 : vector<14x16x8xf32>
    %53 = vector.extract_strided_slice %29 {offsets = [0, 0, 1], sizes = [14, 16, 1], strides = [1, 1, 1]} : vector<14x16x8xf32> to vector<14x16x1xf32>
    %54 = vector.extract_strided_slice %31 {offsets = [0, 0, 1], sizes = [14, 16, 1], strides = [1, 1, 1]} : vector<14x16x8xf32> to vector<14x16x1xf32>
    %55 = vector.broadcast %53 : vector<14x16x1xf32> to vector<14x16x8xf32>
    %56 = arith.mulf %27, %55 : vector<14x16x8xf32>
    %57 = arith.subf %56, %40 : vector<14x16x8xf32>
    %58 = math.exp %57 : vector<14x16x8xf32>
    %59 = arith.addf %49, %58 : vector<14x16x8xf32>
    %60 = vector.broadcast %54 : vector<14x16x1xf32> to vector<14x16x8xf32>
    %61 = arith.mulf %58, %60 : vector<14x16x8xf32>
    %62 = arith.addf %52, %61 : vector<14x16x8xf32>
    %63 = vector.extract_strided_slice %29 {offsets = [0, 0, 2], sizes = [14, 16, 1], strides = [1, 1, 1]} : vector<14x16x8xf32> to vector<14x16x1xf32>
    %64 = vector.extract_strided_slice %31 {offsets = [0, 0, 2], sizes = [14, 16, 1], strides = [1, 1, 1]} : vector<14x16x8xf32> to vector<14x16x1xf32>
    %65 = vector.broadcast %63 : vector<14x16x1xf32> to vector<14x16x8xf32>
    %66 = arith.mulf %27, %65 : vector<14x16x8xf32>
    %67 = arith.subf %66, %40 : vector<14x16x8xf32>
    %68 = math.exp %67 : vector<14x16x8xf32>
    %69 = arith.addf %59, %68 : vector<14x16x8xf32>
    %70 = vector.broadcast %64 : vector<14x16x1xf32> to vector<14x16x8xf32>
    %71 = arith.mulf %68, %70 : vector<14x16x8xf32>
    %72 = arith.addf %62, %71 : vector<14x16x8xf32>
    %73 = vector.extract_strided_slice %29 {offsets = [0, 0, 3], sizes = [14, 16, 1], strides = [1, 1, 1]} : vector<14x16x8xf32> to vector<14x16x1xf32>
    %74 = vector.extract_strided_slice %31 {offsets = [0, 0, 3], sizes = [14, 16, 1], strides = [1, 1, 1]} : vector<14x16x8xf32> to vector<14x16x1xf32>
    %75 = vector.broadcast %73 : vector<14x16x1xf32> to vector<14x16x8xf32>
    %76 = arith.mulf %27, %75 : vector<14x16x8xf32>
    %77 = arith.subf %76, %40 : vector<14x16x8xf32>
    %78 = math.exp %77 : vector<14x16x8xf32>
    %79 = arith.addf %69, %78 : vector<14x16x8xf32>
    %80 = vector.broadcast %74 : vector<14x16x1xf32> to vector<14x16x8xf32>
    %81 = arith.mulf %78, %80 : vector<14x16x8xf32>
    %82 = arith.addf %72, %81 : vector<14x16x8xf32>
    %83 = vector.extract_strided_slice %29 {offsets = [0, 0, 4], sizes = [14, 16, 1], strides = [1, 1, 1]} : vector<14x16x8xf32> to vector<14x16x1xf32>
    %84 = vector.extract_strided_slice %31 {offsets = [0, 0, 4], sizes = [14, 16, 1], strides = [1, 1, 1]} : vector<14x16x8xf32> to vector<14x16x1xf32>
    %85 = vector.broadcast %83 : vector<14x16x1xf32> to vector<14x16x8xf32>
    %86 = arith.mulf %27, %85 : vector<14x16x8xf32>
    %87 = arith.subf %86, %40 : vector<14x16x8xf32>
    %88 = math.exp %87 : vector<14x16x8xf32>
    %89 = arith.addf %79, %88 : vector<14x16x8xf32>
    %90 = vector.broadcast %84 : vector<14x16x1xf32> to vector<14x16x8xf32>
    %91 = arith.mulf %88, %90 : vector<14x16x8xf32>
    %92 = arith.addf %82, %91 : vector<14x16x8xf32>
    %93 = vector.extract_strided_slice %29 {offsets = [0, 0, 5], sizes = [14, 16, 1], strides = [1, 1, 1]} : vector<14x16x8xf32> to vector<14x16x1xf32>
    %94 = vector.extract_strided_slice %31 {offsets = [0, 0, 5], sizes = [14, 16, 1], strides = [1, 1, 1]} : vector<14x16x8xf32> to vector<14x16x1xf32>
    %95 = vector.broadcast %93 : vector<14x16x1xf32> to vector<14x16x8xf32>
    %96 = arith.mulf %27, %95 : vector<14x16x8xf32>
    %97 = arith.subf %96, %40 : vector<14x16x8xf32>
    %98 = math.exp %97 : vector<14x16x8xf32>
    %99 = arith.addf %89, %98 : vector<14x16x8xf32>
    %100 = vector.broadcast %94 : vector<14x16x1xf32> to vector<14x16x8xf32>
    %101 = arith.mulf %98, %100 : vector<14x16x8xf32>
    %102 = arith.addf %92, %101 : vector<14x16x8xf32>
    %103 = vector.extract_strided_slice %29 {offsets = [0, 0, 6], sizes = [14, 16, 1], strides = [1, 1, 1]} : vector<14x16x8xf32> to vector<14x16x1xf32>
    %104 = vector.extract_strided_slice %31 {offsets = [0, 0, 6], sizes = [14, 16, 1], strides = [1, 1, 1]} : vector<14x16x8xf32> to vector<14x16x1xf32>
    %105 = vector.broadcast %103 : vector<14x16x1xf32> to vector<14x16x8xf32>
    %106 = arith.mulf %27, %105 : vector<14x16x8xf32>
    %107 = arith.subf %106, %40 : vector<14x16x8xf32>
    %108 = math.exp %107 : vector<14x16x8xf32>
    %109 = arith.addf %99, %108 : vector<14x16x8xf32>
    %110 = vector.broadcast %104 : vector<14x16x1xf32> to vector<14x16x8xf32>
    %111 = arith.mulf %108, %110 : vector<14x16x8xf32>
    %112 = arith.addf %102, %111 : vector<14x16x8xf32>
    %113 = vector.extract_strided_slice %29 {offsets = [0, 0, 7], sizes = [14, 16, 1], strides = [1, 1, 1]} : vector<14x16x8xf32> to vector<14x16x1xf32>
    %114 = vector.extract_strided_slice %31 {offsets = [0, 0, 7], sizes = [14, 16, 1], strides = [1, 1, 1]} : vector<14x16x8xf32> to vector<14x16x1xf32>
    %115 = vector.broadcast %113 : vector<14x16x1xf32> to vector<14x16x8xf32>
    %116 = arith.mulf %27, %115 : vector<14x16x8xf32>
    %117 = arith.subf %116, %40 : vector<14x16x8xf32>
    %118 = math.exp %117 : vector<14x16x8xf32>
    %119 = arith.addf %109, %118 : vector<14x16x8xf32>
    %120 = vector.broadcast %114 : vector<14x16x1xf32> to vector<14x16x8xf32>
    %121 = arith.mulf %118, %120 : vector<14x16x8xf32>
    %122 = arith.addf %112, %121 : vector<14x16x8xf32>
    %123 = tpu.reciprocal %119 {approx = true} : vector<14x16x8xf32> -> vector<14x16x8xf32>
    %124 = arith.mulf %122, %123 : vector<14x16x8xf32>
    %cst_25 = arith.constant 0.000000e+00 : f32
    %125 = vector.broadcast %cst_25 : f32 to vector<16x112xf32>
    %126 = vector.extract_strided_slice %124 {offsets = [0, 0, 0], sizes = [1, 16, 8], strides = [1, 1, 1]} : vector<14x16x8xf32> to vector<1x16x8xf32>
    %127 = vector.shape_cast %126 : vector<1x16x8xf32> to vector<16x8xf32>
    %128 = arith.truncf %127 : vector<16x8xf32> to vector<16x8xbf16>
    %c0_26 = arith.constant 0 : index
    %c0_27 = arith.constant 0 : index
    %c0_28 = arith.constant 0 : index
    %129 = vector.load %arg7[%c0_26, %c0_27, %c0_28] : memref<14x8x112xbf16, #tpu.memory_space<vmem>>, vector<1x8x112xbf16>
    %130 = vector.shape_cast %129 : vector<1x8x112xbf16> to vector<8x112xbf16>
    %cst_29 = arith.constant dense<0.000000e+00> : vector<16x112xf32>
    %131 = tpu.matmul %128, %130, %cst_29 {dimension_numbers = #tpu.dot_dimension_numbers<[1], [0], [0], [1], [0, 0, 1, 1], [], []>} : vector<16x8xbf16>, vector<8x112xbf16>, vector<16x112xf32> -> vector<16x112xf32>
    %132 = arith.addf %125, %131 : vector<16x112xf32>
    %133 = vector.extract_strided_slice %124 {offsets = [1, 0, 0], sizes = [1, 16, 8], strides = [1, 1, 1]} : vector<14x16x8xf32> to vector<1x16x8xf32>
    %134 = vector.shape_cast %133 : vector<1x16x8xf32> to vector<16x8xf32>
    %135 = arith.truncf %134 : vector<16x8xf32> to vector<16x8xbf16>
    %c1 = arith.constant 1 : index
    %c0_30 = arith.constant 0 : index
    %c0_31 = arith.constant 0 : index
    %136 = vector.load %arg7[%c1, %c0_30, %c0_31] : memref<14x8x112xbf16, #tpu.memory_space<vmem>>, vector<1x8x112xbf16>
    %137 = vector.shape_cast %136 : vector<1x8x112xbf16> to vector<8x112xbf16>
    %cst_32 = arith.constant dense<0.000000e+00> : vector<16x112xf32>
    %138 = tpu.matmul %135, %137, %cst_32 {dimension_numbers = #tpu.dot_dimension_numbers<[1], [0], [0], [1], [0, 0, 1, 1], [], []>} : vector<16x8xbf16>, vector<8x112xbf16>, vector<16x112xf32> -> vector<16x112xf32>
    %139 = arith.addf %132, %138 : vector<16x112xf32>
    %140 = vector.extract_strided_slice %124 {offsets = [2, 0, 0], sizes = [1, 16, 8], strides = [1, 1, 1]} : vector<14x16x8xf32> to vector<1x16x8xf32>
    %141 = vector.shape_cast %140 : vector<1x16x8xf32> to vector<16x8xf32>
    %142 = arith.truncf %141 : vector<16x8xf32> to vector<16x8xbf16>
    %c2 = arith.constant 2 : index
    %c0_33 = arith.constant 0 : index
    %c0_34 = arith.constant 0 : index
    %143 = vector.load %arg7[%c2, %c0_33, %c0_34] : memref<14x8x112xbf16, #tpu.memory_space<vmem>>, vector<1x8x112xbf16>
    %144 = vector.shape_cast %143 : vector<1x8x112xbf16> to vector<8x112xbf16>
    %cst_35 = arith.constant dense<0.000000e+00> : vector<16x112xf32>
    %145 = tpu.matmul %142, %144, %cst_35 {dimension_numbers = #tpu.dot_dimension_numbers<[1], [0], [0], [1], [0, 0, 1, 1], [], []>} : vector<16x8xbf16>, vector<8x112xbf16>, vector<16x112xf32> -> vector<16x112xf32>
    %146 = arith.addf %139, %145 : vector<16x112xf32>
    %147 = vector.extract_strided_slice %124 {offsets = [3, 0, 0], sizes = [1, 16, 8], strides = [1, 1, 1]} : vector<14x16x8xf32> to vector<1x16x8xf32>
    %148 = vector.shape_cast %147 : vector<1x16x8xf32> to vector<16x8xf32>
    %149 = arith.truncf %148 : vector<16x8xf32> to vector<16x8xbf16>
    %c3 = arith.constant 3 : index
    %c0_36 = arith.constant 0 : index
    %c0_37 = arith.constant 0 : index
    %150 = vector.load %arg7[%c3, %c0_36, %c0_37] : memref<14x8x112xbf16, #tpu.memory_space<vmem>>, vector<1x8x112xbf16>
    %151 = vector.shape_cast %150 : vector<1x8x112xbf16> to vector<8x112xbf16>
    %cst_38 = arith.constant dense<0.000000e+00> : vector<16x112xf32>
    %152 = tpu.matmul %149, %151, %cst_38 {dimension_numbers = #tpu.dot_dimension_numbers<[1], [0], [0], [1], [0, 0, 1, 1], [], []>} : vector<16x8xbf16>, vector<8x112xbf16>, vector<16x112xf32> -> vector<16x112xf32>
    %153 = arith.addf %146, %152 : vector<16x112xf32>
    %154 = vector.extract_strided_slice %124 {offsets = [4, 0, 0], sizes = [1, 16, 8], strides = [1, 1, 1]} : vector<14x16x8xf32> to vector<1x16x8xf32>
    %155 = vector.shape_cast %154 : vector<1x16x8xf32> to vector<16x8xf32>
    %156 = arith.truncf %155 : vector<16x8xf32> to vector<16x8xbf16>
    %c4 = arith.constant 4 : index
    %c0_39 = arith.constant 0 : index
    %c0_40 = arith.constant 0 : index
    %157 = vector.load %arg7[%c4, %c0_39, %c0_40] : memref<14x8x112xbf16, #tpu.memory_space<vmem>>, vector<1x8x112xbf16>
    %158 = vector.shape_cast %157 : vector<1x8x112xbf16> to vector<8x112xbf16>
    %cst_41 = arith.constant dense<0.000000e+00> : vector<16x112xf32>
    %159 = tpu.matmul %156, %158, %cst_41 {dimension_numbers = #tpu.dot_dimension_numbers<[1], [0], [0], [1], [0, 0, 1, 1], [], []>} : vector<16x8xbf16>, vector<8x112xbf16>, vector<16x112xf32> -> vector<16x112xf32>
    %160 = arith.addf %153, %159 : vector<16x112xf32>
    %161 = vector.extract_strided_slice %124 {offsets = [5, 0, 0], sizes = [1, 16, 8], strides = [1, 1, 1]} : vector<14x16x8xf32> to vector<1x16x8xf32>
    %162 = vector.shape_cast %161 : vector<1x16x8xf32> to vector<16x8xf32>
    %163 = arith.truncf %162 : vector<16x8xf32> to vector<16x8xbf16>
    %c5 = arith.constant 5 : index
    %c0_42 = arith.constant 0 : index
    %c0_43 = arith.constant 0 : index
    %164 = vector.load %arg7[%c5, %c0_42, %c0_43] : memref<14x8x112xbf16, #tpu.memory_space<vmem>>, vector<1x8x112xbf16>
    %165 = vector.shape_cast %164 : vector<1x8x112xbf16> to vector<8x112xbf16>
    %cst_44 = arith.constant dense<0.000000e+00> : vector<16x112xf32>
    %166 = tpu.matmul %163, %165, %cst_44 {dimension_numbers = #tpu.dot_dimension_numbers<[1], [0], [0], [1], [0, 0, 1, 1], [], []>} : vector<16x8xbf16>, vector<8x112xbf16>, vector<16x112xf32> -> vector<16x112xf32>
    %167 = arith.addf %160, %166 : vector<16x112xf32>
    %168 = vector.extract_strided_slice %124 {offsets = [6, 0, 0], sizes = [1, 16, 8], strides = [1, 1, 1]} : vector<14x16x8xf32> to vector<1x16x8xf32>
    %169 = vector.shape_cast %168 : vector<1x16x8xf32> to vector<16x8xf32>
    %170 = arith.truncf %169 : vector<16x8xf32> to vector<16x8xbf16>
    %c6 = arith.constant 6 : index
    %c0_45 = arith.constant 0 : index
    %c0_46 = arith.constant 0 : index
    %171 = vector.load %arg7[%c6, %c0_45, %c0_46] : memref<14x8x112xbf16, #tpu.memory_space<vmem>>, vector<1x8x112xbf16>
    %172 = vector.shape_cast %171 : vector<1x8x112xbf16> to vector<8x112xbf16>
    %cst_47 = arith.constant dense<0.000000e+00> : vector<16x112xf32>
    %173 = tpu.matmul %170, %172, %cst_47 {dimension_numbers = #tpu.dot_dimension_numbers<[1], [0], [0], [1], [0, 0, 1, 1], [], []>} : vector<16x8xbf16>, vector<8x112xbf16>, vector<16x112xf32> -> vector<16x112xf32>
    %174 = arith.addf %167, %173 : vector<16x112xf32>
    %175 = vector.extract_strided_slice %124 {offsets = [7, 0, 0], sizes = [1, 16, 8], strides = [1, 1, 1]} : vector<14x16x8xf32> to vector<1x16x8xf32>
    %176 = vector.shape_cast %175 : vector<1x16x8xf32> to vector<16x8xf32>
    %177 = arith.truncf %176 : vector<16x8xf32> to vector<16x8xbf16>
    %c7 = arith.constant 7 : index
    %c0_48 = arith.constant 0 : index
    %c0_49 = arith.constant 0 : index
    %178 = vector.load %arg7[%c7, %c0_48, %c0_49] : memref<14x8x112xbf16, #tpu.memory_space<vmem>>, vector<1x8x112xbf16>
    %179 = vector.shape_cast %178 : vector<1x8x112xbf16> to vector<8x112xbf16>
    %cst_50 = arith.constant dense<0.000000e+00> : vector<16x112xf32>
    %180 = tpu.matmul %177, %179, %cst_50 {dimension_numbers = #tpu.dot_dimension_numbers<[1], [0], [0], [1], [0, 0, 1, 1], [], []>} : vector<16x8xbf16>, vector<8x112xbf16>, vector<16x112xf32> -> vector<16x112xf32>
    %181 = arith.addf %174, %180 : vector<16x112xf32>
    %182 = vector.extract_strided_slice %124 {offsets = [8, 0, 0], sizes = [1, 16, 8], strides = [1, 1, 1]} : vector<14x16x8xf32> to vector<1x16x8xf32>
    %183 = vector.shape_cast %182 : vector<1x16x8xf32> to vector<16x8xf32>
    %184 = arith.truncf %183 : vector<16x8xf32> to vector<16x8xbf16>
    %c8 = arith.constant 8 : index
    %c0_51 = arith.constant 0 : index
    %c0_52 = arith.constant 0 : index
    %185 = vector.load %arg7[%c8, %c0_51, %c0_52] : memref<14x8x112xbf16, #tpu.memory_space<vmem>>, vector<1x8x112xbf16>
    %186 = vector.shape_cast %185 : vector<1x8x112xbf16> to vector<8x112xbf16>
    %cst_53 = arith.constant dense<0.000000e+00> : vector<16x112xf32>
    %187 = tpu.matmul %184, %186, %cst_53 {dimension_numbers = #tpu.dot_dimension_numbers<[1], [0], [0], [1], [0, 0, 1, 1], [], []>} : vector<16x8xbf16>, vector<8x112xbf16>, vector<16x112xf32> -> vector<16x112xf32>
    %188 = arith.addf %181, %187 : vector<16x112xf32>
    %189 = vector.extract_strided_slice %124 {offsets = [9, 0, 0], sizes = [1, 16, 8], strides = [1, 1, 1]} : vector<14x16x8xf32> to vector<1x16x8xf32>
    %190 = vector.shape_cast %189 : vector<1x16x8xf32> to vector<16x8xf32>
    %191 = arith.truncf %190 : vector<16x8xf32> to vector<16x8xbf16>
    %c9 = arith.constant 9 : index
    %c0_54 = arith.constant 0 : index
    %c0_55 = arith.constant 0 : index
    %192 = vector.load %arg7[%c9, %c0_54, %c0_55] : memref<14x8x112xbf16, #tpu.memory_space<vmem>>, vector<1x8x112xbf16>
    %193 = vector.shape_cast %192 : vector<1x8x112xbf16> to vector<8x112xbf16>
    %cst_56 = arith.constant dense<0.000000e+00> : vector<16x112xf32>
    %194 = tpu.matmul %191, %193, %cst_56 {dimension_numbers = #tpu.dot_dimension_numbers<[1], [0], [0], [1], [0, 0, 1, 1], [], []>} : vector<16x8xbf16>, vector<8x112xbf16>, vector<16x112xf32> -> vector<16x112xf32>
    %195 = arith.addf %188, %194 : vector<16x112xf32>
    %196 = vector.extract_strided_slice %124 {offsets = [10, 0, 0], sizes = [1, 16, 8], strides = [1, 1, 1]} : vector<14x16x8xf32> to vector<1x16x8xf32>
    %197 = vector.shape_cast %196 : vector<1x16x8xf32> to vector<16x8xf32>
    %198 = arith.truncf %197 : vector<16x8xf32> to vector<16x8xbf16>
    %c10 = arith.constant 10 : index
    %c0_57 = arith.constant 0 : index
    %c0_58 = arith.constant 0 : index
    %199 = vector.load %arg7[%c10, %c0_57, %c0_58] : memref<14x8x112xbf16, #tpu.memory_space<vmem>>, vector<1x8x112xbf16>
    %200 = vector.shape_cast %199 : vector<1x8x112xbf16> to vector<8x112xbf16>
    %cst_59 = arith.constant dense<0.000000e+00> : vector<16x112xf32>
    %201 = tpu.matmul %198, %200, %cst_59 {dimension_numbers = #tpu.dot_dimension_numbers<[1], [0], [0], [1], [0, 0, 1, 1], [], []>} : vector<16x8xbf16>, vector<8x112xbf16>, vector<16x112xf32> -> vector<16x112xf32>
    %202 = arith.addf %195, %201 : vector<16x112xf32>
    %203 = vector.extract_strided_slice %124 {offsets = [11, 0, 0], sizes = [1, 16, 8], strides = [1, 1, 1]} : vector<14x16x8xf32> to vector<1x16x8xf32>
    %204 = vector.shape_cast %203 : vector<1x16x8xf32> to vector<16x8xf32>
    %205 = arith.truncf %204 : vector<16x8xf32> to vector<16x8xbf16>
    %c11 = arith.constant 11 : index
    %c0_60 = arith.constant 0 : index
    %c0_61 = arith.constant 0 : index
    %206 = vector.load %arg7[%c11, %c0_60, %c0_61] : memref<14x8x112xbf16, #tpu.memory_space<vmem>>, vector<1x8x112xbf16>
    %207 = vector.shape_cast %206 : vector<1x8x112xbf16> to vector<8x112xbf16>
    %cst_62 = arith.constant dense<0.000000e+00> : vector<16x112xf32>
    %208 = tpu.matmul %205, %207, %cst_62 {dimension_numbers = #tpu.dot_dimension_numbers<[1], [0], [0], [1], [0, 0, 1, 1], [], []>} : vector<16x8xbf16>, vector<8x112xbf16>, vector<16x112xf32> -> vector<16x112xf32>
    %209 = arith.addf %202, %208 : vector<16x112xf32>
    %210 = vector.extract_strided_slice %124 {offsets = [12, 0, 0], sizes = [1, 16, 8], strides = [1, 1, 1]} : vector<14x16x8xf32> to vector<1x16x8xf32>
    %211 = vector.shape_cast %210 : vector<1x16x8xf32> to vector<16x8xf32>
    %212 = arith.truncf %211 : vector<16x8xf32> to vector<16x8xbf16>
    %c12 = arith.constant 12 : index
    %c0_63 = arith.constant 0 : index
    %c0_64 = arith.constant 0 : index
    %213 = vector.load %arg7[%c12, %c0_63, %c0_64] : memref<14x8x112xbf16, #tpu.memory_space<vmem>>, vector<1x8x112xbf16>
    %214 = vector.shape_cast %213 : vector<1x8x112xbf16> to vector<8x112xbf16>
    %cst_65 = arith.constant dense<0.000000e+00> : vector<16x112xf32>
    %215 = tpu.matmul %212, %214, %cst_65 {dimension_numbers = #tpu.dot_dimension_numbers<[1], [0], [0], [1], [0, 0, 1, 1], [], []>} : vector<16x8xbf16>, vector<8x112xbf16>, vector<16x112xf32> -> vector<16x112xf32>
    %216 = arith.addf %209, %215 : vector<16x112xf32>
    %217 = vector.extract_strided_slice %124 {offsets = [13, 0, 0], sizes = [1, 16, 8], strides = [1, 1, 1]} : vector<14x16x8xf32> to vector<1x16x8xf32>
    %218 = vector.shape_cast %217 : vector<1x16x8xf32> to vector<16x8xf32>
    %219 = arith.truncf %218 : vector<16x8xf32> to vector<16x8xbf16>
    %c13 = arith.constant 13 : index
    %c0_66 = arith.constant 0 : index
    %c0_67 = arith.constant 0 : index
    %220 = vector.load %arg7[%c13, %c0_66, %c0_67] : memref<14x8x112xbf16, #tpu.memory_space<vmem>>, vector<1x8x112xbf16>
    %221 = vector.shape_cast %220 : vector<1x8x112xbf16> to vector<8x112xbf16>
    %cst_68 = arith.constant dense<0.000000e+00> : vector<16x112xf32>
    %222 = tpu.matmul %219, %221, %cst_68 {dimension_numbers = #tpu.dot_dimension_numbers<[1], [0], [0], [1], [0, 0, 1, 1], [], []>} : vector<16x8xbf16>, vector<8x112xbf16>, vector<16x112xf32> -> vector<16x112xf32>
    %223 = arith.addf %216, %222 : vector<16x112xf32>
    %224 = arith.addf %0, %223 : vector<16x112xf32>
    %c0_69 = arith.constant 0 : index
    %c0_70 = arith.constant 0 : index
    %225 = vector.load %arg8[%c0_69, %c0_70] : memref<1x112xf32, #tpu.memory_space<vmem>>, vector<1x112xf32>
    %226 = vector.broadcast %225 : vector<1x112xf32> to vector<16x112xf32>
    %227 = arith.addf %224, %226 : vector<16x112xf32>
    %c0_71 = arith.constant 0 : index
    %c0_72 = arith.constant 0 : index
    %228 = vector.load %arg9[%c0_71, %c0_72] : memref<1x112xf32, #tpu.memory_space<vmem>>, vector<1x112xf32>
    %c0_73 = arith.constant 0 : index
    %c0_74 = arith.constant 0 : index
    %229 = vector.load %arg10[%c0_73, %c0_74] : memref<1x112xf32, #tpu.memory_space<vmem>>, vector<1x112xf32>
    %cst_75 = arith.constant dense<0.000000e+00> : vector<16xf32>
    %230 = vector.multi_reduction <add>, %227, %cst_75 [1] : vector<16x112xf32> to vector<16xf32>
    %231 = vector.shape_cast %230 : vector<16xf32> to vector<16x1xf32>
    %cst_76 = arith.constant 1.120000e+02 : f32
    %232 = vector.broadcast %cst_76 : f32 to vector<16x1xf32>
    %233 = arith.divf %231, %232 : vector<16x1xf32>
    %234 = vector.broadcast %233 : vector<16x1xf32> to vector<16x112xf32>
    %235 = arith.subf %227, %234 : vector<16x112xf32>
    %236 = arith.mulf %235, %235 : vector<16x112xf32>
    %cst_77 = arith.constant dense<0.000000e+00> : vector<16xf32>
    %237 = vector.multi_reduction <add>, %236, %cst_77 [1] : vector<16x112xf32> to vector<16xf32>
    %238 = vector.shape_cast %237 : vector<16xf32> to vector<16x1xf32>
    %cst_78 = arith.constant 1.120000e+02 : f32
    %239 = vector.broadcast %cst_78 : f32 to vector<16x1xf32>
    %240 = arith.divf %238, %239 : vector<16x1xf32>
    %cst_79 = arith.constant 9.99999974E-6 : f32
    %241 = vector.broadcast %cst_79 : f32 to vector<16x1xf32>
    %242 = arith.addf %240, %241 : vector<16x1xf32>
    %243 = math.rsqrt %242 : vector<16x1xf32>
    %244 = vector.broadcast %243 : vector<16x1xf32> to vector<16x112xf32>
    %245 = arith.mulf %235, %244 : vector<16x112xf32>
    %246 = vector.broadcast %228 : vector<1x112xf32> to vector<16x112xf32>
    %247 = arith.mulf %245, %246 : vector<16x112xf32>
    %248 = vector.broadcast %229 : vector<1x112xf32> to vector<16x112xf32>
    %249 = arith.addf %247, %248 : vector<16x112xf32>
    %250 = arith.truncf %249 : vector<16x112xf32> to vector<16x112xbf16>
    %c0_80 = arith.constant 0 : index
    %c0_81 = arith.constant 0 : index
    %251 = vector.load %arg11[%c0_80, %c0_81] : memref<112x448xbf16, #tpu.memory_space<vmem>>, vector<112x448xbf16>
    %cst_82 = arith.constant dense<0.000000e+00> : vector<16x448xf32>
    %252 = tpu.matmul %250, %251, %cst_82 {dimension_numbers = #tpu.dot_dimension_numbers<[1], [0], [0], [1], [0, 0, 1, 1], [], []>} : vector<16x112xbf16>, vector<112x448xbf16>, vector<16x448xf32> -> vector<16x448xf32>
    %c0_83 = arith.constant 0 : index
    %c0_84 = arith.constant 0 : index
    %253 = vector.load %arg12[%c0_83, %c0_84] : memref<1x448xf32, #tpu.memory_space<vmem>>, vector<1x448xf32>
    %254 = vector.broadcast %253 : vector<1x448xf32> to vector<16x448xf32>
    %255 = arith.addf %252, %254 : vector<16x448xf32>
    %cst_85 = arith.constant 5.000000e-01 : f32
    %256 = vector.broadcast %cst_85 : f32 to vector<16x448xf32>
    %257 = arith.mulf %256, %255 : vector<16x448xf32>
    %cst_86 = arith.constant 4.471500e-02 : f32
    %258 = vector.broadcast %cst_86 : f32 to vector<16x448xf32>
    %259 = arith.mulf %258, %255 : vector<16x448xf32>
    %260 = arith.mulf %259, %255 : vector<16x448xf32>
    %261 = arith.mulf %260, %255 : vector<16x448xf32>
    %262 = arith.addf %255, %261 : vector<16x448xf32>
    %cst_87 = arith.constant 0.797884583 : f32
    %263 = vector.broadcast %cst_87 : f32 to vector<16x448xf32>
    %264 = arith.mulf %263, %262 : vector<16x448xf32>
    %265 = math.tanh %264 : vector<16x448xf32>
    %cst_88 = arith.constant 1.000000e+00 : f32
    %266 = vector.broadcast %cst_88 : f32 to vector<16x448xf32>
    %267 = arith.addf %266, %265 : vector<16x448xf32>
    %268 = arith.mulf %257, %267 : vector<16x448xf32>
    %269 = arith.truncf %268 : vector<16x448xf32> to vector<16x448xbf16>
    %c0_89 = arith.constant 0 : index
    %c0_90 = arith.constant 0 : index
    %270 = vector.load %arg13[%c0_89, %c0_90] : memref<448x112xbf16, #tpu.memory_space<vmem>>, vector<448x112xbf16>
    %cst_91 = arith.constant dense<0.000000e+00> : vector<16x112xf32>
    %271 = tpu.matmul %269, %270, %cst_91 {dimension_numbers = #tpu.dot_dimension_numbers<[1], [0], [0], [1], [0, 0, 1, 1], [], []>} : vector<16x448xbf16>, vector<448x112xbf16>, vector<16x112xf32> -> vector<16x112xf32>
    %272 = arith.addf %227, %271 : vector<16x112xf32>
    %c0_92 = arith.constant 0 : index
    %c0_93 = arith.constant 0 : index
    %273 = vector.load %arg14[%c0_92, %c0_93] : memref<1x112xf32, #tpu.memory_space<vmem>>, vector<1x112xf32>
    %274 = vector.broadcast %273 : vector<1x112xf32> to vector<16x112xf32>
    %275 = arith.addf %272, %274 : vector<16x112xf32>
    %c0_94 = arith.constant 0 : index
    %c0_95 = arith.constant 0 : index
    %276 = vector.load %arg15[%c0_94, %c0_95] : memref<16x112xf32, #tpu.memory_space<vmem>>, vector<16x112xf32>
    tpu.vector_store %arg15[%c0_94, %c0_95], %275 {strides = array<i32>} : memref<16x112xf32, #tpu.memory_space<vmem>>, vector<16x112xf32>,
    return
  }
  func.func @transform_0(%arg0: i32) -> (i32, i32) {
    %c0_i32 = arith.constant 0 : i32
    %c0_i32_0 = arith.constant 0 : i32
    return %arg0, %c0_i32 : i32, i32
  }
  func.func @transform_1(%arg0: i32) -> (i32, i32) {
    %c0_i32 = arith.constant 0 : i32
    %c0_i32_0 = arith.constant 0 : i32
    %c0_i32_1 = arith.constant 0 : i32
    return %c0_i32, %c0_i32_0 : i32, i32
  }
  func.func @transform_2(%arg0: i32) -> (i32, i32) {
    %c0_i32 = arith.constant 0 : i32
    %c0_i32_0 = arith.constant 0 : i32
    %c0_i32_1 = arith.constant 0 : i32
    return %c0_i32, %c0_i32_0 : i32, i32
  }
  func.func @transform_3(%arg0: i32) -> (i32, i32, i32) {
    %c0_i32 = arith.constant 0 : i32
    %c0_i32_0 = arith.constant 0 : i32
    %c0_i32_1 = arith.constant 0 : i32
    %c0_i32_2 = arith.constant 0 : i32
    return %c0_i32, %c0_i32_0, %c0_i32_1 : i32, i32, i32
  }
  func.func @transform_4(%arg0: i32) -> (i32, i32, i32) {
    %c0_i32 = arith.constant 0 : i32
    %c0_i32_0 = arith.constant 0 : i32
    %c0_i32_1 = arith.constant 0 : i32
    %c0_i32_2 = arith.constant 0 : i32
    return %c0_i32, %c0_i32_0, %c0_i32_1 : i32, i32, i32
  }
  func.func @transform_5(%arg0: i32) -> (i32, i32, i32) {
    %c0_i32 = arith.constant 0 : i32
    %c0_i32_0 = arith.constant 0 : i32
    %c0_i32_1 = arith.constant 0 : i32
    %c0_i32_2 = arith.constant 0 : i32
    return %c0_i32, %c0_i32_0, %c0_i32_1 : i32, i32, i32
  }
  func.func @transform_6(%arg0: i32) -> (i32, i32, i32) {
    %c0_i32 = arith.constant 0 : i32
    %c0_i32_0 = arith.constant 0 : i32
    %c0_i32_1 = arith.constant 0 : i32
    %c0_i32_2 = arith.constant 0 : i32
    return %c0_i32, %c0_i32_0, %c0_i32_1 : i32, i32, i32
  }
  func.func @transform_7(%arg0: i32) -> (i32, i32) {
    %c0_i32 = arith.constant 0 : i32
    %c0_i32_0 = arith.constant 0 : i32
    %c0_i32_1 = arith.constant 0 : i32
    return %c0_i32, %c0_i32_0 : i32, i32
  }
  func.func @transform_8(%arg0: i32) -> (i32, i32) {
    %c0_i32 = arith.constant 0 : i32
    %c0_i32_0 = arith.constant 0 : i32
    %c0_i32_1 = arith.constant 0 : i32
    return %c0_i32, %c0_i32_0 : i32, i32
  }
  func.func @transform_9(%arg0: i32) -> (i32, i32) {
    %c0_i32 = arith.constant 0 : i32
    %c0_i32_0 = arith.constant 0 : i32
    %c0_i32_1 = arith.constant 0 : i32
    return %c0_i32, %c0_i32_0 : i32, i32
  }
  func.func @transform_10(%arg0: i32) -> (i32, i32) {
    %c0_i32 = arith.constant 0 : i32
    %c0_i32_0 = arith.constant 0 : i32
    %c0_i32_1 = arith.constant 0 : i32
    return %c0_i32, %c0_i32_0 : i32, i32
  }
  func.func @transform_11(%arg0: i32) -> (i32, i32) {
    %c0_i32 = arith.constant 0 : i32
    %c0_i32_0 = arith.constant 0 : i32
    %c0_i32_1 = arith.constant 0 : i32
    return %c0_i32, %c0_i32_0 : i32, i32
  }
  func.func @transform_12(%arg0: i32) -> (i32, i32) {
    %c0_i32 = arith.constant 0 : i32
    %c0_i32_0 = arith.constant 0 : i32
    %c0_i32_1 = arith.constant 0 : i32
    return %c0_i32, %c0_i32_0 : i32, i32
  }
  func.func @transform_13(%arg0: i32) -> (i32, i32) {
    %c0_i32 = arith.constant 0 : i32
    %c0_i32_0 = arith.constant 0 : i32
    %c0_i32_1 = arith.constant 0 : i32
    return %c0_i32, %c0_i32_0 : i32, i32
  }
  func.func @transform_14(%arg0: i32) -> (i32, i32) {
    %c0_i32 = arith.constant 0 : i32
    %c0_i32_0 = arith.constant 0 : i32
    return %arg0, %c0_i32 : i32, i32
  }
}

</mosaic_0001>

<llo_original>
// kernel: tpu_custom_call.1
$region0: #{tpu_custom_call.1}
  #allocation0 [shape = 'u32[]', space=smem, size = 0x4, offset = 0x4, fixed_abs, tag = 'smem constant byte address 0x4 - core index']
  #allocation1 [shape = 'u32[72,128]{1,0:T(1,128)}', space=vmem, size = 0x9000, scoped, tag = 'internal scratch']
  %s0 = inlined_call_operand.hbm [shape: f32[48,112], index: 0, kind: input, shape index: {}]
  %s1 = inlined_call_operand.hbm [shape: f32[1,112], index: 1, kind: input, shape index: {}]
  %s2 = inlined_call_operand.vmem [shape: f32[1,112], index: 2, kind: input, shape index: {}]
  %s3 = inlined_call_operand.hbm [shape: bf16[14,8,112], index: 3, kind: input, shape index: {}]
  %s4 = inlined_call_operand.hbm [shape: bf16[14,8,112], index: 4, kind: input, shape index: {}]
  %s5 = inlined_call_operand.hbm [shape: bf16[14,8,112], index: 5, kind: input, shape index: {}]
  %s6 = inlined_call_operand.hbm [shape: bf16[14,8,112], index: 6, kind: input, shape index: {}]
  %s7 = inlined_call_operand.vmem [shape: f32[1,112], index: 7, kind: input, shape index: {}]
  %s8 = inlined_call_operand.vmem [shape: f32[1,112], index: 8, kind: input, shape index: {}]
  %s9 = inlined_call_operand.vmem [shape: f32[1,112], index: 9, kind: input, shape index: {}]
  %s10 = inlined_call_operand.hbm [shape: bf16[112,448], index: 10, kind: input, shape index: {}]
  %s11 = inlined_call_operand.vmem [shape: f32[1,448], index: 11, kind: input, shape index: {}]
  %s12 = inlined_call_operand.hbm [shape: bf16[448,112], index: 12, kind: input, shape index: {}]
  %s13 = inlined_call_operand.vmem [shape: f32[1,112], index: 13, kind: input, shape index: {}]
  %s14 = inlined_call_operand.hbm [shape: f32[48,112], index: 14, kind: output, shape index: {}]
  %s15 = sld [smem:[#allocation0]]
  $region121: #{tpu_custom_call.1} parent=0
    _
  %s17 = ssub.s32 1, %s15
  %s18 = scalar_select 0, %s17, %s15
  $region1: #{tpu_custom_call.1} parent=0
    #allocation2 [shape = 'u8[16384]{0}', space=vmem, size = 0x4000, scoped, tag = 'input window, operand 0']
    #allocation3 [shape = 's32[2]{0}', space=sflag, size = 0x8, scoped, tag = 'scoped memory for tpu_custom_call.1']
    #allocation4 [shape = 's32[2]{0}', space=sflag, size = 0x8, scoped, tag = 'scoped memory for tpu_custom_call.1']
    #allocation5 [shape = 'u8[512]{0}', space=vmem, size = 0x400, scoped, tag = 'input window, operand 1, single buffered']
    #allocation6 [shape = 's32[1]{0}', space=sflag, size = 0x4, scoped, tag = 'scoped memory for tpu_custom_call.1']
    #allocation7 [shape = 'u8[28672]{0}', space=vmem, size = 0x7000, scoped, tag = 'input window, operand 3, single buffered']
    #allocation8 [shape = 'u8[28672]{0}', space=vmem, size = 0x7000, scoped, tag = 'input window, operand 4, single buffered']
    #allocation9 [shape = 's32[1]{0}', space=sflag, size = 0x4, scoped, tag = 'scoped memory for tpu_custom_call.1']
    #allocation10 [shape = 'u8[28672]{0}', space=vmem, size = 0x7000, scoped, tag = 'input window, operand 5, single buffered']
    #allocation11 [shape = 'u8[28672]{0}', space=vmem, size = 0x7000, scoped, tag = 'input window, operand 6, single buffered']
    #allocation12 [shape = 's32[1]{0}', space=sflag, size = 0x4, scoped, tag = 'scoped memory for tpu_custom_call.1']
    #allocation13 [shape = 'u8[114688]{0}', space=vmem, size = 0x1c000, scoped, tag = 'input window, operand 10, single buffered']
    #allocation14 [shape = 'u8[114688]{0}', space=vmem, size = 0x1c000, scoped, tag = 'input window, operand 12, single buffered']
    #allocation15 [shape = 's32[1]{0}', space=sflag, size = 0x4, scoped, tag = 'scoped memory for tpu_custom_call.1']
    #allocation16 [shape = 'u8[16384]{0}', space=vmem, size = 0x4000, scoped, tag = 'output window, operand 0']
    %19 = vsyncpa [#allocation3], 0
    %s20 = scalar_lea.sflag [#allocation3], 1
    %21 = vsyncpa %s20, 0
    %22 = vsyncpa [#allocation6], 0
    %23 = vsyncpa [#allocation9], 0
    %24 = vsyncpa [#allocation12], 0
    %25 = vsyncpa [#allocation15], 0
    %26 = vsyncpa [#allocation4], 0
    %s27 = scalar_lea.sflag [#allocation4], 1
    %28 = vsyncpa %s27, 0
    loop: start=0, step=1, limit=5
    $region2: #{tpu_custom_call.1} parent=1 // loop_pre_header
      _
    $region3: #{tpu_custom_call.1} parent=1 // loop_header
      %s30 = sphi 0, %s34
      %p31 = scmp.ge.s32.totalorder %s30, 5
      %s40 = sphi 0, %s42
      %s43 = sphi 0, %s40
      %s44 = sphi 0, %s43
      %s60 = sphi 0, %s44
      %s64 = sphi 0, %s64
      %s66 = sphi 0, %s64
      %s67 = sphi 0, %s66
      %s81 = sphi 0, %s67
      %s85 = sphi 0, %s85
      %s87 = sphi 0, %s85
      %s88 = sphi 0, %s87
      %s102 = sphi 0, %s88
      %s106 = sphi 0, %s106
      %s108 = sphi 0, %s106
      %s109 = sphi 0, %s108
      %s123 = sphi 0, %s109
      %s127 = sphi 0, %s127
      %s129 = sphi 0, %s127
      %s130 = sphi 0, %s129
      %s144 = sphi 0, %s130
      %s148 = sphi 0, %s148
      %s150 = sphi 0, %s148
      %s151 = sphi 0, %s150
      %s165 = sphi 0, %s151
      %s169 = sphi 0, %s169
      %s171 = sphi 0, %s169
      %s172 = sphi 0, %s171
      %s186 = sphi 0, %s172
      %s190 = sphi 0, %s190
      %s192 = sphi 0, %s190
      %s193 = sphi 0, %s192
      %s207 = sphi 0, %s193
      %s211 = sphi 0, %s211
      %s213 = sphi 0, %s211
      %s214 = sphi 0, %s213
      %s228 = sphi 0, %s214
      %s232 = sphi 0, %s232
      %s234 = sphi 0, %s232
      %s235 = sphi 0, %s234
      %s249 = sphi 0, %s235
      %s253 = sphi 0, %s253
      %s255 = sphi 0, %s253
      %s256 = sphi 0, %s255
      %s270 = sphi 0, %s256
      %s274 = sphi 0, %s274
      %s276 = sphi 0, %s274
      %s277 = sphi 0, %s276
      %s291 = sphi 0, %s277
      %s295 = sphi 0, %s295
      %s297 = sphi 0, %s295
      %s298 = sphi 0, %s297
      %s312 = sphi 0, %s298
      %s316 = sphi 0, %s316
      %s318 = sphi 0, %s316
      %s319 = sphi 0, %s318
      %s333 = sphi 0, %s319
      %s339 = sphi 0, %s341
      %s342 = sphi 0, %s339
      %s343 = sphi 0, %s342
      %s359 = sphi 0, %s343
    $region4: #{tpu_custom_call.1} parent=1 // loop_header_branch
      %33 = sbr.rel (%p31) target = $region8
    $region5: #{tpu_custom_call.1} parent=1 // loop_body
      %s35 = ssub.s32 %s30, 1
      %s36 = ssub.s32 %s30, 2
      %s37 = sadd.s32 %s30, 1
      %s38 = ssub.s32 %s30, %s37
      %p39 = scmp.eq.s32.totalorder %s38, 0
      %s41 = sadd.s32 %s40, 1
      %s42 = scalar_select %p39, %s40, %s41
      %p45 = pneg %p39
      %p46 = scmp.eq.s32.totalorder %s30, 2
      %p47 = por %p45, %p46
      %p48 = scmp.ne.s32.totalorder %s40, %s43
      %p49 = scmp.eq.s32.totalorder %s30, 0
      %p50 = por %p48, %p49
      %p51 = scmp.ne.s32.totalorder %s40, %s43
      %p52 = scmp.eq.s32.totalorder %s35, 2
      %p53 = por %p51, %p52
      %p54 = scmp.ne.s32.totalorder %s43, %s44
      %p55 = scmp.eq.s32.totalorder %s35, 0
      %p56 = por %p54, %p55
      %p57 = scmp.ne.s32.totalorder %s43, %s44
      %p58 = scmp.eq.s32.totalorder %s36, 2
      %p59 = por %p57, %p58
      %p61 = scmp.ne.s32.totalorder %s44, %s60
      %p62 = scmp.eq.s32.totalorder %s36, 0
      %p63 = por %p61, %p62
      %s65 = sadd.s32 %s64, 1
      %p68 = scmp.eq.s32.totalorder %s30, 2
      %p69 = scmp.ne.s32.totalorder %s64, %s66
      %p70 = scmp.eq.s32.totalorder %s30, 0
      %p71 = por %p69, %p70
      %p72 = scmp.ne.s32.totalorder %s64, %s66
      %p73 = scmp.eq.s32.totalorder %s35, 2
      %p74 = por %p72, %p73
      %p75 = scmp.ne.s32.totalorder %s66, %s67
      %p76 = scmp.eq.s32.totalorder %s35, 0
      %p77 = por %p75, %p76
      %p78 = scmp.ne.s32.totalorder %s66, %s67
      %p79 = scmp.eq.s32.totalorder %s36, 2
      %p80 = por %p78, %p79
      %p82 = scmp.ne.s32.totalorder %s67, %s81
      %p83 = scmp.eq.s32.totalorder %s36, 0
      %p84 = por %p82, %p83
      %s86 = sadd.s32 %s85, 1
      %p89 = scmp.eq.s32.totalorder %s30, 2
      %p90 = scmp.ne.s32.totalorder %s85, %s87
      %p91 = scmp.eq.s32.totalorder %s30, 0
      %p92 = por %p90, %p91
      %p93 = scmp.ne.s32.totalorder %s85, %s87
      %p94 = scmp.eq.s32.totalorder %s35, 2
      %p95 = por %p93, %p94
      %p96 = scmp.ne.s32.totalorder %s87, %s88
      %p97 = scmp.eq.s32.totalorder %s35, 0
      %p98 = por %p96, %p97
      %p99 = scmp.ne.s32.totalorder %s87, %s88
      %p100 = scmp.eq.s32.totalorder %s36, 2
      %p101 = por %p99, %p100
      %p103 = scmp.ne.s32.totalorder %s88, %s102
      %p104 = scmp.eq.s32.totalorder %s36, 0
      %p105 = por %p103, %p104
      %s107 = sadd.s32 %s106, 1
      %p110 = scmp.eq.s32.totalorder %s30, 2
      %p111 = scmp.ne.s32.totalorder %s106, %s108
      %p112 = scmp.eq.s32.totalorder %s30, 0
      %p113 = por %p111, %p112
      %p114 = scmp.ne.s32.totalorder %s106, %s108
      %p115 = scmp.eq.s32.totalorder %s35, 2
      %p116 = por %p114, %p115
      %p117 = scmp.ne.s32.totalorder %s108, %s109
      %p118 = scmp.eq.s32.totalorder %s35, 0
      %p119 = por %p117, %p118
      %p120 = scmp.ne.s32.totalorder %s108, %s109
      %p121 = scmp.eq.s32.totalorder %s36, 2
      %p122 = por %p120, %p121
      %p124 = scmp.ne.s32.totalorder %s109, %s123
      %p125 = scmp.eq.s32.totalorder %s36, 0
      %p126 = por %p124, %p125
      %s128 = sadd.s32 %s127, 1
      %p131 = scmp.eq.s32.totalorder %s30, 2
      %p132 = scmp.ne.s32.totalorder %s127, %s129
      %p133 = scmp.eq.s32.totalorder %s30, 0
      %p134 = por %p132, %p133
      %p135 = scmp.ne.s32.totalorder %s127, %s129
      %p136 = scmp.eq.s32.totalorder %s35, 2
      %p137 = por %p135, %p136
      %p138 = scmp.ne.s32.totalorder %s129, %s130
      %p139 = scmp.eq.s32.totalorder %s35, 0
      %p140 = por %p138, %p139
      %p141 = scmp.ne.s32.totalorder %s129, %s130
      %p142 = scmp.eq.s32.totalorder %s36, 2
      %p143 = por %p141, %p142
      %p145 = scmp.ne.s32.totalorder %s130, %s144
      %p146 = scmp.eq.s32.totalorder %s36, 0
      %p147 = por %p145, %p146
      %s149 = sadd.s32 %s148, 1
      %p152 = scmp.eq.s32.totalorder %s30, 2
      %p153 = scmp.ne.s32.totalorder %s148, %s150
      %p154 = scmp.eq.s32.totalorder %s30, 0
      %p155 = por %p153, %p154
      %p156 = scmp.ne.s32.totalorder %s148, %s150
      %p157 = scmp.eq.s32.totalorder %s35, 2
      %p158 = por %p156, %p157
      %p159 = scmp.ne.s32.totalorder %s150, %s151
      %p160 = scmp.eq.s32.totalorder %s35, 0
      %p161 = por %p159, %p160
      %p162 = scmp.ne.s32.totalorder %s150, %s151
      %p163 = scmp.eq.s32.totalorder %s36, 2
      %p164 = por %p162, %p163
      %p166 = scmp.ne.s32.totalorder %s151, %s165
      %p167 = scmp.eq.s32.totalorder %s36, 0
      %p168 = por %p166, %p167
      %s170 = sadd.s32 %s169, 1
      %p173 = scmp.eq.s32.totalorder %s30, 2
      %p174 = scmp.ne.s32.totalorder %s169, %s171
      %p175 = scmp.eq.s32.totalorder %s30, 0
      %p176 = por %p174, %p175
      %p177 = scmp.ne.s32.totalorder %s169, %s171
      %p178 = scmp.eq.s32.totalorder %s35, 2
      %p179 = por %p177, %p178
      %p180 = scmp.ne.s32.totalorder %s171, %s172
      %p181 = scmp.eq.s32.totalorder %s35, 0
      %p182 = por %p180, %p181
      %p183 = scmp.ne.s32.totalorder %s171, %s172
      %p184 = scmp.eq.s32.totalorder %s36, 2
      %p185 = por %p183, %p184
      %p187 = scmp.ne.s32.totalorder %s172, %s186
      %p188 = scmp.eq.s32.totalorder %s36, 0
      %p189 = por %p187, %p188
      %s191 = sadd.s32 %s190, 1
      %p194 = scmp.eq.s32.totalorder %s30, 2
      %p195 = scmp.ne.s32.totalorder %s190, %s192
      %p196 = scmp.eq.s32.totalorder %s30, 0
      %p197 = por %p195, %p196
      %p198 = scmp.ne.s32.totalorder %s190, %s192
      %p199 = scmp.eq.s32.totalorder %s35, 2
      %p200 = por %p198, %p199
      %p201 = scmp.ne.s32.totalorder %s192, %s193
      %p202 = scmp.eq.s32.totalorder %s35, 0
      %p203 = por %p201, %p202
      %p204 = scmp.ne.s32.totalorder %s192, %s193
      %p205 = scmp.eq.s32.totalorder %s36, 2
      %p206 = por %p204, %p205
      %p208 = scmp.ne.s32.totalorder %s193, %s207
      %p209 = scmp.eq.s32.totalorder %s36, 0
      %p210 = por %p208, %p209
      %s212 = sadd.s32 %s211, 1
      %p215 = scmp.eq.s32.totalorder %s30, 2
      %p216 = scmp.ne.s32.totalorder %s211, %s213
      %p217 = scmp.eq.s32.totalorder %s30, 0
      %p218 = por %p216, %p217
      %p219 = scmp.ne.s32.totalorder %s211, %s213
      %p220 = scmp.eq.s32.totalorder %s35, 2
      %p221 = por %p219, %p220
      %p222 = scmp.ne.s32.totalorder %s213, %s214
      %p223 = scmp.eq.s32.totalorder %s35, 0
      %p224 = por %p222, %p223
      %p225 = scmp.ne.s32.totalorder %s213, %s214
      %p226 = scmp.eq.s32.totalorder %s36, 2
      %p227 = por %p225, %p226
      %p229 = scmp.ne.s32.totalorder %s214, %s228
      %p230 = scmp.eq.s32.totalorder %s36, 0
      %p231 = por %p229, %p230
      %s233 = sadd.s32 %s232, 1
      %p236 = scmp.eq.s32.totalorder %s30, 2
      %p237 = scmp.ne.s32.totalorder %s232, %s234
      %p238 = scmp.eq.s32.totalorder %s30, 0
      %p239 = por %p237, %p238
      %p240 = scmp.ne.s32.totalorder %s232, %s234
      %p241 = scmp.eq.s32.totalorder %s35, 2
      %p242 = por %p240, %p241
      %p243 = scmp.ne.s32.totalorder %s234, %s235
      %p244 = scmp.eq.s32.totalorder %s35, 0
      %p245 = por %p243, %p244
      %p246 = scmp.ne.s32.totalorder %s234, %s235
      %p247 = scmp.eq.s32.totalorder %s36, 2
      %p248 = por %p246, %p247
      %p250 = scmp.ne.s32.totalorder %s235, %s249
      %p251 = scmp.eq.s32.totalorder %s36, 0
      %p252 = por %p250, %p251
      %s254 = sadd.s32 %s253, 1
      %p257 = scmp.eq.s32.totalorder %s30, 2
      %p258 = scmp.ne.s32.totalorder %s253, %s255
      %p259 = scmp.eq.s32.totalorder %s30, 0
      %p260 = por %p258, %p259
      %p261 = scmp.ne.s32.totalorder %s253, %s255
      %p262 = scmp.eq.s32.totalorder %s35, 2
      %p263 = por %p261, %p262
      %p264 = scmp.ne.s32.totalorder %s255, %s256
      %p265 = scmp.eq.s32.totalorder %s35, 0
      %p266 = por %p264, %p265
      %p267 = scmp.ne.s32.totalorder %s255, %s256
      %p268 = scmp.eq.s32.totalorder %s36, 2
      %p269 = por %p267, %p268
      %p271 = scmp.ne.s32.totalorder %s256, %s270
      %p272 = scmp.eq.s32.totalorder %s36, 0
      %p273 = por %p271, %p272
      %s275 = sadd.s32 %s274, 1
      %p278 = scmp.eq.s32.totalorder %s30, 2
      %p279 = scmp.ne.s32.totalorder %s274, %s276
      %p280 = scmp.eq.s32.totalorder %s30, 0
      %p281 = por %p279, %p280
      %p282 = scmp.ne.s32.totalorder %s274, %s276
      %p283 = scmp.eq.s32.totalorder %s35, 2
      %p284 = por %p282, %p283
      %p285 = scmp.ne.s32.totalorder %s276, %s277
      %p286 = scmp.eq.s32.totalorder %s35, 0
      %p287 = por %p285, %p286
      %p288 = scmp.ne.s32.totalorder %s276, %s277
      %p289 = scmp.eq.s32.totalorder %s36, 2
      %p290 = por %p288, %p289
      %p292 = scmp.ne.s32.totalorder %s277, %s291
      %p293 = scmp.eq.s32.totalorder %s36, 0
      %p294 = por %p292, %p293
      %s296 = sadd.s32 %s295, 1
      %p299 = scmp.eq.s32.totalorder %s30, 2
      %p300 = scmp.ne.s32.totalorder %s295, %s297
      %p301 = scmp.eq.s32.totalorder %s30, 0
      %p302 = por %p300, %p301
      %p303 = scmp.ne.s32.totalorder %s295, %s297
      %p304 = scmp.eq.s32.totalorder %s35, 2
      %p305 = por %p303, %p304
      %p306 = scmp.ne.s32.totalorder %s297, %s298
      %p307 = scmp.eq.s32.totalorder %s35, 0
      %p308 = por %p306, %p307
      %p309 = scmp.ne.s32.totalorder %s297, %s298
      %p310 = scmp.eq.s32.totalorder %s36, 2
      %p311 = por %p309, %p310
      %p313 = scmp.ne.s32.totalorder %s298, %s312
      %p314 = scmp.eq.s32.totalorder %s36, 0
      %p315 = por %p313, %p314
      %s317 = sadd.s32 %s316, 1
      %p320 = scmp.eq.s32.totalorder %s30, 2
      %p321 = scmp.ne.s32.totalorder %s316, %s318
      %p322 = scmp.eq.s32.totalorder %s30, 0
      %p323 = por %p321, %p322
      %p324 = scmp.ne.s32.totalorder %s316, %s318
      %p325 = scmp.eq.s32.totalorder %s35, 2
      %p326 = por %p324, %p325
      %p327 = scmp.ne.s32.totalorder %s318, %s319
      %p328 = scmp.eq.s32.totalorder %s35, 0
      %p329 = por %p327, %p328
      %p330 = scmp.ne.s32.totalorder %s318, %s319
      %p331 = scmp.eq.s32.totalorder %s36, 2
      %p332 = por %p330, %p331
      %p334 = scmp.ne.s32.totalorder %s319, %s333
      %p335 = scmp.eq.s32.totalorder %s36, 0
      %p336 = por %p334, %p335
      %s337 = ssub.s32 %s30, %s37
      %p338 = scmp.eq.s32.totalorder %s337, 0
      %s340 = sadd.s32 %s339, 1
      %s341 = scalar_select %p338, %s339, %s340
      %p344 = pneg %p338
      %p345 = scmp.eq.s32.totalorder %s30, 2
      %p346 = por %p344, %p345
      %p347 = scmp.ne.s32.totalorder %s339, %s342
      %p348 = scmp.eq.s32.totalorder %s30, 0
      %p349 = por %p347, %p348
      %p350 = scmp.ne.s32.totalorder %s339, %s342
      %p351 = scmp.eq.s32.totalorder %s35, 2
      %p352 = por %p350, %p351
      %p353 = scmp.ne.s32.totalorder %s342, %s343
      %p354 = scmp.eq.s32.totalorder %s35, 0
      %p355 = por %p353, %p354
      %p356 = scmp.ne.s32.totalorder %s342, %s343
      %p357 = scmp.eq.s32.totalorder %s36, 2
      %p358 = por %p356, %p357
      %p360 = scmp.ne.s32.totalorder %s343, %s359
      %p361 = scmp.eq.s32.totalorder %s36, 0
      %p362 = por %p360, %p361
      %p363 = scmp.le.s32.totalorder 1, %s30
      %p364 = scmp.lt.s32.totalorder %s30, 4
      %p365 = pnand %p363, %p364
      %p366 = pneg %p365
      // Predicated region
      $region9: #{tpu_custom_call.1} parent=5 // pred_check
        _
      $region10: #{tpu_custom_call.1} parent=5 // pred_check_branch
        %368 = sbr.rel (%p365) target = $region12
      $region11: #{tpu_custom_call.1} parent=5 // pred_region
        %s369 = ssub.s32 %s30, 1
        // Predicated region
        $region13: #{tpu_custom_call.1} parent=11 // pred_check
          %p370 = pneg %p77
        $region14: #{tpu_custom_call.1} parent=11 // pred_check_branch
          %372 = sbr.rel (%p370) target = $region16
        $region15: #{tpu_custom_call.1} parent=11 // pred_region
          %374 = vsyncadd [#allocation6], 0
          %s376 = sshll.u32 %s1, 4
          %s377 = int_to_ptr.hbm [resolvable:$true] %s376
          %s378 = sshll.u32 [#allocation5], 4
          %s379 = int_to_ptr.vmem [resolvable:$true] %s378
          %381 = dma.hbm_to_vmem [thread:$0]  %s377, 16, %s379, [#allocation6]
        $region16: #{tpu_custom_call.1} parent=11 // pred_fallthru
          _
        // Predicated region
        $region17: #{tpu_custom_call.1} parent=11 // pred_check
          %p382 = pneg %p98
        $region18: #{tpu_custom_call.1} parent=11 // pred_check_branch
          %384 = sbr.rel (%p382) target = $region20
        $region19: #{tpu_custom_call.1} parent=11 // pred_region
          _
        $region20: #{tpu_custom_call.1} parent=11 // pred_fallthru
          _
        // Predicated region
        $region21: #{tpu_custom_call.1} parent=11 // pred_check
          %p385 = pneg %p119
        $region22: #{tpu_custom_call.1} parent=11 // pred_check_branch
          %387 = sbr.rel (%p385) target = $region24
        $region23: #{tpu_custom_call.1} parent=11 // pred_region
          %389 = vsyncadd [#allocation6], 0
          %s390 = sshll.u32 %s3, 4
          %s391 = int_to_ptr.hbm [resolvable:$true] %s390
          %s392 = sshll.u32 [#allocation7], 4
          %s393 = int_to_ptr.vmem [resolvable:$true] %s392
          %398 = dma.hbm_to_vmem [thread:$0]  %s391, 896, %s393, [#allocation6], 64, 64, 4
        $region24: #{tpu_custom_call.1} parent=11 // pred_fallthru
          _
        // Predicated region
        $region25: #{tpu_custom_call.1} parent=11 // pred_check
          %p399 = pneg %p140
        $region26: #{tpu_custom_call.1} parent=11 // pred_check_branch
          %401 = sbr.rel (%p399) target = $region28
        $region27: #{tpu_custom_call.1} parent=11 // pred_region
          %403 = vsyncadd [#allocation9], 0
          %s404 = sshll.u32 %s4, 4
          %s405 = int_to_ptr.hbm [resolvable:$true] %s404
          %s406 = sshll.u32 [#allocation8], 4
          %s407 = int_to_ptr.vmem [resolvable:$true] %s406
          %412 = dma.hbm_to_vmem [thread:$0]  %s405, 896, %s407, [#allocation9], 64, 64, 4
        $region28: #{tpu_custom_call.1} parent=11 // pred_fallthru
          _
        // Predicated region
        $region29: #{tpu_custom_call.1} parent=11 // pred_check
          %p413 = pneg %p161
        $region30: #{tpu_custom_call.1} parent=11 // pred_check_branch
          %415 = sbr.rel (%p413) target = $region32
        $region31: #{tpu_custom_call.1} parent=11 // pred_region
          %417 = vsyncadd [#allocation9], 0
          %s418 = sshll.u32 %s5, 4
          %s419 = int_to_ptr.hbm [resolvable:$true] %s418
          %s420 = sshll.u32 [#allocation10], 4
          %s421 = int_to_ptr.vmem [resolvable:$true] %s420
          %426 = dma.hbm_to_vmem [thread:$0]  %s419, 896, %s421, [#allocation9], 64, 64, 4
        $region32: #{tpu_custom_call.1} parent=11 // pred_fallthru
          _
        // Predicated region
        $region33: #{tpu_custom_call.1} parent=11 // pred_check
          %p427 = pneg %p182
        $region34: #{tpu_custom_call.1} parent=11 // pred_check_branch
          %429 = sbr.rel (%p427) target = $region36
        $region35: #{tpu_custom_call.1} parent=11 // pred_region
          %431 = vsyncadd [#allocation12], 0
          %s432 = sshll.u32 %s6, 4
          %s433 = int_to_ptr.hbm [resolvable:$true] %s432
          %s434 = sshll.u32 [#allocation11], 4
          %s435 = int_to_ptr.vmem [resolvable:$true] %s434
          %440 = dma.hbm_to_vmem [thread:$0]  %s433, 896, %s435, [#allocation12], 64, 64, 4
        $region36: #{tpu_custom_call.1} parent=11 // pred_fallthru
          _
        // Predicated region
        $region37: #{tpu_custom_call.1} parent=11 // pred_check
          %p441 = pneg %p203
        $region38: #{tpu_custom_call.1} parent=11 // pred_check_branch
          %443 = sbr.rel (%p441) target = $region40
        $region39: #{tpu_custom_call.1} parent=11 // pred_region
          _
        $region40: #{tpu_custom_call.1} parent=11 // pred_fallthru
          _
        // Predicated region
        $region41: #{tpu_custom_call.1} parent=11 // pred_check
          %p444 = pneg %p224
        $region42: #{tpu_custom_call.1} parent=11 // pred_check_branch
          %446 = sbr.rel (%p444) target = $region44
        $region43: #{tpu_custom_call.1} parent=11 // pred_region
          _
        $region44: #{tpu_custom_call.1} parent=11 // pred_fallthru
          _
        // Predicated region
        $region45: #{tpu_custom_call.1} parent=11 // pred_check
          %p447 = pneg %p245
        $region46: #{tpu_custom_call.1} parent=11 // pred_check_branch
          %449 = sbr.rel (%p447) target = $region48
        $region47: #{tpu_custom_call.1} parent=11 // pred_region
          _
        $region48: #{tpu_custom_call.1} parent=11 // pred_fallthru
          _
        // Predicated region
        $region49: #{tpu_custom_call.1} parent=11 // pred_check
          %p450 = pneg %p266
        $region50: #{tpu_custom_call.1} parent=11 // pred_check_branch
          %452 = sbr.rel (%p450) target = $region52
        $region51: #{tpu_custom_call.1} parent=11 // pred_region
          %454 = vsyncadd [#allocation12], 0
          %s455 = sshll.u32 %s10, 4
          %s456 = int_to_ptr.hbm [resolvable:$true] %s455
          %s457 = sshll.u32 [#allocation13], 4
          %s458 = int_to_ptr.vmem [resolvable:$true] %s457
          %463 = dma.hbm_to_vmem [thread:$0]  %s456, 3584, %s458, [#allocation12], 256, 256, 16
        $region52: #{tpu_custom_call.1} parent=11 // pred_fallthru
          _
        // Predicated region
        $region53: #{tpu_custom_call.1} parent=11 // pred_check
          %p464 = pneg %p287
        $region54: #{tpu_custom_call.1} parent=11 // pred_check_branch
          %466 = sbr.rel (%p464) target = $region56
        $region55: #{tpu_custom_call.1} parent=11 // pred_region
          _
        $region56: #{tpu_custom_call.1} parent=11 // pred_fallthru
          _
        // Predicated region
        $region57: #{tpu_custom_call.1} parent=11 // pred_check
          %p467 = pneg %p308
        $region58: #{tpu_custom_call.1} parent=11 // pred_check_branch
          %469 = sbr.rel (%p467) target = $region60
        $region59: #{tpu_custom_call.1} parent=11 // pred_region
          %471 = vsyncadd [#allocation15], 0
          %s472 = sshll.u32 %s12, 4
          %s473 = int_to_ptr.hbm [resolvable:$true] %s472
          %s474 = sshll.u32 [#allocation14], 4
          %s475 = int_to_ptr.vmem [resolvable:$true] %s474
          %480 = dma.hbm_to_vmem [thread:$0]  %s473, 3584, %s475, [#allocation15], 64, 64, 4
        $region60: #{tpu_custom_call.1} parent=11 // pred_fallthru
          _
        // Predicated region
        $region61: #{tpu_custom_call.1} parent=11 // pred_check
          %p481 = pneg %p329
        $region62: #{tpu_custom_call.1} parent=11 // pred_check_branch
          %483 = sbr.rel (%p481) target = $region64
        $region63: #{tpu_custom_call.1} parent=11 // pred_region
          _
        $region64: #{tpu_custom_call.1} parent=11 // pred_fallthru
          _
      $region12: #{tpu_custom_call.1} parent=5 // pred_fallthru
        _
      %p484 = scmp.lt.s32.totalorder %s30, 3
      // Predicated region
      $region65: #{tpu_custom_call.1} parent=5 // pred_check
        %p485 = pneg %p484
      $region66: #{tpu_custom_call.1} parent=5 // pred_check_branch
        %487 = sbr.rel (%p485) target = $region68
      $region67: #{tpu_custom_call.1} parent=5 // pred_region
        // Predicated region
        $region69: #{tpu_custom_call.1} parent=67 // pred_check
          %p488 = pneg %p50
        $region70: #{tpu_custom_call.1} parent=67 // pred_check_branch
          %490 = sbr.rel (%p488) target = $region72
        $region71: #{tpu_custom_call.1} parent=67 // pred_region
          %s491 = sand.u32 %s40, 1
          %s492 = scalar_lea.sflag [#allocation3], %s491
          %s493 = sand.u32 %s40, 1
          %s494 = smul.addr %s493, 16
          %s495 = scalar_lea.vmem [#allocation2], %s494
          %s496 = smul.u32 2, %s30
          %498 = vsyncadd %s492, 0
          %s499 = smul.addr %s496, 8
          %s500 = scalar_lea.hbm %s0, %s499
          %s501 = sshll.u32 %s500, 4
          %s502 = int_to_ptr.hbm [resolvable:$true] %s501
          %s503 = sshll.u32 %s495, 4
          %s504 = int_to_ptr.vmem [resolvable:$true] %s503
          %509 = dma.hbm_to_vmem [thread:$0]  %s502, 256, %s504, %s492, 128, 128, 8
        $region72: #{tpu_custom_call.1} parent=67 // pred_fallthru
          _
      $region68: #{tpu_custom_call.1} parent=5 // pred_fallthru
        _
      %p510 = scmp.le.s32.totalorder 1, %s30
      %p511 = scmp.lt.s32.totalorder %s30, 4
      %p512 = pnand %p510, %p511
      %p513 = pneg %p512
      // Predicated region
      $region73: #{tpu_custom_call.1} parent=5 // pred_check
        _
      $region74: #{tpu_custom_call.1} parent=5 // pred_check_branch
        %515 = sbr.rel (%p512) target = $region76
      $region75: #{tpu_custom_call.1} parent=5 // pred_region
        %s516 = ssub.s32 %s30, 1
        %s517 = sand.u32 %s43, 1
        %s518 = scalar_lea.sflag [#allocation3], %s517
        %s519 = sand.u32 %s43, 1
        %s520 = smul.addr %s519, 16
        %s521 = scalar_lea.vmem [#allocation2], %s520
        // Predicated region
        $region77: #{tpu_custom_call.1} parent=75 // pred_check
          %p522 = pneg %p56
        $region78: #{tpu_custom_call.1} parent=75 // pred_check_branch
          %524 = sbr.rel (%p522) target = $region80
        $region79: #{tpu_custom_call.1} parent=75 // pred_region
          %526 = dma.done %s518, 256
        $region80: #{tpu_custom_call.1} parent=75 // pred_fallthru
          _
        // Predicated region
        $region81: #{tpu_custom_call.1} parent=75 // pred_check
          %p527 = pneg %p77
        $region82: #{tpu_custom_call.1} parent=75 // pred_check_branch
          %529 = sbr.rel (%p527) target = $region84
        $region83: #{tpu_custom_call.1} parent=75 // pred_region
          %531 = dma.done [#allocation6], 16
        $region84: #{tpu_custom_call.1} parent=75 // pred_fallthru
          _
        // Predicated region
        $region85: #{tpu_custom_call.1} parent=75 // pred_check
          %p532 = pneg %p119
        $region86: #{tpu_custom_call.1} parent=75 // pred_check_branch
          %534 = sbr.rel (%p532) target = $region88
        $region87: #{tpu_custom_call.1} parent=75 // pred_region
          %536 = dma.done [#allocation6], 896
        $region88: #{tpu_custom_call.1} parent=75 // pred_fallthru
          _
        // Predicated region
        $region89: #{tpu_custom_call.1} parent=75 // pred_check
          %p537 = pneg %p140
        $region90: #{tpu_custom_call.1} parent=75 // pred_check_branch
          %539 = sbr.rel (%p537) target = $region92
        $region91: #{tpu_custom_call.1} parent=75 // pred_region
          %541 = dma.done [#allocation9], 896
        $region92: #{tpu_custom_call.1} parent=75 // pred_fallthru
          _
        // Predicated region
        $region93: #{tpu_custom_call.1} parent=75 // pred_check
          %p542 = pneg %p161
        $region94: #{tpu_custom_call.1} parent=75 // pred_check_branch
          %544 = sbr.rel (%p542) target = $region96
        $region95: #{tpu_custom_call.1} parent=75 // pred_region
          %546 = dma.done [#allocation9], 896
        $region96: #{tpu_custom_call.1} parent=75 // pred_fallthru
          _
        // Predicated region
        $region97: #{tpu_custom_call.1} parent=75 // pred_check
          %p547 = pneg %p182
        $region98: #{tpu_custom_call.1} parent=75 // pred_check_branch
          %549 = sbr.rel (%p547) target = $region100
        $region99: #{tpu_custom_call.1} parent=75 // pred_region
          %551 = dma.done [#allocation12], 896
        $region100: #{tpu_custom_call.1} parent=75 // pred_fallthru
          _
        // Predicated region
        $region101: #{tpu_custom_call.1} parent=75 // pred_check
          %p552 = pneg %p266
        $region102: #{tpu_custom_call.1} parent=75 // pred_check_branch
          %554 = sbr.rel (%p552) target = $region104
        $region103: #{tpu_custom_call.1} parent=75 // pred_region
          %556 = dma.done [#allocation12], 3584
        $region104: #{tpu_custom_call.1} parent=75 // pred_fallthru
          _
        // Predicated region
        $region105: #{tpu_custom_call.1} parent=75 // pred_check
          %p557 = pneg %p308
        $region106: #{tpu_custom_call.1} parent=75 // pred_check_branch
          %559 = sbr.rel (%p557) target = $region108
        $region107: #{tpu_custom_call.1} parent=75 // pred_region
          %561 = dma.done [#allocation15], 3584
        $region108: #{tpu_custom_call.1} parent=75 // pred_fallthru
          _
        %s562 = sand.u32 %s43, 1
        %s563 = scalar_lea.sflag [#allocation3], %s562
        %s564 = sand.u32 %s43, 1
        %s565 = smul.addr %s564, 16
        %s566 = scalar_lea.vmem [#allocation2], %s565
        %p567 = pneg %p56
        %p568 = pneg %p53
        %p569 = pneg %p77
        %p570 = pneg %p74
        %p571 = pneg %p98
        %p572 = pneg %p95
        %p573 = pneg %p119
        %p574 = pneg %p116
        %p575 = pneg %p140
        %p576 = pneg %p137
        %p577 = pneg %p161
        %p578 = pneg %p158
        %p579 = pneg %p182
        %p580 = pneg %p179
        %p581 = pneg %p203
        %p582 = pneg %p200
        %p583 = pneg %p224
        %p584 = pneg %p221
        %p585 = pneg %p245
        %p586 = pneg %p242
        %p587 = pneg %p266
        %p588 = pneg %p263
        %p589 = pneg %p287
        %p590 = pneg %p284
        %p591 = pneg %p308
        %p592 = pneg %p305
        %p593 = pneg %p329
        %p594 = pneg %p326
        %p595 = pneg %p355
        %p596 = pneg %p352
        %s597 = sand.u32 %s342, 1
        %s598 = scalar_lea.sflag [#allocation4], %s597
        %s599 = sand.u32 %s342, 1
        %s600 = smul.addr %s599, 16
        %s601 = scalar_lea.vmem [#allocation16], %s600
        %s602 = smul.u32 2, %s35
        %s603 = smul.u32 2, %s35
        %v605 = vld [vmem:[%s521] sm:$0xff]
        %v606 = vld [vmem:[%s521 + $0x8] sm:$0xff]
        %v607 = vld [vmem:[#allocation5] sm:$0x1]
        %v608 = vld [vmem:[%s2] sm:$0x1]
        %vm609 = vcmask 916480
        %v610 = vsel %vm609, %v605, 0.0
        %611 = vadd.xlane.f32.xlu0 %v610
        %v612 = vpop.xlane.xlu0 %611
        %v613 = vsel %vm609, %v606, 0.0
        %614 = vadd.xlane.f32.xlu0 %v613
        %v615 = vpop.xlane.xlu0 %614
        %v616 = vrcp.pop 112.0
        %v617 = vmul.f32 112.0, %v616
        %v618 = vsub.f32 1.0, %v617
        %v619 = vmul.f32 %v616, %v618
        %v620 = vadd.f32 %v616, %v619
        %vm621 = vweird.f32 %v616
        %v622 = vsel %vm621, %v616, %v620
        %v623 = vmul.f32 %v612, %v622
        %v624 = vmul.f32 %v615, %v622
        %v625 = vsub.f32 %v605, %v623
        %v626 = vsub.f32 %v606, %v624
        %v627 = vmul.f32 %v625, %v625
        %v628 = vmul.f32 %v626, %v626
        %v629 = vsel %vm609, %v627, 0.0
        %630 = vadd.xlane.f32.xlu0 %v629
        %v631 = vpop.xlane.xlu0 %630
        %v632 = vsel %vm609, %v628, 0.0
        %633 = vadd.xlane.f32.xlu0 %v632
        %v634 = vpop.xlane.xlu0 %633
        %v635 = vmul.f32 %v631, %v622
        %v636 = vmul.f32 %v634, %v622
        %v637 = vadd.f32 %v635, 1e-05
        %v638 = vadd.f32 %v636, 1e-05
        %v639 = vrsqrt.pop %v637
        %v640 = vmul.f32 %v639, %v637
        %v641 = vmul.f32 %v640, %v639
        %v642 = vmul.f32 0.5, %v641
        %v643 = vsub.f32 1.5, %v642
        %v644 = vmul.f32 %v639, %v643
        %vm645 = vweird.f32 %v637
        %vm646 = vweird.f32 %v639
        %vm647 = vmor %vm645, %vm646
        %v648 = vsel %vm647, %v639, %v644
        %v649 = vrsqrt.pop %v638
        %v650 = vmul.f32 %v649, %v638
        %v651 = vmul.f32 %v650, %v649
        %v652 = vmul.f32 0.5, %v651
        %v653 = vsub.f32 1.5, %v652
        %v654 = vmul.f32 %v649, %v653
        %vm655 = vweird.f32 %v638
        %vm656 = vweird.f32 %v649
        %vm657 = vmor %vm655, %vm656
        %v658 = vsel %vm657, %v649, %v654
        %v659 = vmul.f32 %v625, %v648
        %v660 = vmul.f32 %v626, %v658
        %v662 = vperm.slane %v607, 0
        %v664 = vmul.f32 %v659, %v662
        %v665 = vmul.f32 %v660, %v662
        %v667 = vperm.slane %v608, 0
        %v669 = vadd.f32 %v664, %v667
        %v670 = vadd.f32 %v665, %v667
        %v671 = vpack.c.bf16 %v669, %v669
        %v672 = vpack.c.bf16 %v670, %v670
        %v673 = vld [vmem:[#allocation7] sm:$0xf]
        %v674 = vld [vmem:[#allocation7 + $0x4] sm:$0xf]
        %v675 = vld [vmem:[#allocation7 + $0x8] sm:$0xf]
        %v676 = vld [vmem:[#allocation7 + $0xc] sm:$0xf]
        %v677 = vld [vmem:[#allocation7 + $0x10] sm:$0xf]
        %v678 = vld [vmem:[#allocation7 + $0x14] sm:$0xf]
        %v679 = vld [vmem:[#allocation7 + $0x18] sm:$0xf]
        %v680 = vld [vmem:[#allocation7 + $0x1c] sm:$0xf]
        %v681 = vld [vmem:[#allocation7 + $0x20] sm:$0xf]
        %v682 = vld [vmem:[#allocation7 + $0x24] sm:$0xf]
        %v683 = vld [vmem:[#allocation7 + $0x28] sm:$0xf]
        %v684 = vld [vmem:[#allocation7 + $0x2c] sm:$0xf]
        %v685 = vld [vmem:[#allocation7 + $0x30] sm:$0xf]
        %v686 = vld [vmem:[#allocation7 + $0x34] sm:$0xf]
        %v689 = vunpack.c.l.b16 %v671
        %v690 = vunpack.c.l.b16 %v672
        %v691 = vpack.c.b16 %v690, %v689
        %v693 = vsel %vm609, %v691, 0
        %v696 = vsel %vm609, %v673, 0
        %698 = vmatpush.bf16.xpose.msra.mxu0 0
        %699 = vmatpush.bf16.xpose.msra.mxu0 0
        %700 = vmatpush.bf16.xpose.msra.mxu0 0
        %701 = vmatpush.bf16.xpose.msra.mxu0 0
        %702 = vmatpush.bf16.xpose.msra.mxu0 0
        %703 = vmatpush.bf16.xpose.msra.mxu0 0
        %704 = vmatpush.bf16.xpose.msra.mxu0 0
        %705 = vmatpush.bf16.xpose.msra.mxu0 %v696
        %706 = vmatmul.bf16.gmra.mxu0 %v693
        %v707 = vpop.f32.mrf.mxu0
        %v708 = vadd.f32 0.0, %v707
        %v709 = vpop.f32.mrf.mxu0
        %v710 = vadd.f32 0.0, %v709
        %711 = vdwg.mxu0
        %v713 = vsel %vm609, %v674, 0
        %715 = vmatpush.bf16.xpose.msra.mxu0 0
        %716 = vmatpush.bf16.xpose.msra.mxu0 0
        %717 = vmatpush.bf16.xpose.msra.mxu0 0
        %718 = vmatpush.bf16.xpose.msra.mxu0 0
        %719 = vmatpush.bf16.xpose.msra.mxu0 0
        %720 = vmatpush.bf16.xpose.msra.mxu0 0
        %721 = vmatpush.bf16.xpose.msra.mxu0 0
        %722 = vmatpush.bf16.xpose.msra.mxu0 %v713
        %723 = vmatmul.bf16.gmra.mxu0 %v693
        %v724 = vpop.f32.mrf.mxu0
        %v725 = vadd.f32 0.0, %v724
        %v726 = vpop.f32.mrf.mxu0
        %v727 = vadd.f32 0.0, %v726
        %728 = vdwg.mxu0
        %v730 = vsel %vm609, %v675, 0
        %732 = vmatpush.bf16.xpose.msra.mxu0 0
        %733 = vmatpush.bf16.xpose.msra.mxu0 0
        %734 = vmatpush.bf16.xpose.msra.mxu0 0
        %735 = vmatpush.bf16.xpose.msra.mxu0 0
        %736 = vmatpush.bf16.xpose.msra.mxu0 0
        %737 = vmatpush.bf16.xpose.msra.mxu0 0
        %738 = vmatpush.bf16.xpose.msra.mxu0 0
        %739 = vmatpush.bf16.xpose.msra.mxu0 %v730
        %740 = vmatmul.bf16.gmra.mxu0 %v693
        %v741 = vpop.f32.mrf.mxu0
        %v742 = vadd.f32 0.0, %v741
        %v743 = vpop.f32.mrf.mxu0
        %v744 = vadd.f32 0.0, %v743
        %745 = vdwg.mxu0
        %v747 = vsel %vm609, %v676, 0
        %749 = vmatpush.bf16.xpose.msra.mxu0 0
        %750 = vmatpush.bf16.xpose.msra.mxu0 0
        %751 = vmatpush.bf16.xpose.msra.mxu0 0
        %752 = vmatpush.bf16.xpose.msra.mxu0 0
        %753 = vmatpush.bf16.xpose.msra.mxu0 0
        %754 = vmatpush.bf16.xpose.msra.mxu0 0
        %755 = vmatpush.bf16.xpose.msra.mxu0 0
        %756 = vmatpush.bf16.xpose.msra.mxu0 %v747
        %757 = vmatmul.bf16.gmra.mxu0 %v693
        %v758 = vpop.f32.mrf.mxu0
        %v759 = vadd.f32 0.0, %v758
        %v760 = vpop.f32.mrf.mxu0
        %v761 = vadd.f32 0.0, %v760
        %762 = vdwg.mxu0
        %v764 = vsel %vm609, %v677, 0
        %766 = vmatpush.bf16.xpose.msra.mxu0 0
        %767 = vmatpush.bf16.xpose.msra.mxu0 0
        %768 = vmatpush.bf16.xpose.msra.mxu0 0
        %769 = vmatpush.bf16.xpose.msra.mxu0 0
        %770 = vmatpush.bf16.xpose.msra.mxu0 0
        %771 = vmatpush.bf16.xpose.msra.mxu0 0
        %772 = vmatpush.bf16.xpose.msra.mxu0 0
        %773 = vmatpush.bf16.xpose.msra.mxu0 %v764
        %774 = vmatmul.bf16.gmra.mxu0 %v693
        %v775 = vpop.f32.mrf.mxu0
        %v776 = vadd.f32 0.0, %v775
        %v777 = vpop.f32.mrf.mxu0
        %v778 = vadd.f32 0.0, %v777
        %779 = vdwg.mxu0
        %v781 = vsel %vm609, %v678, 0
        %783 = vmatpush.bf16.xpose.msra.mxu0 0
        %784 = vmatpush.bf16.xpose.msra.mxu0 0
        %785 = vmatpush.bf16.xpose.msra.mxu0 0
        %786 = vmatpush.bf16.xpose.msra.mxu0 0
        %787 = vmatpush.bf16.xpose.msra.mxu0 0
        %788 = vmatpush.bf16.xpose.msra.mxu0 0
        %789 = vmatpush.bf16.xpose.msra.mxu0 0
        %790 = vmatpush.bf16.xpose.msra.mxu0 %v781
        %791 = vmatmul.bf16.gmra.mxu0 %v693
        %v792 = vpop.f32.mrf.mxu0
        %v793 = vadd.f32 0.0, %v792
        %v794 = vpop.f32.mrf.mxu0
        %v795 = vadd.f32 0.0, %v794
        %796 = vdwg.mxu0
        %v798 = vsel %vm609, %v679, 0
        %800 = vmatpush.bf16.xpose.msra.mxu0 0
        %801 = vmatpush.bf16.xpose.msra.mxu0 0
        %802 = vmatpush.bf16.xpose.msra.mxu0 0
        %803 = vmatpush.bf16.xpose.msra.mxu0 0
        %804 = vmatpush.bf16.xpose.msra.mxu0 0
        %805 = vmatpush.bf16.xpose.msra.mxu0 0
        %806 = vmatpush.bf16.xpose.msra.mxu0 0
        %807 = vmatpush.bf16.xpose.msra.mxu0 %v798
        %808 = vmatmul.bf16.gmra.mxu0 %v693
        %v809 = vpop.f32.mrf.mxu0
        %v810 = vadd.f32 0.0, %v809
        %v811 = vpop.f32.mrf.mxu0
        %v812 = vadd.f32 0.0, %v811
        %813 = vdwg.mxu0
        %v815 = vsel %vm609, %v680, 0
        %817 = vmatpush.bf16.xpose.msra.mxu0 0
        %818 = vmatpush.bf16.xpose.msra.mxu0 0
        %819 = vmatpush.bf16.xpose.msra.mxu0 0
        %820 = vmatpush.bf16.xpose.msra.mxu0 0
        %821 = vmatpush.bf16.xpose.msra.mxu0 0
        %822 = vmatpush.bf16.xpose.msra.mxu0 0
        %823 = vmatpush.bf16.xpose.msra.mxu0 0
        %824 = vmatpush.bf16.xpose.msra.mxu0 %v815
        %825 = vmatmul.bf16.gmra.mxu0 %v693
        %v826 = vpop.f32.mrf.mxu0
        %v827 = vadd.f32 0.0, %v826
        %v828 = vpop.f32.mrf.mxu0
        %v829 = vadd.f32 0.0, %v828
        %830 = vdwg.mxu0
        %v832 = vsel %vm609, %v681, 0
        %834 = vmatpush.bf16.xpose.msra.mxu0 0
        %835 = vmatpush.bf16.xpose.msra.mxu0 0
        %836 = vmatpush.bf16.xpose.msra.mxu0 0
        %837 = vmatpush.bf16.xpose.msra.mxu0 0
        %838 = vmatpush.bf16.xpose.msra.mxu0 0
        %839 = vmatpush.bf16.xpose.msra.mxu0 0
        %840 = vmatpush.bf16.xpose.msra.mxu0 0
        %841 = vmatpush.bf16.xpose.msra.mxu0 %v832
        %842 = vmatmul.bf16.gmra.mxu0 %v693
        %v843 = vpop.f32.mrf.mxu0
        %v844 = vadd.f32 0.0, %v843
        %v845 = vpop.f32.mrf.mxu0
        %v846 = vadd.f32 0.0, %v845
        %847 = vdwg.mxu0
        %v849 = vsel %vm609, %v682, 0
        %851 = vmatpush.bf16.xpose.msra.mxu0 0
        %852 = vmatpush.bf16.xpose.msra.mxu0 0
        %853 = vmatpush.bf16.xpose.msra.mxu0 0
        %854 = vmatpush.bf16.xpose.msra.mxu0 0
        %855 = vmatpush.bf16.xpose.msra.mxu0 0
        %856 = vmatpush.bf16.xpose.msra.mxu0 0
        %857 = vmatpush.bf16.xpose.msra.mxu0 0
        %858 = vmatpush.bf16.xpose.msra.mxu0 %v849
        %859 = vmatmul.bf16.gmra.mxu0 %v693
        %v860 = vpop.f32.mrf.mxu0
        %v861 = vadd.f32 0.0, %v860
        %v862 = vpop.f32.mrf.mxu0
        %v863 = vadd.f32 0.0, %v862
        %864 = vdwg.mxu0
        %v866 = vsel %vm609, %v683, 0
        %868 = vmatpush.bf16.xpose.msra.mxu0 0
        %869 = vmatpush.bf16.xpose.msra.mxu0 0
        %870 = vmatpush.bf16.xpose.msra.mxu0 0
        %871 = vmatpush.bf16.xpose.msra.mxu0 0
        %872 = vmatpush.bf16.xpose.msra.mxu0 0
        %873 = vmatpush.bf16.xpose.msra.mxu0 0
        %874 = vmatpush.bf16.xpose.msra.mxu0 0
        %875 = vmatpush.bf16.xpose.msra.mxu0 %v866
        %876 = vmatmul.bf16.gmra.mxu0 %v693
        %v877 = vpop.f32.mrf.mxu0
        %v878 = vadd.f32 0.0, %v877
        %v879 = vpop.f32.mrf.mxu0
        %v880 = vadd.f32 0.0, %v879
        %881 = vdwg.mxu0
        %v883 = vsel %vm609, %v684, 0
        %885 = vmatpush.bf16.xpose.msra.mxu0 0
        %886 = vmatpush.bf16.xpose.msra.mxu0 0
        %887 = vmatpush.bf16.xpose.msra.mxu0 0
        %888 = vmatpush.bf16.xpose.msra.mxu0 0
        %889 = vmatpush.bf16.xpose.msra.mxu0 0
        %890 = vmatpush.bf16.xpose.msra.mxu0 0
        %891 = vmatpush.bf16.xpose.msra.mxu0 0
        %892 = vmatpush.bf16.xpose.msra.mxu0 %v883
        %893 = vmatmul.bf16.gmra.mxu0 %v693
        %v894 = vpop.f32.mrf.mxu0
        %v895 = vadd.f32 0.0, %v894
        %v896 = vpop.f32.mrf.mxu0
        %v897 = vadd.f32 0.0, %v896
        %898 = vdwg.mxu0
        %v900 = vsel %vm609, %v685, 0
        %902 = vmatpush.bf16.xpose.msra.mxu0 0
        %903 = vmatpush.bf16.xpose.msra.mxu0 0
        %904 = vmatpush.bf16.xpose.msra.mxu0 0
        %905 = vmatpush.bf16.xpose.msra.mxu0 0
        %906 = vmatpush.bf16.xpose.msra.mxu0 0
        %907 = vmatpush.bf16.xpose.msra.mxu0 0
        %908 = vmatpush.bf16.xpose.msra.mxu0 0
        %909 = vmatpush.bf16.xpose.msra.mxu0 %v900
        %910 = vmatmul.bf16.gmra.mxu0 %v693
        %v911 = vpop.f32.mrf.mxu0
        %v912 = vadd.f32 0.0, %v911
        %v913 = vpop.f32.mrf.mxu0
        %v914 = vadd.f32 0.0, %v913
        %915 = vdwg.mxu0
        %v917 = vsel %vm609, %v686, 0
        %919 = vmatpush.bf16.xpose.msra.mxu0 0
        %920 = vmatpush.bf16.xpose.msra.mxu0 0
        %921 = vmatpush.bf16.xpose.msra.mxu0 0
        %922 = vmatpush.bf16.xpose.msra.mxu0 0
        %923 = vmatpush.bf16.xpose.msra.mxu0 0
        %924 = vmatpush.bf16.xpose.msra.mxu0 0
        %925 = vmatpush.bf16.xpose.msra.mxu0 0
        %926 = vmatpush.bf16.xpose.msra.mxu0 %v917
        %927 = vmatmul.bf16.gmra.mxu0 %v693
        %v928 = vpop.f32.mrf.mxu0
        %v929 = vadd.f32 0.0, %v928
        %v930 = vpop.f32.mrf.mxu0
        %v931 = vadd.f32 0.0, %v930
        %932 = vdwg.mxu0
        %v933 = vld [vmem:[#allocation8] sm:$0xf]
        %v934 = vld [vmem:[#allocation8 + $0x4] sm:$0xf]
        %v935 = vld [vmem:[#allocation8 + $0x8] sm:$0xf]
        %v936 = vld [vmem:[#allocation8 + $0xc] sm:$0xf]
        %v937 = vld [vmem:[#allocation8 + $0x10] sm:$0xf]
        %v938 = vld [vmem:[#allocation8 + $0x14] sm:$0xf]
        %v939 = vld [vmem:[#allocation8 + $0x18] sm:$0xf]
        %v940 = vld [vmem:[#allocation8 + $0x1c] sm:$0xf]
        %v941 = vld [vmem:[#allocation8 + $0x20] sm:$0xf]
        %v942 = vld [vmem:[#allocation8 + $0x24] sm:$0xf]
        %v943 = vld [vmem:[#allocation8 + $0x28] sm:$0xf]
        %v944 = vld [vmem:[#allocation8 + $0x2c] sm:$0xf]
        %v945 = vld [vmem:[#allocation8 + $0x30] sm:$0xf]
        %v946 = vld [vmem:[#allocation8 + $0x34] sm:$0xf]
        %v948 = vsel %vm609, %v933, 0
        %950 = vmatpush.bf16.xpose.msra.mxu0 0
        %951 = vmatpush.bf16.xpose.msra.mxu0 0
        %952 = vmatpush.bf16.xpose.msra.mxu0 0
        %953 = vmatpush.bf16.xpose.msra.mxu0 0
        %954 = vmatpush.bf16.xpose.msra.mxu0 0
        %955 = vmatpush.bf16.xpose.msra.mxu0 0
        %956 = vmatpush.bf16.xpose.msra.mxu0 0
        %957 = vmatpush.bf16.xpose.msra.mxu0 %v948
        %958 = vmatmul.bf16.gmra.mxu0 %v693
        %v959 = vpop.f32.mrf.mxu0
        %v960 = vadd.f32 0.0, %v959
        %v961 = vpop.f32.mrf.mxu0
        %v962 = vadd.f32 0.0, %v961
        %963 = vdwg.mxu0
        %v965 = vsel %vm609, %v934, 0
        %967 = vmatpush.bf16.xpose.msra.mxu0 0
        %968 = vmatpush.bf16.xpose.msra.mxu0 0
        %969 = vmatpush.bf16.xpose.msra.mxu0 0
        %970 = vmatpush.bf16.xpose.msra.mxu0 0
        %971 = vmatpush.bf16.xpose.msra.mxu0 0
        %972 = vmatpush.bf16.xpose.msra.mxu0 0
        %973 = vmatpush.bf16.xpose.msra.mxu0 0
        %974 = vmatpush.bf16.xpose.msra.mxu0 %v965
        %975 = vmatmul.bf16.gmra.mxu0 %v693
        %v976 = vpop.f32.mrf.mxu0
        %v977 = vadd.f32 0.0, %v976
        %v978 = vpop.f32.mrf.mxu0
        %v979 = vadd.f32 0.0, %v978
        %980 = vdwg.mxu0
        %v982 = vsel %vm609, %v935, 0
        %984 = vmatpush.bf16.xpose.msra.mxu0 0
        %985 = vmatpush.bf16.xpose.msra.mxu0 0
        %986 = vmatpush.bf16.xpose.msra.mxu0 0
        %987 = vmatpush.bf16.xpose.msra.mxu0 0
        %988 = vmatpush.bf16.xpose.msra.mxu0 0
        %989 = vmatpush.bf16.xpose.msra.mxu0 0
        %990 = vmatpush.bf16.xpose.msra.mxu0 0
        %991 = vmatpush.bf16.xpose.msra.mxu0 %v982
        %992 = vmatmul.bf16.gmra.mxu0 %v693
        %v993 = vpop.f32.mrf.mxu0
        %v994 = vadd.f32 0.0, %v993
        %v995 = vpop.f32.mrf.mxu0
        %v996 = vadd.f32 0.0, %v995
        %997 = vdwg.mxu0
        %v999 = vsel %vm609, %v936, 0
        %1001 = vmatpush.bf16.xpose.msra.mxu0 0
        %1002 = vmatpush.bf16.xpose.msra.mxu0 0
        %1003 = vmatpush.bf16.xpose.msra.mxu0 0
        %1004 = vmatpush.bf16.xpose.msra.mxu0 0
        %1005 = vmatpush.bf16.xpose.msra.mxu0 0
        %1006 = vmatpush.bf16.xpose.msra.mxu0 0
        %1007 = vmatpush.bf16.xpose.msra.mxu0 0
        %1008 = vmatpush.bf16.xpose.msra.mxu0 %v999
        %1009 = vmatmul.bf16.gmra.mxu0 %v693
        %v1010 = vpop.f32.mrf.mxu0
        %v1011 = vadd.f32 0.0, %v1010
        %v1012 = vpop.f32.mrf.mxu0
        %v1013 = vadd.f32 0.0, %v1012
        %1014 = vdwg.mxu0
        %v1016 = vsel %vm609, %v937, 0
        %1018 = vmatpush.bf16.xpose.msra.mxu0 0
        %1019 = vmatpush.bf16.xpose.msra.mxu0 0
        %1020 = vmatpush.bf16.xpose.msra.mxu0 0
        %1021 = vmatpush.bf16.xpose.msra.mxu0 0
        %1022 = vmatpush.bf16.xpose.msra.mxu0 0
        %1023 = vmatpush.bf16.xpose.msra.mxu0 0
        %1024 = vmatpush.bf16.xpose.msra.mxu0 0
        %1025 = vmatpush.bf16.xpose.msra.mxu0 %v1016
        %1026 = vmatmul.bf16.gmra.mxu0 %v693
        %v1027 = vpop.f32.mrf.mxu0
        %v1028 = vadd.f32 0.0, %v1027
        %v1029 = vpop.f32.mrf.mxu0
        %v1030 = vadd.f32 0.0, %v1029
        %1031 = vdwg.mxu0
        %v1033 = vsel %vm609, %v938, 0
        %1035 = vmatpush.bf16.xpose.msra.mxu0 0
        %1036 = vmatpush.bf16.xpose.msra.mxu0 0
        %1037 = vmatpush.bf16.xpose.msra.mxu0 0
        %1038 = vmatpush.bf16.xpose.msra.mxu0 0
        %1039 = vmatpush.bf16.xpose.msra.mxu0 0
        %1040 = vmatpush.bf16.xpose.msra.mxu0 0
        %1041 = vmatpush.bf16.xpose.msra.mxu0 0
        %1042 = vmatpush.bf16.xpose.msra.mxu0 %v1033
        %1043 = vmatmul.bf16.gmra.mxu0 %v693
        %v1044 = vpop.f32.mrf.mxu0
        %v1045 = vadd.f32 0.0, %v1044
        %v1046 = vpop.f32.mrf.mxu0
        %v1047 = vadd.f32 0.0, %v1046
        %1048 = vdwg.mxu0
        %v1050 = vsel %vm609, %v939, 0
        %1052 = vmatpush.bf16.xpose.msra.mxu0 0
        %1053 = vmatpush.bf16.xpose.msra.mxu0 0
        %1054 = vmatpush.bf16.xpose.msra.mxu0 0
        %1055 = vmatpush.bf16.xpose.msra.mxu0 0
        %1056 = vmatpush.bf16.xpose.msra.mxu0 0
        %1057 = vmatpush.bf16.xpose.msra.mxu0 0
        %1058 = vmatpush.bf16.xpose.msra.mxu0 0
        %1059 = vmatpush.bf16.xpose.msra.mxu0 %v1050
        %1060 = vmatmul.bf16.gmra.mxu0 %v693
        %v1061 = vpop.f32.mrf.mxu0
        %v1062 = vadd.f32 0.0, %v1061
        %v1063 = vpop.f32.mrf.mxu0
        %v1064 = vadd.f32 0.0, %v1063
        %1065 = vdwg.mxu0
        %v1067 = vsel %vm609, %v940, 0
        %1069 = vmatpush.bf16.xpose.msra.mxu0 0
        %1070 = vmatpush.bf16.xpose.msra.mxu0 0
        %1071 = vmatpush.bf16.xpose.msra.mxu0 0
        %1072 = vmatpush.bf16.xpose.msra.mxu0 0
        %1073 = vmatpush.bf16.xpose.msra.mxu0 0
        %1074 = vmatpush.bf16.xpose.msra.mxu0 0
        %1075 = vmatpush.bf16.xpose.msra.mxu0 0
        %1076 = vmatpush.bf16.xpose.msra.mxu0 %v1067
        %1077 = vmatmul.bf16.gmra.mxu0 %v693
        %v1078 = vpop.f32.mrf.mxu0
        %v1079 = vadd.f32 0.0, %v1078
        %v1080 = vpop.f32.mrf.mxu0
        %v1081 = vadd.f32 0.0, %v1080
        %1082 = vdwg.mxu0
        %v1084 = vsel %vm609, %v941, 0
        %1086 = vmatpush.bf16.xpose.msra.mxu0 0
        %1087 = vmatpush.bf16.xpose.msra.mxu0 0
        %1088 = vmatpush.bf16.xpose.msra.mxu0 0
        %1089 = vmatpush.bf16.xpose.msra.mxu0 0
        %1090 = vmatpush.bf16.xpose.msra.mxu0 0
        %1091 = vmatpush.bf16.xpose.msra.mxu0 0
        %1092 = vmatpush.bf16.xpose.msra.mxu0 0
        %1093 = vmatpush.bf16.xpose.msra.mxu0 %v1084
        %1094 = vmatmul.bf16.gmra.mxu0 %v693
        %v1095 = vpop.f32.mrf.mxu0
        %v1096 = vadd.f32 0.0, %v1095
        %v1097 = vpop.f32.mrf.mxu0
        %v1098 = vadd.f32 0.0, %v1097
        %1099 = vdwg.mxu0
        %v1101 = vsel %vm609, %v942, 0
        %1103 = vmatpush.bf16.xpose.msra.mxu0 0
        %1104 = vmatpush.bf16.xpose.msra.mxu0 0
        %1105 = vmatpush.bf16.xpose.msra.mxu0 0
        %1106 = vmatpush.bf16.xpose.msra.mxu0 0
        %1107 = vmatpush.bf16.xpose.msra.mxu0 0
        %1108 = vmatpush.bf16.xpose.msra.mxu0 0
        %1109 = vmatpush.bf16.xpose.msra.mxu0 0
        %1110 = vmatpush.bf16.xpose.msra.mxu0 %v1101
        %1111 = vmatmul.bf16.gmra.mxu0 %v693
        %v1112 = vpop.f32.mrf.mxu0
        %v1113 = vadd.f32 0.0, %v1112
        %v1114 = vpop.f32.mrf.mxu0
        %v1115 = vadd.f32 0.0, %v1114
        %1116 = vdwg.mxu0
        %v1118 = vsel %vm609, %v943, 0
        %1120 = vmatpush.bf16.xpose.msra.mxu0 0
        %1121 = vmatpush.bf16.xpose.msra.mxu0 0
        %1122 = vmatpush.bf16.xpose.msra.mxu0 0
        %1123 = vmatpush.bf16.xpose.msra.mxu0 0
        %1124 = vmatpush.bf16.xpose.msra.mxu0 0
        %1125 = vmatpush.bf16.xpose.msra.mxu0 0
        %1126 = vmatpush.bf16.xpose.msra.mxu0 0
        %1127 = vmatpush.bf16.xpose.msra.mxu0 %v1118
        %1128 = vmatmul.bf16.gmra.mxu0 %v693
        %v1129 = vpop.f32.mrf.mxu0
        %v1130 = vadd.f32 0.0, %v1129
        %v1131 = vpop.f32.mrf.mxu0
        %v1132 = vadd.f32 0.0, %v1131
        %1133 = vdwg.mxu0
        %v1135 = vsel %vm609, %v944, 0
        %1137 = vmatpush.bf16.xpose.msra.mxu0 0
        %1138 = vmatpush.bf16.xpose.msra.mxu0 0
        %1139 = vmatpush.bf16.xpose.msra.mxu0 0
        %1140 = vmatpush.bf16.xpose.msra.mxu0 0
        %1141 = vmatpush.bf16.xpose.msra.mxu0 0
        %1142 = vmatpush.bf16.xpose.msra.mxu0 0
        %1143 = vmatpush.bf16.xpose.msra.mxu0 0
        %1144 = vmatpush.bf16.xpose.msra.mxu0 %v1135
        %1145 = vmatmul.bf16.gmra.mxu0 %v693
        %v1146 = vpop.f32.mrf.mxu0
        %v1147 = vadd.f32 0.0, %v1146
        %v1148 = vpop.f32.mrf.mxu0
        %v1149 = vadd.f32 0.0, %v1148
        %1150 = vdwg.mxu0
        %v1152 = vsel %vm609, %v945, 0
        %1154 = vmatpush.bf16.xpose.msra.mxu0 0
        %1155 = vmatpush.bf16.xpose.msra.mxu0 0
        %1156 = vmatpush.bf16.xpose.msra.mxu0 0
        %1157 = vmatpush.bf16.xpose.msra.mxu0 0
        %1158 = vmatpush.bf16.xpose.msra.mxu0 0
        %1159 = vmatpush.bf16.xpose.msra.mxu0 0
        %1160 = vmatpush.bf16.xpose.msra.mxu0 0
        %1161 = vmatpush.bf16.xpose.msra.mxu0 %v1152
        %1162 = vmatmul.bf16.gmra.mxu0 %v693
        %v1163 = vpop.f32.mrf.mxu0
        %v1164 = vadd.f32 0.0, %v1163
        %v1165 = vpop.f32.mrf.mxu0
        %v1166 = vadd.f32 0.0, %v1165
        %1167 = vdwg.mxu0
        %v1169 = vsel %vm609, %v946, 0
        %1171 = vmatpush.bf16.xpose.msra.mxu0 0
        %1172 = vmatpush.bf16.xpose.msra.mxu0 0
        %1173 = vmatpush.bf16.xpose.msra.mxu0 0
        %1174 = vmatpush.bf16.xpose.msra.mxu0 0
        %1175 = vmatpush.bf16.xpose.msra.mxu0 0
        %1176 = vmatpush.bf16.xpose.msra.mxu0 0
        %1177 = vmatpush.bf16.xpose.msra.mxu0 0
        %1178 = vmatpush.bf16.xpose.msra.mxu0 %v1169
        %1179 = vmatmul.bf16.gmra.mxu0 %v693
        %v1180 = vpop.f32.mrf.mxu0
        %v1181 = vadd.f32 0.0, %v1180
        %v1182 = vpop.f32.mrf.mxu0
        %v1183 = vadd.f32 0.0, %v1182
        %1184 = vdwg.mxu0
        %v1185 = vld [vmem:[#allocation10] sm:$0xf]
        %v1186 = vld [vmem:[#allocation10 + $0x4] sm:$0xf]
        %v1187 = vld [vmem:[#allocation10 + $0x8] sm:$0xf]
        %v1188 = vld [vmem:[#allocation10 + $0xc] sm:$0xf]
        %v1189 = vld [vmem:[#allocation10 + $0x10] sm:$0xf]
        %v1190 = vld [vmem:[#allocation10 + $0x14] sm:$0xf]
        %v1191 = vld [vmem:[#allocation10 + $0x18] sm:$0xf]
        %v1192 = vld [vmem:[#allocation10 + $0x1c] sm:$0xf]
        %v1193 = vld [vmem:[#allocation10 + $0x20] sm:$0xf]
        %v1194 = vld [vmem:[#allocation10 + $0x24] sm:$0xf]
        %v1195 = vld [vmem:[#allocation10 + $0x28] sm:$0xf]
        %v1196 = vld [vmem:[#allocation10 + $0x2c] sm:$0xf]
        %v1197 = vld [vmem:[#allocation10 + $0x30] sm:$0xf]
        %v1198 = vld [vmem:[#allocation10 + $0x34] sm:$0xf]
        %v1200 = vsel %vm609, %v1185, 0
        %1202 = vmatpush.bf16.xpose.msra.mxu0 0
        %1203 = vmatpush.bf16.xpose.msra.mxu0 0
        %1204 = vmatpush.bf16.xpose.msra.mxu0 0
        %1205 = vmatpush.bf16.xpose.msra.mxu0 0
        %1206 = vmatpush.bf16.xpose.msra.mxu0 0
        %1207 = vmatpush.bf16.xpose.msra.mxu0 0
        %1208 = vmatpush.bf16.xpose.msra.mxu0 0
        %1209 = vmatpush.bf16.xpose.msra.mxu0 %v1200
        %1210 = vmatmul.bf16.gmra.mxu0 %v693
        %v1211 = vpop.f32.mrf.mxu0
        %v1212 = vadd.f32 0.0, %v1211
        %v1213 = vpop.f32.mrf.mxu0
        %v1214 = vadd.f32 0.0, %v1213
        %1215 = vdwg.mxu0
        %v1217 = vsel %vm609, %v1186, 0
        %1219 = vmatpush.bf16.xpose.msra.mxu0 0
        %1220 = vmatpush.bf16.xpose.msra.mxu0 0
        %1221 = vmatpush.bf16.xpose.msra.mxu0 0
        %1222 = vmatpush.bf16.xpose.msra.mxu0 0
        %1223 = vmatpush.bf16.xpose.msra.mxu0 0
        %1224 = vmatpush.bf16.xpose.msra.mxu0 0
        %1225 = vmatpush.bf16.xpose.msra.mxu0 0
        %1226 = vmatpush.bf16.xpose.msra.mxu0 %v1217
        %1227 = vmatmul.bf16.gmra.mxu0 %v693
        %v1228 = vpop.f32.mrf.mxu0
        %v1229 = vadd.f32 0.0, %v1228
        %v1230 = vpop.f32.mrf.mxu0
        %v1231 = vadd.f32 0.0, %v1230
        %1232 = vdwg.mxu0
        %v1234 = vsel %vm609, %v1187, 0
        %1236 = vmatpush.bf16.xpose.msra.mxu0 0
        %1237 = vmatpush.bf16.xpose.msra.mxu0 0
        %1238 = vmatpush.bf16.xpose.msra.mxu0 0
        %1239 = vmatpush.bf16.xpose.msra.mxu0 0
        %1240 = vmatpush.bf16.xpose.msra.mxu0 0
        %1241 = vmatpush.bf16.xpose.msra.mxu0 0
        %1242 = vmatpush.bf16.xpose.msra.mxu0 0
        %1243 = vmatpush.bf16.xpose.msra.mxu0 %v1234
        %1244 = vmatmul.bf16.gmra.mxu0 %v693
        %v1245 = vpop.f32.mrf.mxu0
        %v1246 = vadd.f32 0.0, %v1245
        %v1247 = vpop.f32.mrf.mxu0
        %v1248 = vadd.f32 0.0, %v1247
        %1249 = vdwg.mxu0
        %v1251 = vsel %vm609, %v1188, 0
        %1253 = vmatpush.bf16.xpose.msra.mxu0 0
        %1254 = vmatpush.bf16.xpose.msra.mxu0 0
        %1255 = vmatpush.bf16.xpose.msra.mxu0 0
        %1256 = vmatpush.bf16.xpose.msra.mxu0 0
        %1257 = vmatpush.bf16.xpose.msra.mxu0 0
        %1258 = vmatpush.bf16.xpose.msra.mxu0 0
        %1259 = vmatpush.bf16.xpose.msra.mxu0 0
        %1260 = vmatpush.bf16.xpose.msra.mxu0 %v1251
        %1261 = vmatmul.bf16.gmra.mxu0 %v693
        %v1262 = vpop.f32.mrf.mxu0
        %v1263 = vadd.f32 0.0, %v1262
        %v1264 = vpop.f32.mrf.mxu0
        %v1265 = vadd.f32 0.0, %v1264
        %1266 = vdwg.mxu0
        %v1268 = vsel %vm609, %v1189, 0
        %1270 = vmatpush.bf16.xpose.msra.mxu0 0
        %1271 = vmatpush.bf16.xpose.msra.mxu0 0
        %1272 = vmatpush.bf16.xpose.msra.mxu0 0
        %1273 = vmatpush.bf16.xpose.msra.mxu0 0
        %1274 = vmatpush.bf16.xpose.msra.mxu0 0
        %1275 = vmatpush.bf16.xpose.msra.mxu0 0
        %1276 = vmatpush.bf16.xpose.msra.mxu0 0
        %1277 = vmatpush.bf16.xpose.msra.mxu0 %v1268
        %1278 = vmatmul.bf16.gmra.mxu0 %v693
        %v1279 = vpop.f32.mrf.mxu0
        %v1280 = vadd.f32 0.0, %v1279
        %v1281 = vpop.f32.mrf.mxu0
        %v1282 = vadd.f32 0.0, %v1281
        %1283 = vdwg.mxu0
        %v1285 = vsel %vm609, %v1190, 0
        %1287 = vmatpush.bf16.xpose.msra.mxu0 0
        %1288 = vmatpush.bf16.xpose.msra.mxu0 0
        %1289 = vmatpush.bf16.xpose.msra.mxu0 0
        %1290 = vmatpush.bf16.xpose.msra.mxu0 0
        %1291 = vmatpush.bf16.xpose.msra.mxu0 0
        %1292 = vmatpush.bf16.xpose.msra.mxu0 0
        %1293 = vmatpush.bf16.xpose.msra.mxu0 0
        %1294 = vmatpush.bf16.xpose.msra.mxu0 %v1285
        %1295 = vmatmul.bf16.gmra.mxu0 %v693
        %v1296 = vpop.f32.mrf.mxu0
        %v1297 = vadd.f32 0.0, %v1296
        %v1298 = vpop.f32.mrf.mxu0
        %v1299 = vadd.f32 0.0, %v1298
        %1300 = vdwg.mxu0
        %v1302 = vsel %vm609, %v1191, 0
        %1304 = vmatpush.bf16.xpose.msra.mxu0 0
        %1305 = vmatpush.bf16.xpose.msra.mxu0 0
        %1306 = vmatpush.bf16.xpose.msra.mxu0 0
        %1307 = vmatpush.bf16.xpose.msra.mxu0 0
        %1308 = vmatpush.bf16.xpose.msra.mxu0 0
        %1309 = vmatpush.bf16.xpose.msra.mxu0 0
        %1310 = vmatpush.bf16.xpose.msra.mxu0 0
        %1311 = vmatpush.bf16.xpose.msra.mxu0 %v1302
        %1312 = vmatmul.bf16.gmra.mxu0 %v693
        %v1313 = vpop.f32.mrf.mxu0
        %v1314 = vadd.f32 0.0, %v1313
        %v1315 = vpop.f32.mrf.mxu0
        %v1316 = vadd.f32 0.0, %v1315
        %1317 = vdwg.mxu0
        %v1319 = vsel %vm609, %v1192, 0
        %1321 = vmatpush.bf16.xpose.msra.mxu0 0
        %1322 = vmatpush.bf16.xpose.msra.mxu0 0
        %1323 = vmatpush.bf16.xpose.msra.mxu0 0
        %1324 = vmatpush.bf16.xpose.msra.mxu0 0
        %1325 = vmatpush.bf16.xpose.msra.mxu0 0
        %1326 = vmatpush.bf16.xpose.msra.mxu0 0
        %1327 = vmatpush.bf16.xpose.msra.mxu0 0
        %1328 = vmatpush.bf16.xpose.msra.mxu0 %v1319
        %1329 = vmatmul.bf16.gmra.mxu0 %v693
        %v1330 = vpop.f32.mrf.mxu0
        %v1331 = vadd.f32 0.0, %v1330
        %v1332 = vpop.f32.mrf.mxu0
        %v1333 = vadd.f32 0.0, %v1332
        %1334 = vdwg.mxu0
        %v1336 = vsel %vm609, %v1193, 0
        %1338 = vmatpush.bf16.xpose.msra.mxu0 0
        %1339 = vmatpush.bf16.xpose.msra.mxu0 0
        %1340 = vmatpush.bf16.xpose.msra.mxu0 0
        %1341 = vmatpush.bf16.xpose.msra.mxu0 0
        %1342 = vmatpush.bf16.xpose.msra.mxu0 0
        %1343 = vmatpush.bf16.xpose.msra.mxu0 0
        %1344 = vmatpush.bf16.xpose.msra.mxu0 0
        %1345 = vmatpush.bf16.xpose.msra.mxu0 %v1336
        %1346 = vmatmul.bf16.gmra.mxu0 %v693
        %v1347 = vpop.f32.mrf.mxu0
        %v1348 = vadd.f32 0.0, %v1347
        %v1349 = vpop.f32.mrf.mxu0
        %v1350 = vadd.f32 0.0, %v1349
        %1351 = vdwg.mxu0
        %v1353 = vsel %vm609, %v1194, 0
        %1355 = vmatpush.bf16.xpose.msra.mxu0 0
        %1356 = vmatpush.bf16.xpose.msra.mxu0 0
        %1357 = vmatpush.bf16.xpose.msra.mxu0 0
        %1358 = vmatpush.bf16.xpose.msra.mxu0 0
        %1359 = vmatpush.bf16.xpose.msra.mxu0 0
        %1360 = vmatpush.bf16.xpose.msra.mxu0 0
        %1361 = vmatpush.bf16.xpose.msra.mxu0 0
        %1362 = vmatpush.bf16.xpose.msra.mxu0 %v1353
        %1363 = vmatmul.bf16.gmra.mxu0 %v693
        %v1364 = vpop.f32.mrf.mxu0
        %v1365 = vadd.f32 0.0, %v1364
        %v1366 = vpop.f32.mrf.mxu0
        %v1367 = vadd.f32 0.0, %v1366
        %1368 = vdwg.mxu0
        %v1370 = vsel %vm609, %v1195, 0
        %1372 = vmatpush.bf16.xpose.msra.mxu0 0
        %1373 = vmatpush.bf16.xpose.msra.mxu0 0
        %1374 = vmatpush.bf16.xpose.msra.mxu0 0
        %1375 = vmatpush.bf16.xpose.msra.mxu0 0
        %1376 = vmatpush.bf16.xpose.msra.mxu0 0
        %1377 = vmatpush.bf16.xpose.msra.mxu0 0
        %1378 = vmatpush.bf16.xpose.msra.mxu0 0
        %1379 = vmatpush.bf16.xpose.msra.mxu0 %v1370
        %1380 = vmatmul.bf16.gmra.mxu0 %v693
        %v1381 = vpop.f32.mrf.mxu0
        %v1382 = vadd.f32 0.0, %v1381
        %v1383 = vpop.f32.mrf.mxu0
        %v1384 = vadd.f32 0.0, %v1383
        %1385 = vdwg.mxu0
        %v1387 = vsel %vm609, %v1196, 0
        %1389 = vmatpush.bf16.xpose.msra.mxu0 0
        %1390 = vmatpush.bf16.xpose.msra.mxu0 0
        %1391 = vmatpush.bf16.xpose.msra.mxu0 0
        %1392 = vmatpush.bf16.xpose.msra.mxu0 0
        %1393 = vmatpush.bf16.xpose.msra.mxu0 0
        %1394 = vmatpush.bf16.xpose.msra.mxu0 0
        %1395 = vmatpush.bf16.xpose.msra.mxu0 0
        %1396 = vmatpush.bf16.xpose.msra.mxu0 %v1387
        %1397 = vmatmul.bf16.gmra.mxu0 %v693
        %v1398 = vpop.f32.mrf.mxu0
        %v1399 = vadd.f32 0.0, %v1398
        %v1400 = vpop.f32.mrf.mxu0
        %v1401 = vadd.f32 0.0, %v1400
        %1402 = vdwg.mxu0
        %v1404 = vsel %vm609, %v1197, 0
        %1406 = vmatpush.bf16.xpose.msra.mxu0 0
        %1407 = vmatpush.bf16.xpose.msra.mxu0 0
        %1408 = vmatpush.bf16.xpose.msra.mxu0 0
        %1409 = vmatpush.bf16.xpose.msra.mxu0 0
        %1410 = vmatpush.bf16.xpose.msra.mxu0 0
        %1411 = vmatpush.bf16.xpose.msra.mxu0 0
        %1412 = vmatpush.bf16.xpose.msra.mxu0 0
        %1413 = vmatpush.bf16.xpose.msra.mxu0 %v1404
        %1414 = vmatmul.bf16.gmra.mxu0 %v693
        %v1415 = vpop.f32.mrf.mxu0
        %v1416 = vadd.f32 0.0, %v1415
        %v1417 = vpop.f32.mrf.mxu0
        %v1418 = vadd.f32 0.0, %v1417
        %1419 = vdwg.mxu0
        %v1421 = vsel %vm609, %v1198, 0
        %1423 = vmatpush.bf16.xpose.msra.mxu0 0
        %1424 = vmatpush.bf16.xpose.msra.mxu0 0
        %1425 = vmatpush.bf16.xpose.msra.mxu0 0
        %1426 = vmatpush.bf16.xpose.msra.mxu0 0
        %1427 = vmatpush.bf16.xpose.msra.mxu0 0
        %1428 = vmatpush.bf16.xpose.msra.mxu0 0
        %1429 = vmatpush.bf16.xpose.msra.mxu0 0
        %1430 = vmatpush.bf16.xpose.msra.mxu0 %v1421
        %1431 = vmatmul.bf16.gmra.mxu0 %v693
        %v1432 = vpop.f32.mrf.mxu0
        %v1433 = vadd.f32 0.0, %v1432
        %v1434 = vpop.f32.mrf.mxu0
        %v1435 = vadd.f32 0.0, %v1434
        %1436 = vdwg.mxu0
        %vm1437 = vcmask 64512
        %v1438 = vsel %vm1437, %v960, -inf
        %1439 = vmax.xlane.f32.xlu0 %v1438
        %v1440 = vpop.xlane.xlu0 %1439
        %v1441 = vsel %vm1437, %v962, -inf
        %1442 = vmax.xlane.f32.xlu0 %v1441
        %v1443 = vpop.xlane.xlu0 %1442
        %v1444 = vsel %vm1437, %v977, -inf
        %1445 = vmax.xlane.f32.xlu0 %v1444
        %v1446 = vpop.xlane.xlu0 %1445
        %v1447 = vsel %vm1437, %v979, -inf
        %1448 = vmax.xlane.f32.xlu0 %v1447
        %v1449 = vpop.xlane.xlu0 %1448
        %v1450 = vsel %vm1437, %v994, -inf
        %1451 = vmax.xlane.f32.xlu0 %v1450
        %v1452 = vpop.xlane.xlu0 %1451
        %v1453 = vsel %vm1437, %v996, -inf
        %1454 = vmax.xlane.f32.xlu0 %v1453
        %v1455 = vpop.xlane.xlu0 %1454
        %v1456 = vsel %vm1437, %v1011, -inf
        %1457 = vmax.xlane.f32.xlu0 %v1456
        %v1458 = vpop.xlane.xlu0 %1457
        %v1459 = vsel %vm1437, %v1013, -inf
        %1460 = vmax.xlane.f32.xlu0 %v1459
        %v1461 = vpop.xlane.xlu0 %1460
        %v1462 = vsel %vm1437, %v1028, -inf
        %1463 = vmax.xlane.f32.xlu0 %v1462
        %v1464 = vpop.xlane.xlu0 %1463
        %v1465 = vsel %vm1437, %v1030, -inf
        %1466 = vmax.xlane.f32.xlu0 %v1465
        %v1467 = vpop.xlane.xlu0 %1466
        %v1468 = vsel %vm1437, %v1045, -inf
        %1469 = vmax.xlane.f32.xlu0 %v1468
        %v1470 = vpop.xlane.xlu0 %1469
        %v1471 = vsel %vm1437, %v1047, -inf
        %1472 = vmax.xlane.f32.xlu0 %v1471
        %v1473 = vpop.xlane.xlu0 %1472
        %v1474 = vsel %vm1437, %v1062, -inf
        %1475 = vmax.xlane.f32.xlu0 %v1474
        %v1476 = vpop.xlane.xlu0 %1475
        %v1477 = vsel %vm1437, %v1064, -inf
        %1478 = vmax.xlane.f32.xlu0 %v1477
        %v1479 = vpop.xlane.xlu0 %1478
        %v1480 = vsel %vm1437, %v1079, -inf
        %1481 = vmax.xlane.f32.xlu0 %v1480
        %v1482 = vpop.xlane.xlu0 %1481
        %v1483 = vsel %vm1437, %v1081, -inf
        %1484 = vmax.xlane.f32.xlu0 %v1483
        %v1485 = vpop.xlane.xlu0 %1484
        %v1486 = vsel %vm1437, %v1096, -inf
        %1487 = vmax.xlane.f32.xlu0 %v1486
        %v1488 = vpop.xlane.xlu0 %1487
        %v1489 = vsel %vm1437, %v1098, -inf
        %1490 = vmax.xlane.f32.xlu0 %v1489
        %v1491 = vpop.xlane.xlu0 %1490
        %v1492 = vsel %vm1437, %v1113, -inf
        %1493 = vmax.xlane.f32.xlu0 %v1492
        %v1494 = vpop.xlane.xlu0 %1493
        %v1495 = vsel %vm1437, %v1115, -inf
        %1496 = vmax.xlane.f32.xlu0 %v1495
        %v1497 = vpop.xlane.xlu0 %1496
        %v1498 = vsel %vm1437, %v1130, -inf
        %1499 = vmax.xlane.f32.xlu0 %v1498
        %v1500 = vpop.xlane.xlu0 %1499
        %v1501 = vsel %vm1437, %v1132, -inf
        %1502 = vmax.xlane.f32.xlu0 %v1501
        %v1503 = vpop.xlane.xlu0 %1502
        %v1504 = vsel %vm1437, %v1147, -inf
        %1505 = vmax.xlane.f32.xlu0 %v1504
        %v1506 = vpop.xlane.xlu0 %1505
        %v1507 = vsel %vm1437, %v1149, -inf
        %1508 = vmax.xlane.f32.xlu0 %v1507
        %v1509 = vpop.xlane.xlu0 %1508
        %v1510 = vsel %vm1437, %v1164, -inf
        %1511 = vmax.xlane.f32.xlu0 %v1510
        %v1512 = vpop.xlane.xlu0 %1511
        %v1513 = vsel %vm1437, %v1166, -inf
        %1514 = vmax.xlane.f32.xlu0 %v1513
        %v1515 = vpop.xlane.xlu0 %1514
        %v1516 = vsel %vm1437, %v1181, -inf
        %1517 = vmax.xlane.f32.xlu0 %v1516
        %v1518 = vpop.xlane.xlu0 %1517
        %v1519 = vsel %vm1437, %v1183, -inf
        %1520 = vmax.xlane.f32.xlu0 %v1519
        %v1521 = vpop.xlane.xlu0 %1520
        %v1522 = vsel %vm1437, %v960, inf
        %1523 = vmin.xlane.f32.xlu0 %v1522
        %v1524 = vpop.xlane.xlu0 %1523
        %v1525 = vsel %vm1437, %v962, inf
        %1526 = vmin.xlane.f32.xlu0 %v1525
        %v1527 = vpop.xlane.xlu0 %1526
        %v1528 = vsel %vm1437, %v977, inf
        %1529 = vmin.xlane.f32.xlu0 %v1528
        %v1530 = vpop.xlane.xlu0 %1529
        %v1531 = vsel %vm1437, %v979, inf
        %1532 = vmin.xlane.f32.xlu0 %v1531
        %v1533 = vpop.xlane.xlu0 %1532
        %v1534 = vsel %vm1437, %v994, inf
        %1535 = vmin.xlane.f32.xlu0 %v1534
        %v1536 = vpop.xlane.xlu0 %1535
        %v1537 = vsel %vm1437, %v996, inf
        %1538 = vmin.xlane.f32.xlu0 %v1537
        %v1539 = vpop.xlane.xlu0 %1538
        %v1540 = vsel %vm1437, %v1011, inf
        %1541 = vmin.xlane.f32.xlu0 %v1540
        %v1542 = vpop.xlane.xlu0 %1541
        %v1543 = vsel %vm1437, %v1013, inf
        %1544 = vmin.xlane.f32.xlu0 %v1543
        %v1545 = vpop.xlane.xlu0 %1544
        %v1546 = vsel %vm1437, %v1028, inf
        %1547 = vmin.xlane.f32.xlu0 %v1546
        %v1548 = vpop.xlane.xlu0 %1547
        %v1549 = vsel %vm1437, %v1030, inf
        %1550 = vmin.xlane.f32.xlu0 %v1549
        %v1551 = vpop.xlane.xlu0 %1550
        %v1552 = vsel %vm1437, %v1045, inf
        %1553 = vmin.xlane.f32.xlu0 %v1552
        %v1554 = vpop.xlane.xlu0 %1553
        %v1555 = vsel %vm1437, %v1047, inf
        %1556 = vmin.xlane.f32.xlu0 %v1555
        %v1557 = vpop.xlane.xlu0 %1556
        %v1558 = vsel %vm1437, %v1062, inf
        %1559 = vmin.xlane.f32.xlu0 %v1558
        %v1560 = vpop.xlane.xlu0 %1559
        %v1561 = vsel %vm1437, %v1064, inf
        %1562 = vmin.xlane.f32.xlu0 %v1561
        %v1563 = vpop.xlane.xlu0 %1562
        %v1564 = vsel %vm1437, %v1079, inf
        %1565 = vmin.xlane.f32.xlu0 %v1564
        %v1566 = vpop.xlane.xlu0 %1565
        %v1567 = vsel %vm1437, %v1081, inf
        %1568 = vmin.xlane.f32.xlu0 %v1567
        %v1569 = vpop.xlane.xlu0 %1568
        %v1570 = vsel %vm1437, %v1096, inf
        %1571 = vmin.xlane.f32.xlu0 %v1570
        %v1572 = vpop.xlane.xlu0 %1571
        %v1573 = vsel %vm1437, %v1098, inf
        %1574 = vmin.xlane.f32.xlu0 %v1573
        %v1575 = vpop.xlane.xlu0 %1574
        %v1576 = vsel %vm1437, %v1113, inf
        %1577 = vmin.xlane.f32.xlu0 %v1576
        %v1578 = vpop.xlane.xlu0 %1577
        %v1579 = vsel %vm1437, %v1115, inf
        %1580 = vmin.xlane.f32.xlu0 %v1579
        %v1581 = vpop.xlane.xlu0 %1580
        %v1582 = vsel %vm1437, %v1130, inf
        %1583 = vmin.xlane.f32.xlu0 %v1582
        %v1584 = vpop.xlane.xlu0 %1583
        %v1585 = vsel %vm1437, %v1132, inf
        %1586 = vmin.xlane.f32.xlu0 %v1585
        %v1587 = vpop.xlane.xlu0 %1586
        %v1588 = vsel %vm1437, %v1147, inf
        %1589 = vmin.xlane.f32.xlu0 %v1588
        %v1590 = vpop.xlane.xlu0 %1589
        %v1591 = vsel %vm1437, %v1149, inf
        %1592 = vmin.xlane.f32.xlu0 %v1591
        %v1593 = vpop.xlane.xlu0 %1592
        %v1594 = vsel %vm1437, %v1164, inf
        %1595 = vmin.xlane.f32.xlu0 %v1594
        %v1596 = vpop.xlane.xlu0 %1595
        %v1597 = vsel %vm1437, %v1166, inf
        %1598 = vmin.xlane.f32.xlu0 %v1597
        %v1599 = vpop.xlane.xlu0 %1598
        %v1600 = vsel %vm1437, %v1181, inf
        %1601 = vmin.xlane.f32.xlu0 %v1600
        %v1602 = vpop.xlane.xlu0 %1601
        %v1603 = vsel %vm1437, %v1183, inf
        %1604 = vmin.xlane.f32.xlu0 %v1603
        %v1605 = vpop.xlane.xlu0 %1604
        %v1606 = vmul.f32 %v708, %v1440
        %v1607 = vmul.f32 %v710, %v1443
        %v1608 = vmul.f32 %v725, %v1446
        %v1609 = vmul.f32 %v727, %v1449
        %v1610 = vmul.f32 %v742, %v1452
        %v1611 = vmul.f32 %v744, %v1455
        %v1612 = vmul.f32 %v759, %v1458
        %v1613 = vmul.f32 %v761, %v1461
        %v1614 = vmul.f32 %v776, %v1464
        %v1615 = vmul.f32 %v778, %v1467
        %v1616 = vmul.f32 %v793, %v1470
        %v1617 = vmul.f32 %v795, %v1473
        %v1618 = vmul.f32 %v810, %v1476
        %v1619 = vmul.f32 %v812, %v1479
        %v1620 = vmul.f32 %v827, %v1482
        %v1621 = vmul.f32 %v829, %v1485
        %v1622 = vmul.f32 %v844, %v1488
        %v1623 = vmul.f32 %v846, %v1491
        %v1624 = vmul.f32 %v861, %v1494
        %v1625 = vmul.f32 %v863, %v1497
        %v1626 = vmul.f32 %v878, %v1500
        %v1627 = vmul.f32 %v880, %v1503
        %v1628 = vmul.f32 %v895, %v1506
        %v1629 = vmul.f32 %v897, %v1509
        %v1630 = vmul.f32 %v912, %v1512
        %v1631 = vmul.f32 %v914, %v1515
        %v1632 = vmul.f32 %v929, %v1518
        %v1633 = vmul.f32 %v931, %v1521
        %v1634 = vmul.f32 %v708, %v1524
        %v1635 = vmul.f32 %v710, %v1527
        %v1636 = vmul.f32 %v725, %v1530
        %v1637 = vmul.f32 %v727, %v1533
        %v1638 = vmul.f32 %v742, %v1536
        %v1639 = vmul.f32 %v744, %v1539
        %v1640 = vmul.f32 %v759, %v1542
        %v1641 = vmul.f32 %v761, %v1545
        %v1642 = vmul.f32 %v776, %v1548
        %v1643 = vmul.f32 %v778, %v1551
        %v1644 = vmul.f32 %v793, %v1554
        %v1645 = vmul.f32 %v795, %v1557
        %v1646 = vmul.f32 %v810, %v1560
        %v1647 = vmul.f32 %v812, %v1563
        %v1648 = vmul.f32 %v827, %v1566
        %v1649 = vmul.f32 %v829, %v1569
        %v1650 = vmul.f32 %v844, %v1572
        %v1651 = vmul.f32 %v846, %v1575
        %v1652 = vmul.f32 %v861, %v1578
        %v1653 = vmul.f32 %v863, %v1581
        %v1654 = vmul.f32 %v878, %v1584
        %v1655 = vmul.f32 %v880, %v1587
        %v1656 = vmul.f32 %v895, %v1590
        %v1657 = vmul.f32 %v897, %v1593
        %v1658 = vmul.f32 %v912, %v1596
        %v1659 = vmul.f32 %v914, %v1599
        %v1660 = vmul.f32 %v929, %v1602
        %v1661 = vmul.f32 %v931, %v1605
        %v1662 = vmax.f32 %v1606, %v1634
        %v1663 = vmax.f32 %v1607, %v1635
        %v1664 = vmax.f32 %v1608, %v1636
        %v1665 = vmax.f32 %v1609, %v1637
        %v1666 = vmax.f32 %v1610, %v1638
        %v1667 = vmax.f32 %v1611, %v1639
        %v1668 = vmax.f32 %v1612, %v1640
        %v1669 = vmax.f32 %v1613, %v1641
        %v1670 = vmax.f32 %v1614, %v1642
        %v1671 = vmax.f32 %v1615, %v1643
        %v1672 = vmax.f32 %v1616, %v1644
        %v1673 = vmax.f32 %v1617, %v1645
        %v1674 = vmax.f32 %v1618, %v1646
        %v1675 = vmax.f32 %v1619, %v1647
        %v1676 = vmax.f32 %v1620, %v1648
        %v1677 = vmax.f32 %v1621, %v1649
        %v1678 = vmax.f32 %v1622, %v1650
        %v1679 = vmax.f32 %v1623, %v1651
        %v1680 = vmax.f32 %v1624, %v1652
        %v1681 = vmax.f32 %v1625, %v1653
        %v1682 = vmax.f32 %v1626, %v1654
        %v1683 = vmax.f32 %v1627, %v1655
        %v1684 = vmax.f32 %v1628, %v1656
        %v1685 = vmax.f32 %v1629, %v1657
        %v1686 = vmax.f32 %v1630, %v1658
        %v1687 = vmax.f32 %v1631, %v1659
        %v1688 = vmax.f32 %v1632, %v1660
        %v1689 = vmax.f32 %v1633, %v1661
        %1691 = vset.pattern.permute.xlu0 0
        %1692 = vperm.xlu0 %1691, %v960
        %v1693 = vpop.permute.xlu0 %1692
        %1696 = vset.pattern.permute.xlu0 0
        %1697 = vperm.xlu0 %1696, %v962
        %v1698 = vpop.permute.xlu0 %1697
        %1701 = vset.pattern.permute.xlu0 0
        %1702 = vperm.xlu0 %1701, %v977
        %v1703 = vpop.permute.xlu0 %1702
        %1706 = vset.pattern.permute.xlu0 0
        %1707 = vperm.xlu0 %1706, %v979
        %v1708 = vpop.permute.xlu0 %1707
        %1711 = vset.pattern.permute.xlu0 0
        %1712 = vperm.xlu0 %1711, %v994
        %v1713 = vpop.permute.xlu0 %1712
        %1716 = vset.pattern.permute.xlu0 0
        %1717 = vperm.xlu0 %1716, %v996
        %v1718 = vpop.permute.xlu0 %1717
        %1721 = vset.pattern.permute.xlu0 0
        %1722 = vperm.xlu0 %1721, %v1011
        %v1723 = vpop.permute.xlu0 %1722
        %1726 = vset.pattern.permute.xlu0 0
        %1727 = vperm.xlu0 %1726, %v1013
        %v1728 = vpop.permute.xlu0 %1727
        %1731 = vset.pattern.permute.xlu0 0
        %1732 = vperm.xlu0 %1731, %v1028
        %v1733 = vpop.permute.xlu0 %1732
        %1736 = vset.pattern.permute.xlu0 0
        %1737 = vperm.xlu0 %1736, %v1030
        %v1738 = vpop.permute.xlu0 %1737
        %1741 = vset.pattern.permute.xlu0 0
        %1742 = vperm.xlu0 %1741, %v1045
        %v1743 = vpop.permute.xlu0 %1742
        %1746 = vset.pattern.permute.xlu0 0
        %1747 = vperm.xlu0 %1746, %v1047
        %v1748 = vpop.permute.xlu0 %1747
        %1751 = vset.pattern.permute.xlu0 0
        %1752 = vperm.xlu0 %1751, %v1062
        %v1753 = vpop.permute.xlu0 %1752
        %1756 = vset.pattern.permute.xlu0 0
        %1757 = vperm.xlu0 %1756, %v1064
        %v1758 = vpop.permute.xlu0 %1757
        %1761 = vset.pattern.permute.xlu0 0
        %1762 = vperm.xlu0 %1761, %v1079
        %v1763 = vpop.permute.xlu0 %1762
        %1766 = vset.pattern.permute.xlu0 0
        %1767 = vperm.xlu0 %1766, %v1081
        %v1768 = vpop.permute.xlu0 %1767
        %1771 = vset.pattern.permute.xlu0 0
        %1772 = vperm.xlu0 %1771, %v1096
        %v1773 = vpop.permute.xlu0 %1772
        %1776 = vset.pattern.permute.xlu0 0
        %1777 = vperm.xlu0 %1776, %v1098
        %v1778 = vpop.permute.xlu0 %1777
        %1781 = vset.pattern.permute.xlu0 0
        %1782 = vperm.xlu0 %1781, %v1113
        %v1783 = vpop.permute.xlu0 %1782
        %1786 = vset.pattern.permute.xlu0 0
        %1787 = vperm.xlu0 %1786, %v1115
        %v1788 = vpop.permute.xlu0 %1787
        %1791 = vset.pattern.permute.xlu0 0
        %1792 = vperm.xlu0 %1791, %v1130
        %v1793 = vpop.permute.xlu0 %1792
        %1796 = vset.pattern.permute.xlu0 0
        %1797 = vperm.xlu0 %1796, %v1132
        %v1798 = vpop.permute.xlu0 %1797
        %1801 = vset.pattern.permute.xlu0 0
        %1802 = vperm.xlu0 %1801, %v1147
        %v1803 = vpop.permute.xlu0 %1802
        %1806 = vset.pattern.permute.xlu0 0
        %1807 = vperm.xlu0 %1806, %v1149
        %v1808 = vpop.permute.xlu0 %1807
        %1811 = vset.pattern.permute.xlu0 0
        %1812 = vperm.xlu0 %1811, %v1164
        %v1813 = vpop.permute.xlu0 %1812
        %1816 = vset.pattern.permute.xlu0 0
        %1817 = vperm.xlu0 %1816, %v1166
        %v1818 = vpop.permute.xlu0 %1817
        %1821 = vset.pattern.permute.xlu0 0
        %1822 = vperm.xlu0 %1821, %v1181
        %v1823 = vpop.permute.xlu0 %1822
        %1826 = vset.pattern.permute.xlu0 0
        %1827 = vperm.xlu0 %1826, %v1183
        %v1828 = vpop.permute.xlu0 %1827
        %v1830 = vmul.f32 %v708, %v1693
        %v1831 = vmul.f32 %v710, %v1698
        %v1832 = vmul.f32 %v725, %v1703
        %v1833 = vmul.f32 %v727, %v1708
        %v1834 = vmul.f32 %v742, %v1713
        %v1835 = vmul.f32 %v744, %v1718
        %v1836 = vmul.f32 %v759, %v1723
        %v1837 = vmul.f32 %v761, %v1728
        %v1838 = vmul.f32 %v776, %v1733
        %v1839 = vmul.f32 %v778, %v1738
        %v1840 = vmul.f32 %v793, %v1743
        %v1841 = vmul.f32 %v795, %v1748
        %v1842 = vmul.f32 %v810, %v1753
        %v1843 = vmul.f32 %v812, %v1758
        %v1844 = vmul.f32 %v827, %v1763
        %v1845 = vmul.f32 %v829, %v1768
        %v1846 = vmul.f32 %v844, %v1773
        %v1847 = vmul.f32 %v846, %v1778
        %v1848 = vmul.f32 %v861, %v1783
        %v1849 = vmul.f32 %v863, %v1788
        %v1850 = vmul.f32 %v878, %v1793
        %v1851 = vmul.f32 %v880, %v1798
        %v1852 = vmul.f32 %v895, %v1803
        %v1853 = vmul.f32 %v897, %v1808
        %v1854 = vmul.f32 %v912, %v1813
        %v1855 = vmul.f32 %v914, %v1818
        %v1856 = vmul.f32 %v929, %v1823
        %v1857 = vmul.f32 %v931, %v1828
        %v1858 = vsub.f32 %v1830, %v1662
        %v1859 = vsub.f32 %v1831, %v1663
        %v1860 = vsub.f32 %v1832, %v1664
        %v1861 = vsub.f32 %v1833, %v1665
        %v1862 = vsub.f32 %v1834, %v1666
        %v1863 = vsub.f32 %v1835, %v1667
        %v1864 = vsub.f32 %v1836, %v1668
        %v1865 = vsub.f32 %v1837, %v1669
        %v1866 = vsub.f32 %v1838, %v1670
        %v1867 = vsub.f32 %v1839, %v1671
        %v1868 = vsub.f32 %v1840, %v1672
        %v1869 = vsub.f32 %v1841, %v1673
        %v1870 = vsub.f32 %v1842, %v1674
        %v1871 = vsub.f32 %v1843, %v1675
        %v1872 = vsub.f32 %v1844, %v1676
        %v1873 = vsub.f32 %v1845, %v1677
        %v1874 = vsub.f32 %v1846, %v1678
        %v1875 = vsub.f32 %v1847, %v1679
        %v1876 = vsub.f32 %v1848, %v1680
        %v1877 = vsub.f32 %v1849, %v1681
        %v1878 = vsub.f32 %v1850, %v1682
        %v1879 = vsub.f32 %v1851, %v1683
        %v1880 = vsub.f32 %v1852, %v1684
        %v1881 = vsub.f32 %v1853, %v1685
        %v1882 = vsub.f32 %v1854, %v1686
        %v1883 = vsub.f32 %v1855, %v1687
        %v1884 = vsub.f32 %v1856, %v1688
        %v1885 = vsub.f32 %v1857, %v1689
        %v1886 = vmul.f32 %v1858, 1.442695
        %v1887 = vpow.pop %v1886
        %v1888 = vmul.f32 %v1859, 1.442695
        %v1889 = vpow.pop %v1888
        %v1890 = vmul.f32 %v1860, 1.442695
        %v1891 = vpow.pop %v1890
        %v1892 = vmul.f32 %v1861, 1.442695
        %v1893 = vpow.pop %v1892
        %v1894 = vmul.f32 %v1862, 1.442695
        %v1895 = vpow.pop %v1894
        %v1896 = vmul.f32 %v1863, 1.442695
        %v1897 = vpow.pop %v1896
        %v1898 = vmul.f32 %v1864, 1.442695
        %v1899 = vpow.pop %v1898
        %v1900 = vmul.f32 %v1865, 1.442695
        %v1901 = vpow.pop %v1900
        %v1902 = vmul.f32 %v1866, 1.442695
        %v1903 = vpow.pop %v1902
        %v1904 = vmul.f32 %v1867, 1.442695
        %v1905 = vpow.pop %v1904
        %v1906 = vmul.f32 %v1868, 1.442695
        %v1907 = vpow.pop %v1906
        %v1908 = vmul.f32 %v1869, 1.442695
        %v1909 = vpow.pop %v1908
        %v1910 = vmul.f32 %v1870, 1.442695
        %v1911 = vpow.pop %v1910
        %v1912 = vmul.f32 %v1871, 1.442695
        %v1913 = vpow.pop %v1912
        %v1914 = vmul.f32 %v1872, 1.442695
        %v1915 = vpow.pop %v1914
        %v1916 = vmul.f32 %v1873, 1.442695
        %v1917 = vpow.pop %v1916
        %v1918 = vmul.f32 %v1874, 1.442695
        %v1919 = vpow.pop %v1918
        %v1920 = vmul.f32 %v1875, 1.442695
        %v1921 = vpow.pop %v1920
        %v1922 = vmul.f32 %v1876, 1.442695
        %v1923 = vpow.pop %v1922
        %v1924 = vmul.f32 %v1877, 1.442695
        %v1925 = vpow.pop %v1924
        %v1926 = vmul.f32 %v1878, 1.442695
        %v1927 = vpow.pop %v1926
        %v1928 = vmul.f32 %v1879, 1.442695
        %v1929 = vpow.pop %v1928
        %v1930 = vmul.f32 %v1880, 1.442695
        %v1931 = vpow.pop %v1930
        %v1932 = vmul.f32 %v1881, 1.442695
        %v1933 = vpow.pop %v1932
        %v1934 = vmul.f32 %v1882, 1.442695
        %v1935 = vpow.pop %v1934
        %v1936 = vmul.f32 %v1883, 1.442695
        %v1937 = vpow.pop %v1936
        %v1938 = vmul.f32 %v1884, 1.442695
        %v1939 = vpow.pop %v1938
        %v1940 = vmul.f32 %v1885, 1.442695
        %v1941 = vpow.pop %v1940
        %v1942 = vadd.f32 %v1887, 0.0
        %v1943 = vadd.f32 %v1889, 0.0
        %v1944 = vadd.f32 %v1891, 0.0
        %v1945 = vadd.f32 %v1893, 0.0
        %v1946 = vadd.f32 %v1895, 0.0
        %v1947 = vadd.f32 %v1897, 0.0
        %v1948 = vadd.f32 %v1899, 0.0
        %v1949 = vadd.f32 %v1901, 0.0
        %v1950 = vadd.f32 %v1903, 0.0
        %v1951 = vadd.f32 %v1905, 0.0
        %v1952 = vadd.f32 %v1907, 0.0
        %v1953 = vadd.f32 %v1909, 0.0
        %v1954 = vadd.f32 %v1911, 0.0
        %v1955 = vadd.f32 %v1913, 0.0
        %v1956 = vadd.f32 %v1915, 0.0
        %v1957 = vadd.f32 %v1917, 0.0
        %v1958 = vadd.f32 %v1919, 0.0
        %v1959 = vadd.f32 %v1921, 0.0
        %v1960 = vadd.f32 %v1923, 0.0
        %v1961 = vadd.f32 %v1925, 0.0
        %v1962 = vadd.f32 %v1927, 0.0
        %v1963 = vadd.f32 %v1929, 0.0
        %v1964 = vadd.f32 %v1931, 0.0
        %v1965 = vadd.f32 %v1933, 0.0
        %v1966 = vadd.f32 %v1935, 0.0
        %v1967 = vadd.f32 %v1937, 0.0
        %v1968 = vadd.f32 %v1939, 0.0
        %v1969 = vadd.f32 %v1941, 0.0
        %1971 = vset.pattern.permute.xlu0 0
        %1972 = vperm.xlu0 %1971, %v1212
        %v1973 = vpop.permute.xlu0 %1972
        %1976 = vset.pattern.permute.xlu0 0
        %1977 = vperm.xlu0 %1976, %v1214
        %v1978 = vpop.permute.xlu0 %1977
        %1981 = vset.pattern.permute.xlu0 0
        %1982 = vperm.xlu0 %1981, %v1229
        %v1983 = vpop.permute.xlu0 %1982
        %1986 = vset.pattern.permute.xlu0 0
        %1987 = vperm.xlu0 %1986, %v1231
        %v1988 = vpop.permute.xlu0 %1987
        %1991 = vset.pattern.permute.xlu0 0
        %1992 = vperm.xlu0 %1991, %v1246
        %v1993 = vpop.permute.xlu0 %1992
        %1996 = vset.pattern.permute.xlu0 0
        %1997 = vperm.xlu0 %1996, %v1248
        %v1998 = vpop.permute.xlu0 %1997
        %2001 = vset.pattern.permute.xlu0 0
        %2002 = vperm.xlu0 %2001, %v1263
        %v2003 = vpop.permute.xlu0 %2002
        %2006 = vset.pattern.permute.xlu0 0
        %2007 = vperm.xlu0 %2006, %v1265
        %v2008 = vpop.permute.xlu0 %2007
        %2011 = vset.pattern.permute.xlu0 0
        %2012 = vperm.xlu0 %2011, %v1280
        %v2013 = vpop.permute.xlu0 %2012
        %2016 = vset.pattern.permute.xlu0 0
        %2017 = vperm.xlu0 %2016, %v1282
        %v2018 = vpop.permute.xlu0 %2017
        %2021 = vset.pattern.permute.xlu0 0
        %2022 = vperm.xlu0 %2021, %v1297
        %v2023 = vpop.permute.xlu0 %2022
        %2026 = vset.pattern.permute.xlu0 0
        %2027 = vperm.xlu0 %2026, %v1299
        %v2028 = vpop.permute.xlu0 %2027
        %2031 = vset.pattern.permute.xlu0 0
        %2032 = vperm.xlu0 %2031, %v1314
        %v2033 = vpop.permute.xlu0 %2032
        %2036 = vset.pattern.permute.xlu0 0
        %2037 = vperm.xlu0 %2036, %v1316
        %v2038 = vpop.permute.xlu0 %2037
        %2041 = vset.pattern.permute.xlu0 0
        %2042 = vperm.xlu0 %2041, %v1331
        %v2043 = vpop.permute.xlu0 %2042
        %2046 = vset.pattern.permute.xlu0 0
        %2047 = vperm.xlu0 %2046, %v1333
        %v2048 = vpop.permute.xlu0 %2047
        %2051 = vset.pattern.permute.xlu0 0
        %2052 = vperm.xlu0 %2051, %v1348
        %v2053 = vpop.permute.xlu0 %2052
        %2056 = vset.pattern.permute.xlu0 0
        %2057 = vperm.xlu0 %2056, %v1350
        %v2058 = vpop.permute.xlu0 %2057
        %2061 = vset.pattern.permute.xlu0 0
        %2062 = vperm.xlu0 %2061, %v1365
        %v2063 = vpop.permute.xlu0 %2062
        %2066 = vset.pattern.permute.xlu0 0
        %2067 = vperm.xlu0 %2066, %v1367
        %v2068 = vpop.permute.xlu0 %2067
        %2071 = vset.pattern.permute.xlu0 0
        %2072 = vperm.xlu0 %2071, %v1382
        %v2073 = vpop.permute.xlu0 %2072
        %2076 = vset.pattern.permute.xlu0 0
        %2077 = vperm.xlu0 %2076, %v1384
        %v2078 = vpop.permute.xlu0 %2077
        %2081 = vset.pattern.permute.xlu0 0
        %2082 = vperm.xlu0 %2081, %v1399
        %v2083 = vpop.permute.xlu0 %2082
        %2086 = vset.pattern.permute.xlu0 0
        %2087 = vperm.xlu0 %2086, %v1401
        %v2088 = vpop.permute.xlu0 %2087
        %2091 = vset.pattern.permute.xlu0 0
        %2092 = vperm.xlu0 %2091, %v1416
        %v2093 = vpop.permute.xlu0 %2092
        %2096 = vset.pattern.permute.xlu0 0
        %2097 = vperm.xlu0 %2096, %v1418
        %v2098 = vpop.permute.xlu0 %2097
        %2101 = vset.pattern.permute.xlu0 0
        %2102 = vperm.xlu0 %2101, %v1433
        %v2103 = vpop.permute.xlu0 %2102
        %2106 = vset.pattern.permute.xlu0 0
        %2107 = vperm.xlu0 %2106, %v1435
        %v2108 = vpop.permute.xlu0 %2107
        %v2110 = vmul.f32 %v1887, %v1973
        %v2111 = vmul.f32 %v1889, %v1978
        %v2112 = vmul.f32 %v1891, %v1983
        %v2113 = vmul.f32 %v1893, %v1988
        %v2114 = vmul.f32 %v1895, %v1993
        %v2115 = vmul.f32 %v1897, %v1998
        %v2116 = vmul.f32 %v1899, %v2003
        %v2117 = vmul.f32 %v1901, %v2008
        %v2118 = vmul.f32 %v1903, %v2013
        %v2119 = vmul.f32 %v1905, %v2018
        %v2120 = vmul.f32 %v1907, %v2023
        %v2121 = vmul.f32 %v1909, %v2028
        %v2122 = vmul.f32 %v1911, %v2033
        %v2123 = vmul.f32 %v1913, %v2038
        %v2124 = vmul.f32 %v1915, %v2043
        %v2125 = vmul.f32 %v1917, %v2048
        %v2126 = vmul.f32 %v1919, %v2053
        %v2127 = vmul.f32 %v1921, %v2058
        %v2128 = vmul.f32 %v1923, %v2063
        %v2129 = vmul.f32 %v1925, %v2068
        %v2130 = vmul.f32 %v1927, %v2073
        %v2131 = vmul.f32 %v1929, %v2078
        %v2132 = vmul.f32 %v1931, %v2083
        %v2133 = vmul.f32 %v1933, %v2088
        %v2134 = vmul.f32 %v1935, %v2093
        %v2135 = vmul.f32 %v1937, %v2098
        %v2136 = vmul.f32 %v1939, %v2103
        %v2137 = vmul.f32 %v1941, %v2108
        %v2138 = vadd.f32 %v2110, 0.0
        %v2139 = vadd.f32 %v2111, 0.0
        %v2140 = vadd.f32 %v2112, 0.0
        %v2141 = vadd.f32 %v2113, 0.0
        %v2142 = vadd.f32 %v2114, 0.0
        %v2143 = vadd.f32 %v2115, 0.0
        %v2144 = vadd.f32 %v2116, 0.0
        %v2145 = vadd.f32 %v2117, 0.0
        %v2146 = vadd.f32 %v2118, 0.0
        %v2147 = vadd.f32 %v2119, 0.0
        %v2148 = vadd.f32 %v2120, 0.0
        %v2149 = vadd.f32 %v2121, 0.0
        %v2150 = vadd.f32 %v2122, 0.0
        %v2151 = vadd.f32 %v2123, 0.0
        %v2152 = vadd.f32 %v2124, 0.0
        %v2153 = vadd.f32 %v2125, 0.0
        %v2154 = vadd.f32 %v2126, 0.0
        %v2155 = vadd.f32 %v2127, 0.0
        %v2156 = vadd.f32 %v2128, 0.0
        %v2157 = vadd.f32 %v2129, 0.0
        %v2158 = vadd.f32 %v2130, 0.0
        %v2159 = vadd.f32 %v2131, 0.0
        %v2160 = vadd.f32 %v2132, 0.0
        %v2161 = vadd.f32 %v2133, 0.0
        %v2162 = vadd.f32 %v2134, 0.0
        %v2163 = vadd.f32 %v2135, 0.0
        %v2164 = vadd.f32 %v2136, 0.0
        %v2165 = vadd.f32 %v2137, 0.0
        %2166 = vset.pattern.permute.xlu0 1
        %2167 = vperm.xlu0 %2166, %v960
        %v2168 = vpop.permute.xlu0 %2167
        %2170 = vset.pattern.permute.xlu0 1
        %2171 = vperm.xlu0 %2170, %v962
        %v2172 = vpop.permute.xlu0 %2171
        %2174 = vset.pattern.permute.xlu0 1
        %2175 = vperm.xlu0 %2174, %v977
        %v2176 = vpop.permute.xlu0 %2175
        %2178 = vset.pattern.permute.xlu0 1
        %2179 = vperm.xlu0 %2178, %v979
        %v2180 = vpop.permute.xlu0 %2179
        %2182 = vset.pattern.permute.xlu0 1
        %2183 = vperm.xlu0 %2182, %v994
        %v2184 = vpop.permute.xlu0 %2183
        %2186 = vset.pattern.permute.xlu0 1
        %2187 = vperm.xlu0 %2186, %v996
        %v2188 = vpop.permute.xlu0 %2187
        %2190 = vset.pattern.permute.xlu0 1
        %2191 = vperm.xlu0 %2190, %v1011
        %v2192 = vpop.permute.xlu0 %2191
        %2194 = vset.pattern.permute.xlu0 1
        %2195 = vperm.xlu0 %2194, %v1013
        %v2196 = vpop.permute.xlu0 %2195
        %2198 = vset.pattern.permute.xlu0 1
        %2199 = vperm.xlu0 %2198, %v1028
        %v2200 = vpop.permute.xlu0 %2199
        %2202 = vset.pattern.permute.xlu0 1
        %2203 = vperm.xlu0 %2202, %v1030
        %v2204 = vpop.permute.xlu0 %2203
        %2206 = vset.pattern.permute.xlu0 1
        %2207 = vperm.xlu0 %2206, %v1045
        %v2208 = vpop.permute.xlu0 %2207
        %2210 = vset.pattern.permute.xlu0 1
        %2211 = vperm.xlu0 %2210, %v1047
        %v2212 = vpop.permute.xlu0 %2211
        %2214 = vset.pattern.permute.xlu0 1
        %2215 = vperm.xlu0 %2214, %v1062
        %v2216 = vpop.permute.xlu0 %2215
        %2218 = vset.pattern.permute.xlu0 1
        %2219 = vperm.xlu0 %2218, %v1064
        %v2220 = vpop.permute.xlu0 %2219
        %2222 = vset.pattern.permute.xlu0 1
        %2223 = vperm.xlu0 %2222, %v1079
        %v2224 = vpop.permute.xlu0 %2223
        %2226 = vset.pattern.permute.xlu0 1
        %2227 = vperm.xlu0 %2226, %v1081
        %v2228 = vpop.permute.xlu0 %2227
        %2230 = vset.pattern.permute.xlu0 1
        %2231 = vperm.xlu0 %2230, %v1096
        %v2232 = vpop.permute.xlu0 %2231
        %2234 = vset.pattern.permute.xlu0 1
        %2235 = vperm.xlu0 %2234, %v1098
        %v2236 = vpop.permute.xlu0 %2235
        %2238 = vset.pattern.permute.xlu0 1
        %2239 = vperm.xlu0 %2238, %v1113
        %v2240 = vpop.permute.xlu0 %2239
        %2242 = vset.pattern.permute.xlu0 1
        %2243 = vperm.xlu0 %2242, %v1115
        %v2244 = vpop.permute.xlu0 %2243
        %2246 = vset.pattern.permute.xlu0 1
        %2247 = vperm.xlu0 %2246, %v1130
        %v2248 = vpop.permute.xlu0 %2247
        %2250 = vset.pattern.permute.xlu0 1
        %2251 = vperm.xlu0 %2250, %v1132
        %v2252 = vpop.permute.xlu0 %2251
        %2254 = vset.pattern.permute.xlu0 1
        %2255 = vperm.xlu0 %2254, %v1147
        %v2256 = vpop.permute.xlu0 %2255
        %2258 = vset.pattern.permute.xlu0 1
        %2259 = vperm.xlu0 %2258, %v1149
        %v2260 = vpop.permute.xlu0 %2259
        %2262 = vset.pattern.permute.xlu0 1
        %2263 = vperm.xlu0 %2262, %v1164
        %v2264 = vpop.permute.xlu0 %2263
        %2266 = vset.pattern.permute.xlu0 1
        %2267 = vperm.xlu0 %2266, %v1166
        %v2268 = vpop.permute.xlu0 %2267
        %2270 = vset.pattern.permute.xlu0 1
        %2271 = vperm.xlu0 %2270, %v1181
        %v2272 = vpop.permute.xlu0 %2271
        %2274 = vset.pattern.permute.xlu0 1
        %2275 = vperm.xlu0 %2274, %v1183
        %v2276 = vpop.permute.xlu0 %2275
        %v2278 = vmul.f32 %v708, %v2168
        %v2279 = vmul.f32 %v710, %v2172
        %v2280 = vmul.f32 %v725, %v2176
        %v2281 = vmul.f32 %v727, %v2180
        %v2282 = vmul.f32 %v742, %v2184
        %v2283 = vmul.f32 %v744, %v2188
        %v2284 = vmul.f32 %v759, %v2192
        %v2285 = vmul.f32 %v761, %v2196
        %v2286 = vmul.f32 %v776, %v2200
        %v2287 = vmul.f32 %v778, %v2204
        %v2288 = vmul.f32 %v793, %v2208
        %v2289 = vmul.f32 %v795, %v2212
        %v2290 = vmul.f32 %v810, %v2216
        %v2291 = vmul.f32 %v812, %v2220
        %v2292 = vmul.f32 %v827, %v2224
        %v2293 = vmul.f32 %v829, %v2228
        %v2294 = vmul.f32 %v844, %v2232
        %v2295 = vmul.f32 %v846, %v2236
        %v2296 = vmul.f32 %v861, %v2240
        %v2297 = vmul.f32 %v863, %v2244
        %v2298 = vmul.f32 %v878, %v2248
        %v2299 = vmul.f32 %v880, %v2252
        %v2300 = vmul.f32 %v895, %v2256
        %v2301 = vmul.f32 %v897, %v2260
        %v2302 = vmul.f32 %v912, %v2264
        %v2303 = vmul.f32 %v914, %v2268
        %v2304 = vmul.f32 %v929, %v2272
        %v2305 = vmul.f32 %v931, %v2276
        %v2306 = vsub.f32 %v2278, %v1662
        %v2307 = vsub.f32 %v2279, %v1663
        %v2308 = vsub.f32 %v2280, %v1664
        %v2309 = vsub.f32 %v2281, %v1665
        %v2310 = vsub.f32 %v2282, %v1666
        %v2311 = vsub.f32 %v2283, %v1667
        %v2312 = vsub.f32 %v2284, %v1668
        %v2313 = vsub.f32 %v2285, %v1669
        %v2314 = vsub.f32 %v2286, %v1670
        %v2315 = vsub.f32 %v2287, %v1671
        %v2316 = vsub.f32 %v2288, %v1672
        %v2317 = vsub.f32 %v2289, %v1673
        %v2318 = vsub.f32 %v2290, %v1674
        %v2319 = vsub.f32 %v2291, %v1675
        %v2320 = vsub.f32 %v2292, %v1676
        %v2321 = vsub.f32 %v2293, %v1677
        %v2322 = vsub.f32 %v2294, %v1678
        %v2323 = vsub.f32 %v2295, %v1679
        %v2324 = vsub.f32 %v2296, %v1680
        %v2325 = vsub.f32 %v2297, %v1681
        %v2326 = vsub.f32 %v2298, %v1682
        %v2327 = vsub.f32 %v2299, %v1683
        %v2328 = vsub.f32 %v2300, %v1684
        %v2329 = vsub.f32 %v2301, %v1685
        %v2330 = vsub.f32 %v2302, %v1686
        %v2331 = vsub.f32 %v2303, %v1687
        %v2332 = vsub.f32 %v2304, %v1688
        %v2333 = vsub.f32 %v2305, %v1689
        %v2334 = vmul.f32 %v2306, 1.442695
        %v2335 = vpow.pop %v2334
        %v2336 = vmul.f32 %v2307, 1.442695
        %v2337 = vpow.pop %v2336
        %v2338 = vmul.f32 %v2308, 1.442695
        %v2339 = vpow.pop %v2338
        %v2340 = vmul.f32 %v2309, 1.442695
        %v2341 = vpow.pop %v2340
        %v2342 = vmul.f32 %v2310, 1.442695
        %v2343 = vpow.pop %v2342
        %v2344 = vmul.f32 %v2311, 1.442695
        %v2345 = vpow.pop %v2344
        %v2346 = vmul.f32 %v2312, 1.442695
        %v2347 = vpow.pop %v2346
        %v2348 = vmul.f32 %v2313, 1.442695
        %v2349 = vpow.pop %v2348
        %v2350 = vmul.f32 %v2314, 1.442695
        %v2351 = vpow.pop %v2350
        %v2352 = vmul.f32 %v2315, 1.442695
        %v2353 = vpow.pop %v2352
        %v2354 = vmul.f32 %v2316, 1.442695
        %v2355 = vpow.pop %v2354
        %v2356 = vmul.f32 %v2317, 1.442695
        %v2357 = vpow.pop %v2356
        %v2358 = vmul.f32 %v2318, 1.442695
        %v2359 = vpow.pop %v2358
        %v2360 = vmul.f32 %v2319, 1.442695
        %v2361 = vpow.pop %v2360
        %v2362 = vmul.f32 %v2320, 1.442695
        %v2363 = vpow.pop %v2362
        %v2364 = vmul.f32 %v2321, 1.442695
        %v2365 = vpow.pop %v2364
        %v2366 = vmul.f32 %v2322, 1.442695
        %v2367 = vpow.pop %v2366
        %v2368 = vmul.f32 %v2323, 1.442695
        %v2369 = vpow.pop %v2368
        %v2370 = vmul.f32 %v2324, 1.442695
        %v2371 = vpow.pop %v2370
        %v2372 = vmul.f32 %v2325, 1.442695
        %v2373 = vpow.pop %v2372
        %v2374 = vmul.f32 %v2326, 1.442695
        %v2375 = vpow.pop %v2374
        %v2376 = vmul.f32 %v2327, 1.442695
        %v2377 = vpow.pop %v2376
        %v2378 = vmul.f32 %v2328, 1.442695
        %v2379 = vpow.pop %v2378
        %v2380 = vmul.f32 %v2329, 1.442695
        %v2381 = vpow.pop %v2380
        %v2382 = vmul.f32 %v2330, 1.442695
        %v2383 = vpow.pop %v2382
        %v2384 = vmul.f32 %v2331, 1.442695
        %v2385 = vpow.pop %v2384
        %v2386 = vmul.f32 %v2332, 1.442695
        %v2387 = vpow.pop %v2386
        %v2388 = vmul.f32 %v2333, 1.442695
        %v2389 = vpow.pop %v2388
        %v2390 = vadd.f32 %v1942, %v2335
        %v2391 = vadd.f32 %v1943, %v2337
        %v2392 = vadd.f32 %v1944, %v2339
        %v2393 = vadd.f32 %v1945, %v2341
        %v2394 = vadd.f32 %v1946, %v2343
        %v2395 = vadd.f32 %v1947, %v2345
        %v2396 = vadd.f32 %v1948, %v2347
        %v2397 = vadd.f32 %v1949, %v2349
        %v2398 = vadd.f32 %v1950, %v2351
        %v2399 = vadd.f32 %v1951, %v2353
        %v2400 = vadd.f32 %v1952, %v2355
        %v2401 = vadd.f32 %v1953, %v2357
        %v2402 = vadd.f32 %v1954, %v2359
        %v2403 = vadd.f32 %v1955, %v2361
        %v2404 = vadd.f32 %v1956, %v2363
        %v2405 = vadd.f32 %v1957, %v2365
        %v2406 = vadd.f32 %v1958, %v2367
        %v2407 = vadd.f32 %v1959, %v2369
        %v2408 = vadd.f32 %v1960, %v2371
        %v2409 = vadd.f32 %v1961, %v2373
        %v2410 = vadd.f32 %v1962, %v2375
        %v2411 = vadd.f32 %v1963, %v2377
        %v2412 = vadd.f32 %v1964, %v2379
        %v2413 = vadd.f32 %v1965, %v2381
        %v2414 = vadd.f32 %v1966, %v2383
        %v2415 = vadd.f32 %v1967, %v2385
        %v2416 = vadd.f32 %v1968, %v2387
        %v2417 = vadd.f32 %v1969, %v2389
        %2418 = vset.pattern.permute.xlu0 1
        %2419 = vperm.xlu0 %2418, %v1212
        %v2420 = vpop.permute.xlu0 %2419
        %2422 = vset.pattern.permute.xlu0 1
        %2423 = vperm.xlu0 %2422, %v1214
        %v2424 = vpop.permute.xlu0 %2423
        %2426 = vset.pattern.permute.xlu0 1
        %2427 = vperm.xlu0 %2426, %v1229
        %v2428 = vpop.permute.xlu0 %2427
        %2430 = vset.pattern.permute.xlu0 1
        %2431 = vperm.xlu0 %2430, %v1231
        %v2432 = vpop.permute.xlu0 %2431
        %2434 = vset.pattern.permute.xlu0 1
        %2435 = vperm.xlu0 %2434, %v1246
        %v2436 = vpop.permute.xlu0 %2435
        %2438 = vset.pattern.permute.xlu0 1
        %2439 = vperm.xlu0 %2438, %v1248
        %v2440 = vpop.permute.xlu0 %2439
        %2442 = vset.pattern.permute.xlu0 1
        %2443 = vperm.xlu0 %2442, %v1263
        %v2444 = vpop.permute.xlu0 %2443
        %2446 = vset.pattern.permute.xlu0 1
        %2447 = vperm.xlu0 %2446, %v1265
        %v2448 = vpop.permute.xlu0 %2447
        %2450 = vset.pattern.permute.xlu0 1
        %2451 = vperm.xlu0 %2450, %v1280
        %v2452 = vpop.permute.xlu0 %2451
        %2454 = vset.pattern.permute.xlu0 1
        %2455 = vperm.xlu0 %2454, %v1282
        %v2456 = vpop.permute.xlu0 %2455
        %2458 = vset.pattern.permute.xlu0 1
        %2459 = vperm.xlu0 %2458, %v1297
        %v2460 = vpop.permute.xlu0 %2459
        %2462 = vset.pattern.permute.xlu0 1
        %2463 = vperm.xlu0 %2462, %v1299
        %v2464 = vpop.permute.xlu0 %2463
        %2466 = vset.pattern.permute.xlu0 1
        %2467 = vperm.xlu0 %2466, %v1314
        %v2468 = vpop.permute.xlu0 %2467
        %2470 = vset.pattern.permute.xlu0 1
        %2471 = vperm.xlu0 %2470, %v1316
        %v2472 = vpop.permute.xlu0 %2471
        %2474 = vset.pattern.permute.xlu0 1
        %2475 = vperm.xlu0 %2474, %v1331
        %v2476 = vpop.permute.xlu0 %2475
        %2478 = vset.pattern.permute.xlu0 1
        %2479 = vperm.xlu0 %2478, %v1333
        %v2480 = vpop.permute.xlu0 %2479
        %2482 = vset.pattern.permute.xlu0 1
        %2483 = vperm.xlu0 %2482, %v1348
        %v2484 = vpop.permute.xlu0 %2483
        %2486 = vset.pattern.permute.xlu0 1
        %2487 = vperm.xlu0 %2486, %v1350
        %v2488 = vpop.permute.xlu0 %2487
        %2490 = vset.pattern.permute.xlu0 1
        %2491 = vperm.xlu0 %2490, %v1365
        %v2492 = vpop.permute.xlu0 %2491
        %2494 = vset.pattern.permute.xlu0 1
        %2495 = vperm.xlu0 %2494, %v1367
        %v2496 = vpop.permute.xlu0 %2495
        %2498 = vset.pattern.permute.xlu0 1
        %2499 = vperm.xlu0 %2498, %v1382
        %v2500 = vpop.permute.xlu0 %2499
        %2502 = vset.pattern.permute.xlu0 1
        %2503 = vperm.xlu0 %2502, %v1384
        %v2504 = vpop.permute.xlu0 %2503
        %2506 = vset.pattern.permute.xlu0 1
        %2507 = vperm.xlu0 %2506, %v1399
        %v2508 = vpop.permute.xlu0 %2507
        %2510 = vset.pattern.permute.xlu0 1
        %2511 = vperm.xlu0 %2510, %v1401
        %v2512 = vpop.permute.xlu0 %2511
        %2514 = vset.pattern.permute.xlu0 1
        %2515 = vperm.xlu0 %2514, %v1416
        %v2516 = vpop.permute.xlu0 %2515
        %2518 = vset.pattern.permute.xlu0 1
        %2519 = vperm.xlu0 %2518, %v1418
        %v2520 = vpop.permute.xlu0 %2519
        %2522 = vset.pattern.permute.xlu0 1
        %2523 = vperm.xlu0 %2522, %v1433
        %v2524 = vpop.permute.xlu0 %2523
        %2526 = vset.pattern.permute.xlu0 1
        %2527 = vperm.xlu0 %2526, %v1435
        %v2528 = vpop.permute.xlu0 %2527
        %v2530 = vmul.f32 %v2335, %v2420
        %v2531 = vmul.f32 %v2337, %v2424
        %v2532 = vmul.f32 %v2339, %v2428
        %v2533 = vmul.f32 %v2341, %v2432
        %v2534 = vmul.f32 %v2343, %v2436
        %v2535 = vmul.f32 %v2345, %v2440
        %v2536 = vmul.f32 %v2347, %v2444
        %v2537 = vmul.f32 %v2349, %v2448
        %v2538 = vmul.f32 %v2351, %v2452
        %v2539 = vmul.f32 %v2353, %v2456
        %v2540 = vmul.f32 %v2355, %v2460
        %v2541 = vmul.f32 %v2357, %v2464
        %v2542 = vmul.f32 %v2359, %v2468
        %v2543 = vmul.f32 %v2361, %v2472
        %v2544 = vmul.f32 %v2363, %v2476
        %v2545 = vmul.f32 %v2365, %v2480
        %v2546 = vmul.f32 %v2367, %v2484
        %v2547 = vmul.f32 %v2369, %v2488
        %v2548 = vmul.f32 %v2371, %v2492
        %v2549 = vmul.f32 %v2373, %v2496
        %v2550 = vmul.f32 %v2375, %v2500
        %v2551 = vmul.f32 %v2377, %v2504
        %v2552 = vmul.f32 %v2379, %v2508
        %v2553 = vmul.f32 %v2381, %v2512
        %v2554 = vmul.f32 %v2383, %v2516
        %v2555 = vmul.f32 %v2385, %v2520
        %v2556 = vmul.f32 %v2387, %v2524
        %v2557 = vmul.f32 %v2389, %v2528
        %v2558 = vadd.f32 %v2138, %v2530
        %v2559 = vadd.f32 %v2139, %v2531
        %v2560 = vadd.f32 %v2140, %v2532
        %v2561 = vadd.f32 %v2141, %v2533
        %v2562 = vadd.f32 %v2142, %v2534
        %v2563 = vadd.f32 %v2143, %v2535
        %v2564 = vadd.f32 %v2144, %v2536
        %v2565 = vadd.f32 %v2145, %v2537
        %v2566 = vadd.f32 %v2146, %v2538
        %v2567 = vadd.f32 %v2147, %v2539
        %v2568 = vadd.f32 %v2148, %v2540
        %v2569 = vadd.f32 %v2149, %v2541
        %v2570 = vadd.f32 %v2150, %v2542
        %v2571 = vadd.f32 %v2151, %v2543
        %v2572 = vadd.f32 %v2152, %v2544
        %v2573 = vadd.f32 %v2153, %v2545
        %v2574 = vadd.f32 %v2154, %v2546
        %v2575 = vadd.f32 %v2155, %v2547
        %v2576 = vadd.f32 %v2156, %v2548
        %v2577 = vadd.f32 %v2157, %v2549
        %v2578 = vadd.f32 %v2158, %v2550
        %v2579 = vadd.f32 %v2159, %v2551
        %v2580 = vadd.f32 %v2160, %v2552
        %v2581 = vadd.f32 %v2161, %v2553
        %v2582 = vadd.f32 %v2162, %v2554
        %v2583 = vadd.f32 %v2163, %v2555
        %v2584 = vadd.f32 %v2164, %v2556
        %v2585 = vadd.f32 %v2165, %v2557
        %2586 = vset.pattern.permute.xlu0 2
        %2587 = vperm.xlu0 %2586, %v960
        %v2588 = vpop.permute.xlu0 %2587
        %2590 = vset.pattern.permute.xlu0 2
        %2591 = vperm.xlu0 %2590, %v962
        %v2592 = vpop.permute.xlu0 %2591
        %2594 = vset.pattern.permute.xlu0 2
        %2595 = vperm.xlu0 %2594, %v977
        %v2596 = vpop.permute.xlu0 %2595
        %2598 = vset.pattern.permute.xlu0 2
        %2599 = vperm.xlu0 %2598, %v979
        %v2600 = vpop.permute.xlu0 %2599
        %2602 = vset.pattern.permute.xlu0 2
        %2603 = vperm.xlu0 %2602, %v994
        %v2604 = vpop.permute.xlu0 %2603
        %2606 = vset.pattern.permute.xlu0 2
        %2607 = vperm.xlu0 %2606, %v996
        %v2608 = vpop.permute.xlu0 %2607
        %2610 = vset.pattern.permute.xlu0 2
        %2611 = vperm.xlu0 %2610, %v1011
        %v2612 = vpop.permute.xlu0 %2611
        %2614 = vset.pattern.permute.xlu0 2
        %2615 = vperm.xlu0 %2614, %v1013
        %v2616 = vpop.permute.xlu0 %2615
        %2618 = vset.pattern.permute.xlu0 2
        %2619 = vperm.xlu0 %2618, %v1028
        %v2620 = vpop.permute.xlu0 %2619
        %2622 = vset.pattern.permute.xlu0 2
        %2623 = vperm.xlu0 %2622, %v1030
        %v2624 = vpop.permute.xlu0 %2623
        %2626 = vset.pattern.permute.xlu0 2
        %2627 = vperm.xlu0 %2626, %v1045
        %v2628 = vpop.permute.xlu0 %2627
        %2630 = vset.pattern.permute.xlu0 2
        %2631 = vperm.xlu0 %2630, %v1047
        %v2632 = vpop.permute.xlu0 %2631
        %2634 = vset.pattern.permute.xlu0 2
        %2635 = vperm.xlu0 %2634, %v1062
        %v2636 = vpop.permute.xlu0 %2635
        %2638 = vset.pattern.permute.xlu0 2
        %2639 = vperm.xlu0 %2638, %v1064
        %v2640 = vpop.permute.xlu0 %2639
        %2642 = vset.pattern.permute.xlu0 2
        %2643 = vperm.xlu0 %2642, %v1079
        %v2644 = vpop.permute.xlu0 %2643
        %2646 = vset.pattern.permute.xlu0 2
        %2647 = vperm.xlu0 %2646, %v1081
        %v2648 = vpop.permute.xlu0 %2647
        %2650 = vset.pattern.permute.xlu0 2
        %2651 = vperm.xlu0 %2650, %v1096
        %v2652 = vpop.permute.xlu0 %2651
        %2654 = vset.pattern.permute.xlu0 2
        %2655 = vperm.xlu0 %2654, %v1098
        %v2656 = vpop.permute.xlu0 %2655
        %2658 = vset.pattern.permute.xlu0 2
        %2659 = vperm.xlu0 %2658, %v1113
        %v2660 = vpop.permute.xlu0 %2659
        %2662 = vset.pattern.permute.xlu0 2
        %2663 = vperm.xlu0 %2662, %v1115
        %v2664 = vpop.permute.xlu0 %2663
        %2666 = vset.pattern.permute.xlu0 2
        %2667 = vperm.xlu0 %2666, %v1130
        %v2668 = vpop.permute.xlu0 %2667
        %2670 = vset.pattern.permute.xlu0 2
        %2671 = vperm.xlu0 %2670, %v1132
        %v2672 = vpop.permute.xlu0 %2671
        %2674 = vset.pattern.permute.xlu0 2
        %2675 = vperm.xlu0 %2674, %v1147
        %v2676 = vpop.permute.xlu0 %2675
        %2678 = vset.pattern.permute.xlu0 2
        %2679 = vperm.xlu0 %2678, %v1149
        %v2680 = vpop.permute.xlu0 %2679
        %2682 = vset.pattern.permute.xlu0 2
        %2683 = vperm.xlu0 %2682, %v1164
        %v2684 = vpop.permute.xlu0 %2683
        %2686 = vset.pattern.permute.xlu0 2
        %2687 = vperm.xlu0 %2686, %v1166
        %v2688 = vpop.permute.xlu0 %2687
        %2690 = vset.pattern.permute.xlu0 2
        %2691 = vperm.xlu0 %2690, %v1181
        %v2692 = vpop.permute.xlu0 %2691
        %2694 = vset.pattern.permute.xlu0 2
        %2695 = vperm.xlu0 %2694, %v1183
        %v2696 = vpop.permute.xlu0 %2695
        %v2698 = vmul.f32 %v708, %v2588
        %v2699 = vmul.f32 %v710, %v2592
        %v2700 = vmul.f32 %v725, %v2596
        %v2701 = vmul.f32 %v727, %v2600
        %v2702 = vmul.f32 %v742, %v2604
        %v2703 = vmul.f32 %v744, %v2608
        %v2704 = vmul.f32 %v759, %v2612
        %v2705 = vmul.f32 %v761, %v2616
        %v2706 = vmul.f32 %v776, %v2620
        %v2707 = vmul.f32 %v778, %v2624
        %v2708 = vmul.f32 %v793, %v2628
        %v2709 = vmul.f32 %v795, %v2632
        %v2710 = vmul.f32 %v810, %v2636
        %v2711 = vmul.f32 %v812, %v2640
        %v2712 = vmul.f32 %v827, %v2644
        %v2713 = vmul.f32 %v829, %v2648
        %v2714 = vmul.f32 %v844, %v2652
        %v2715 = vmul.f32 %v846, %v2656
        %v2716 = vmul.f32 %v861, %v2660
        %v2717 = vmul.f32 %v863, %v2664
        %v2718 = vmul.f32 %v878, %v2668
        %v2719 = vmul.f32 %v880, %v2672
        %v2720 = vmul.f32 %v895, %v2676
        %v2721 = vmul.f32 %v897, %v2680
        %v2722 = vmul.f32 %v912, %v2684
        %v2723 = vmul.f32 %v914, %v2688
        %v2724 = vmul.f32 %v929, %v2692
        %v2725 = vmul.f32 %v931, %v2696
        %v2726 = vsub.f32 %v2698, %v1662
        %v2727 = vsub.f32 %v2699, %v1663
        %v2728 = vsub.f32 %v2700, %v1664
        %v2729 = vsub.f32 %v2701, %v1665
        %v2730 = vsub.f32 %v2702, %v1666
        %v2731 = vsub.f32 %v2703, %v1667
        %v2732 = vsub.f32 %v2704, %v1668
        %v2733 = vsub.f32 %v2705, %v1669
        %v2734 = vsub.f32 %v2706, %v1670
        %v2735 = vsub.f32 %v2707, %v1671
        %v2736 = vsub.f32 %v2708, %v1672
        %v2737 = vsub.f32 %v2709, %v1673
        %v2738 = vsub.f32 %v2710, %v1674
        %v2739 = vsub.f32 %v2711, %v1675
        %v2740 = vsub.f32 %v2712, %v1676
        %v2741 = vsub.f32 %v2713, %v1677
        %v2742 = vsub.f32 %v2714, %v1678
        %v2743 = vsub.f32 %v2715, %v1679
        %v2744 = vsub.f32 %v2716, %v1680
        %v2745 = vsub.f32 %v2717, %v1681
        %v2746 = vsub.f32 %v2718, %v1682
        %v2747 = vsub.f32 %v2719, %v1683
        %v2748 = vsub.f32 %v2720, %v1684
        %v2749 = vsub.f32 %v2721, %v1685
        %v2750 = vsub.f32 %v2722, %v1686
        %v2751 = vsub.f32 %v2723, %v1687
        %v2752 = vsub.f32 %v2724, %v1688
        %v2753 = vsub.f32 %v2725, %v1689
        %v2754 = vmul.f32 %v2726, 1.442695
        %v2755 = vpow.pop %v2754
        %v2756 = vmul.f32 %v2727, 1.442695
        %v2757 = vpow.pop %v2756
        %v2758 = vmul.f32 %v2728, 1.442695
        %v2759 = vpow.pop %v2758
        %v2760 = vmul.f32 %v2729, 1.442695
        %v2761 = vpow.pop %v2760
        %v2762 = vmul.f32 %v2730, 1.442695
        %v2763 = vpow.pop %v2762
        %v2764 = vmul.f32 %v2731, 1.442695
        %v2765 = vpow.pop %v2764
        %v2766 = vmul.f32 %v2732, 1.442695
        %v2767 = vpow.pop %v2766
        %v2768 = vmul.f32 %v2733, 1.442695
        %v2769 = vpow.pop %v2768
        %v2770 = vmul.f32 %v2734, 1.442695
        %v2771 = vpow.pop %v2770
        %v2772 = vmul.f32 %v2735, 1.442695
        %v2773 = vpow.pop %v2772
        %v2774 = vmul.f32 %v2736, 1.442695
        %v2775 = vpow.pop %v2774
        %v2776 = vmul.f32 %v2737, 1.442695
        %v2777 = vpow.pop %v2776
        %v2778 = vmul.f32 %v2738, 1.442695
        %v2779 = vpow.pop %v2778
        %v2780 = vmul.f32 %v2739, 1.442695
        %v2781 = vpow.pop %v2780
        %v2782 = vmul.f32 %v2740, 1.442695
        %v2783 = vpow.pop %v2782
        %v2784 = vmul.f32 %v2741, 1.442695
        %v2785 = vpow.pop %v2784
        %v2786 = vmul.f32 %v2742, 1.442695
        %v2787 = vpow.pop %v2786
        %v2788 = vmul.f32 %v2743, 1.442695
        %v2789 = vpow.pop %v2788
        %v2790 = vmul.f32 %v2744, 1.442695
        %v2791 = vpow.pop %v2790
        %v2792 = vmul.f32 %v2745, 1.442695
        %v2793 = vpow.pop %v2792
        %v2794 = vmul.f32 %v2746, 1.442695
        %v2795 = vpow.pop %v2794
        %v2796 = vmul.f32 %v2747, 1.442695
        %v2797 = vpow.pop %v2796
        %v2798 = vmul.f32 %v2748, 1.442695
        %v2799 = vpow.pop %v2798
        %v2800 = vmul.f32 %v2749, 1.442695
        %v2801 = vpow.pop %v2800
        %v2802 = vmul.f32 %v2750, 1.442695
        %v2803 = vpow.pop %v2802
        %v2804 = vmul.f32 %v2751, 1.442695
        %v2805 = vpow.pop %v2804
        %v2806 = vmul.f32 %v2752, 1.442695
        %v2807 = vpow.pop %v2806
        %v2808 = vmul.f32 %v2753, 1.442695
        %v2809 = vpow.pop %v2808
        %v2810 = vadd.f32 %v2390, %v2755
        %v2811 = vadd.f32 %v2391, %v2757
        %v2812 = vadd.f32 %v2392, %v2759
        %v2813 = vadd.f32 %v2393, %v2761
        %v2814 = vadd.f32 %v2394, %v2763
        %v2815 = vadd.f32 %v2395, %v2765
        %v2816 = vadd.f32 %v2396, %v2767
        %v2817 = vadd.f32 %v2397, %v2769
        %v2818 = vadd.f32 %v2398, %v2771
        %v2819 = vadd.f32 %v2399, %v2773
        %v2820 = vadd.f32 %v2400, %v2775
        %v2821 = vadd.f32 %v2401, %v2777
        %v2822 = vadd.f32 %v2402, %v2779
        %v2823 = vadd.f32 %v2403, %v2781
        %v2824 = vadd.f32 %v2404, %v2783
        %v2825 = vadd.f32 %v2405, %v2785
        %v2826 = vadd.f32 %v2406, %v2787
        %v2827 = vadd.f32 %v2407, %v2789
        %v2828 = vadd.f32 %v2408, %v2791
        %v2829 = vadd.f32 %v2409, %v2793
        %v2830 = vadd.f32 %v2410, %v2795
        %v2831 = vadd.f32 %v2411, %v2797
        %v2832 = vadd.f32 %v2412, %v2799
        %v2833 = vadd.f32 %v2413, %v2801
        %v2834 = vadd.f32 %v2414, %v2803
        %v2835 = vadd.f32 %v2415, %v2805
        %v2836 = vadd.f32 %v2416, %v2807
        %v2837 = vadd.f32 %v2417, %v2809
        %2838 = vset.pattern.permute.xlu0 2
        %2839 = vperm.xlu0 %2838, %v1212
        %v2840 = vpop.permute.xlu0 %2839
        %2842 = vset.pattern.permute.xlu0 2
        %2843 = vperm.xlu0 %2842, %v1214
        %v2844 = vpop.permute.xlu0 %2843
        %2846 = vset.pattern.permute.xlu0 2
        %2847 = vperm.xlu0 %2846, %v1229
        %v2848 = vpop.permute.xlu0 %2847
        %2850 = vset.pattern.permute.xlu0 2
        %2851 = vperm.xlu0 %2850, %v1231
        %v2852 = vpop.permute.xlu0 %2851
        %2854 = vset.pattern.permute.xlu0 2
        %2855 = vperm.xlu0 %2854, %v1246
        %v2856 = vpop.permute.xlu0 %2855
        %2858 = vset.pattern.permute.xlu0 2
        %2859 = vperm.xlu0 %2858, %v1248
        %v2860 = vpop.permute.xlu0 %2859
        %2862 = vset.pattern.permute.xlu0 2
        %2863 = vperm.xlu0 %2862, %v1263
        %v2864 = vpop.permute.xlu0 %2863
        %2866 = vset.pattern.permute.xlu0 2
        %2867 = vperm.xlu0 %2866, %v1265
        %v2868 = vpop.permute.xlu0 %2867
        %2870 = vset.pattern.permute.xlu0 2
        %2871 = vperm.xlu0 %2870, %v1280
        %v2872 = vpop.permute.xlu0 %2871
        %2874 = vset.pattern.permute.xlu0 2
        %2875 = vperm.xlu0 %2874, %v1282
        %v2876 = vpop.permute.xlu0 %2875
        %2878 = vset.pattern.permute.xlu0 2
        %2879 = vperm.xlu0 %2878, %v1297
        %v2880 = vpop.permute.xlu0 %2879
        %2882 = vset.pattern.permute.xlu0 2
        %2883 = vperm.xlu0 %2882, %v1299
        %v2884 = vpop.permute.xlu0 %2883
        %2886 = vset.pattern.permute.xlu0 2
        %2887 = vperm.xlu0 %2886, %v1314
        %v2888 = vpop.permute.xlu0 %2887
        %2890 = vset.pattern.permute.xlu0 2
        %2891 = vperm.xlu0 %2890, %v1316
        %v2892 = vpop.permute.xlu0 %2891
        %2894 = vset.pattern.permute.xlu0 2
        %2895 = vperm.xlu0 %2894, %v1331
        %v2896 = vpop.permute.xlu0 %2895
        %2898 = vset.pattern.permute.xlu0 2
        %2899 = vperm.xlu0 %2898, %v1333
        %v2900 = vpop.permute.xlu0 %2899
        %2902 = vset.pattern.permute.xlu0 2
        %2903 = vperm.xlu0 %2902, %v1348
        %v2904 = vpop.permute.xlu0 %2903
        %2906 = vset.pattern.permute.xlu0 2
        %2907 = vperm.xlu0 %2906, %v1350
        %v2908 = vpop.permute.xlu0 %2907
        %2910 = vset.pattern.permute.xlu0 2
        %2911 = vperm.xlu0 %2910, %v1365
        %v2912 = vpop.permute.xlu0 %2911
        %2914 = vset.pattern.permute.xlu0 2
        %2915 = vperm.xlu0 %2914, %v1367
        %v2916 = vpop.permute.xlu0 %2915
        %2918 = vset.pattern.permute.xlu0 2
        %2919 = vperm.xlu0 %2918, %v1382
        %v2920 = vpop.permute.xlu0 %2919
        %2922 = vset.pattern.permute.xlu0 2
        %2923 = vperm.xlu0 %2922, %v1384
        %v2924 = vpop.permute.xlu0 %2923
        %2926 = vset.pattern.permute.xlu0 2
        %2927 = vperm.xlu0 %2926, %v1399
        %v2928 = vpop.permute.xlu0 %2927
        %2930 = vset.pattern.permute.xlu0 2
        %2931 = vperm.xlu0 %2930, %v1401
        %v2932 = vpop.permute.xlu0 %2931
        %2934 = vset.pattern.permute.xlu0 2
        %2935 = vperm.xlu0 %2934, %v1416
        %v2936 = vpop.permute.xlu0 %2935
        %2938 = vset.pattern.permute.xlu0 2
        %2939 = vperm.xlu0 %2938, %v1418
        %v2940 = vpop.permute.xlu0 %2939
        %2942 = vset.pattern.permute.xlu0 2
        %2943 = vperm.xlu0 %2942, %v1433
        %v2944 = vpop.permute.xlu0 %2943
        %2946 = vset.pattern.permute.xlu0 2
        %2947 = vperm.xlu0 %2946, %v1435
        %v2948 = vpop.permute.xlu0 %2947
        %v2950 = vmul.f32 %v2755, %v2840
        %v2951 = vmul.f32 %v2757, %v2844
        %v2952 = vmul.f32 %v2759, %v2848
        %v2953 = vmul.f32 %v2761, %v2852
        %v2954 = vmul.f32 %v2763, %v2856
        %v2955 = vmul.f32 %v2765, %v2860
        %v2956 = vmul.f32 %v2767, %v2864
        %v2957 = vmul.f32 %v2769, %v2868
        %v2958 = vmul.f32 %v2771, %v2872
        %v2959 = vmul.f32 %v2773, %v2876
        %v2960 = vmul.f32 %v2775, %v2880
        %v2961 = vmul.f32 %v2777, %v2884
        %v2962 = vmul.f32 %v2779, %v2888
        %v2963 = vmul.f32 %v2781, %v2892
        %v2964 = vmul.f32 %v2783, %v2896
        %v2965 = vmul.f32 %v2785, %v2900
        %v2966 = vmul.f32 %v2787, %v2904
        %v2967 = vmul.f32 %v2789, %v2908
        %v2968 = vmul.f32 %v2791, %v2912
        %v2969 = vmul.f32 %v2793, %v2916
        %v2970 = vmul.f32 %v2795, %v2920
        %v2971 = vmul.f32 %v2797, %v2924
        %v2972 = vmul.f32 %v2799, %v2928
        %v2973 = vmul.f32 %v2801, %v2932
        %v2974 = vmul.f32 %v2803, %v2936
        %v2975 = vmul.f32 %v2805, %v2940
        %v2976 = vmul.f32 %v2807, %v2944
        %v2977 = vmul.f32 %v2809, %v2948
        %v2978 = vadd.f32 %v2558, %v2950
        %v2979 = vadd.f32 %v2559, %v2951
        %v2980 = vadd.f32 %v2560, %v2952
        %v2981 = vadd.f32 %v2561, %v2953
        %v2982 = vadd.f32 %v2562, %v2954
        %v2983 = vadd.f32 %v2563, %v2955
        %v2984 = vadd.f32 %v2564, %v2956
        %v2985 = vadd.f32 %v2565, %v2957
        %v2986 = vadd.f32 %v2566, %v2958
        %v2987 = vadd.f32 %v2567, %v2959
        %v2988 = vadd.f32 %v2568, %v2960
        %v2989 = vadd.f32 %v2569, %v2961
        %v2990 = vadd.f32 %v2570, %v2962
        %v2991 = vadd.f32 %v2571, %v2963
        %v2992 = vadd.f32 %v2572, %v2964
        %v2993 = vadd.f32 %v2573, %v2965
        %v2994 = vadd.f32 %v2574, %v2966
        %v2995 = vadd.f32 %v2575, %v2967
        %v2996 = vadd.f32 %v2576, %v2968
        %v2997 = vadd.f32 %v2577, %v2969
        %v2998 = vadd.f32 %v2578, %v2970
        %v2999 = vadd.f32 %v2579, %v2971
        %v3000 = vadd.f32 %v2580, %v2972
        %v3001 = vadd.f32 %v2581, %v2973
        %v3002 = vadd.f32 %v2582, %v2974
        %v3003 = vadd.f32 %v2583, %v2975
        %v3004 = vadd.f32 %v2584, %v2976
        %v3005 = vadd.f32 %v2585, %v2977
        %3006 = vset.pattern.permute.xlu0 3
        %3007 = vperm.xlu0 %3006, %v960
        %v3008 = vpop.permute.xlu0 %3007
        %3010 = vset.pattern.permute.xlu0 3
        %3011 = vperm.xlu0 %3010, %v962
        %v3012 = vpop.permute.xlu0 %3011
        %3014 = vset.pattern.permute.xlu0 3
        %3015 = vperm.xlu0 %3014, %v977
        %v3016 = vpop.permute.xlu0 %3015
        %3018 = vset.pattern.permute.xlu0 3
        %3019 = vperm.xlu0 %3018, %v979
        %v3020 = vpop.permute.xlu0 %3019
        %3022 = vset.pattern.permute.xlu0 3
        %3023 = vperm.xlu0 %3022, %v994
        %v3024 = vpop.permute.xlu0 %3023
        %3026 = vset.pattern.permute.xlu0 3
        %3027 = vperm.xlu0 %3026, %v996
        %v3028 = vpop.permute.xlu0 %3027
        %3030 = vset.pattern.permute.xlu0 3
        %3031 = vperm.xlu0 %3030, %v1011
        %v3032 = vpop.permute.xlu0 %3031
        %3034 = vset.pattern.permute.xlu0 3
        %3035 = vperm.xlu0 %3034, %v1013
        %v3036 = vpop.permute.xlu0 %3035
        %3038 = vset.pattern.permute.xlu0 3
        %3039 = vperm.xlu0 %3038, %v1028
        %v3040 = vpop.permute.xlu0 %3039
        %3042 = vset.pattern.permute.xlu0 3
        %3043 = vperm.xlu0 %3042, %v1030
        %v3044 = vpop.permute.xlu0 %3043
        %3046 = vset.pattern.permute.xlu0 3
        %3047 = vperm.xlu0 %3046, %v1045
        %v3048 = vpop.permute.xlu0 %3047
        %3050 = vset.pattern.permute.xlu0 3
        %3051 = vperm.xlu0 %3050, %v1047
        %v3052 = vpop.permute.xlu0 %3051
        %3054 = vset.pattern.permute.xlu0 3
        %3055 = vperm.xlu0 %3054, %v1062
        %v3056 = vpop.permute.xlu0 %3055
        %3058 = vset.pattern.permute.xlu0 3
        %3059 = vperm.xlu0 %3058, %v1064
        %v3060 = vpop.permute.xlu0 %3059
        %3062 = vset.pattern.permute.xlu0 3
        %3063 = vperm.xlu0 %3062, %v1079
        %v3064 = vpop.permute.xlu0 %3063
        %3066 = vset.pattern.permute.xlu0 3
        %3067 = vperm.xlu0 %3066, %v1081
        %v3068 = vpop.permute.xlu0 %3067
        %3070 = vset.pattern.permute.xlu0 3
        %3071 = vperm.xlu0 %3070, %v1096
        %v3072 = vpop.permute.xlu0 %3071
        %3074 = vset.pattern.permute.xlu0 3
        %3075 = vperm.xlu0 %3074, %v1098
        %v3076 = vpop.permute.xlu0 %3075
        %3078 = vset.pattern.permute.xlu0 3
        %3079 = vperm.xlu0 %3078, %v1113
        %v3080 = vpop.permute.xlu0 %3079
        %3082 = vset.pattern.permute.xlu0 3
        %3083 = vperm.xlu0 %3082, %v1115
        %v3084 = vpop.permute.xlu0 %3083
        %3086 = vset.pattern.permute.xlu0 3
        %3087 = vperm.xlu0 %3086, %v1130
        %v3088 = vpop.permute.xlu0 %3087
        %3090 = vset.pattern.permute.xlu0 3
        %3091 = vperm.xlu0 %3090, %v1132
        %v3092 = vpop.permute.xlu0 %3091
        %3094 = vset.pattern.permute.xlu0 3
        %3095 = vperm.xlu0 %3094, %v1147
        %v3096 = vpop.permute.xlu0 %3095
        %3098 = vset.pattern.permute.xlu0 3
        %3099 = vperm.xlu0 %3098, %v1149
        %v3100 = vpop.permute.xlu0 %3099
        %3102 = vset.pattern.permute.xlu0 3
        %3103 = vperm.xlu0 %3102, %v1164
        %v3104 = vpop.permute.xlu0 %3103
        %3106 = vset.pattern.permute.xlu0 3
        %3107 = vperm.xlu0 %3106, %v1166
        %v3108 = vpop.permute.xlu0 %3107
        %3110 = vset.pattern.permute.xlu0 3
        %3111 = vperm.xlu0 %3110, %v1181
        %v3112 = vpop.permute.xlu0 %3111
        %3114 = vset.pattern.permute.xlu0 3
        %3115 = vperm.xlu0 %3114, %v1183
        %v3116 = vpop.permute.xlu0 %3115
        %v3118 = vmul.f32 %v708, %v3008
        %v3119 = vmul.f32 %v710, %v3012
        %v3120 = vmul.f32 %v725, %v3016
        %v3121 = vmul.f32 %v727, %v3020
        %v3122 = vmul.f32 %v742, %v3024
        %v3123 = vmul.f32 %v744, %v3028
        %v3124 = vmul.f32 %v759, %v3032
        %v3125 = vmul.f32 %v761, %v3036
        %v3126 = vmul.f32 %v776, %v3040
        %v3127 = vmul.f32 %v778, %v3044
        %v3128 = vmul.f32 %v793, %v3048
        %v3129 = vmul.f32 %v795, %v3052
        %v3130 = vmul.f32 %v810, %v3056
        %v3131 = vmul.f32 %v812, %v3060
        %v3132 = vmul.f32 %v827, %v3064
        %v3133 = vmul.f32 %v829, %v3068
        %v3134 = vmul.f32 %v844, %v3072
        %v3135 = vmul.f32 %v846, %v3076
        %v3136 = vmul.f32 %v861, %v3080
        %v3137 = vmul.f32 %v863, %v3084
        %v3138 = vmul.f32 %v878, %v3088
        %v3139 = vmul.f32 %v880, %v3092
        %v3140 = vmul.f32 %v895, %v3096
        %v3141 = vmul.f32 %v897, %v3100
        %v3142 = vmul.f32 %v912, %v3104
        %v3143 = vmul.f32 %v914, %v3108
        %v3144 = vmul.f32 %v929, %v3112
        %v3145 = vmul.f32 %v931, %v3116
        %v3146 = vsub.f32 %v3118, %v1662
        %v3147 = vsub.f32 %v3119, %v1663
        %v3148 = vsub.f32 %v3120, %v1664
        %v3149 = vsub.f32 %v3121, %v1665
        %v3150 = vsub.f32 %v3122, %v1666
        %v3151 = vsub.f32 %v3123, %v1667
        %v3152 = vsub.f32 %v3124, %v1668
        %v3153 = vsub.f32 %v3125, %v1669
        %v3154 = vsub.f32 %v3126, %v1670
        %v3155 = vsub.f32 %v3127, %v1671
        %v3156 = vsub.f32 %v3128, %v1672
        %v3157 = vsub.f32 %v3129, %v1673
        %v3158 = vsub.f32 %v3130, %v1674
        %v3159 = vsub.f32 %v3131, %v1675
        %v3160 = vsub.f32 %v3132, %v1676
        %v3161 = vsub.f32 %v3133, %v1677
        %v3162 = vsub.f32 %v3134, %v1678
        %v3163 = vsub.f32 %v3135, %v1679
        %v3164 = vsub.f32 %v3136, %v1680
        %v3165 = vsub.f32 %v3137, %v1681
        %v3166 = vsub.f32 %v3138, %v1682
        %v3167 = vsub.f32 %v3139, %v1683
        %v3168 = vsub.f32 %v3140, %v1684
        %v3169 = vsub.f32 %v3141, %v1685
        %v3170 = vsub.f32 %v3142, %v1686
        %v3171 = vsub.f32 %v3143, %v1687
        %v3172 = vsub.f32 %v3144, %v1688
        %v3173 = vsub.f32 %v3145, %v1689
        %v3174 = vmul.f32 %v3146, 1.442695
        %v3175 = vpow.pop %v3174
        %v3176 = vmul.f32 %v3147, 1.442695
        %v3177 = vpow.pop %v3176
        %v3178 = vmul.f32 %v3148, 1.442695
        %v3179 = vpow.pop %v3178
        %v3180 = vmul.f32 %v3149, 1.442695
        %v3181 = vpow.pop %v3180
        %v3182 = vmul.f32 %v3150, 1.442695
        %v3183 = vpow.pop %v3182
        %v3184 = vmul.f32 %v3151, 1.442695
        %v3185 = vpow.pop %v3184
        %v3186 = vmul.f32 %v3152, 1.442695
        %v3187 = vpow.pop %v3186
        %v3188 = vmul.f32 %v3153, 1.442695
        %v3189 = vpow.pop %v3188
        %v3190 = vmul.f32 %v3154, 1.442695
        %v3191 = vpow.pop %v3190
        %v3192 = vmul.f32 %v3155, 1.442695
        %v3193 = vpow.pop %v3192
        %v3194 = vmul.f32 %v3156, 1.442695
        %v3195 = vpow.pop %v3194
        %v3196 = vmul.f32 %v3157, 1.442695
        %v3197 = vpow.pop %v3196
        %v3198 = vmul.f32 %v3158, 1.442695
        %v3199 = vpow.pop %v3198
        %v3200 = vmul.f32 %v3159, 1.442695
        %v3201 = vpow.pop %v3200
        %v3202 = vmul.f32 %v3160, 1.442695
        %v3203 = vpow.pop %v3202
        %v3204 = vmul.f32 %v3161, 1.442695
        %v3205 = vpow.pop %v3204
        %v3206 = vmul.f32 %v3162, 1.442695
        %v3207 = vpow.pop %v3206
        %v3208 = vmul.f32 %v3163, 1.442695
        %v3209 = vpow.pop %v3208
        %v3210 = vmul.f32 %v3164, 1.442695
        %v3211 = vpow.pop %v3210
        %v3212 = vmul.f32 %v3165, 1.442695
        %v3213 = vpow.pop %v3212
        %v3214 = vmul.f32 %v3166, 1.442695
        %v3215 = vpow.pop %v3214
        %v3216 = vmul.f32 %v3167, 1.442695
        %v3217 = vpow.pop %v3216
        %v3218 = vmul.f32 %v3168, 1.442695
        %v3219 = vpow.pop %v3218
        %v3220 = vmul.f32 %v3169, 1.442695
        %v3221 = vpow.pop %v3220
        %v3222 = vmul.f32 %v3170, 1.442695
        %v3223 = vpow.pop %v3222
        %v3224 = vmul.f32 %v3171, 1.442695
        %v3225 = vpow.pop %v3224
        %v3226 = vmul.f32 %v3172, 1.442695
        %v3227 = vpow.pop %v3226
        %v3228 = vmul.f32 %v3173, 1.442695
        %v3229 = vpow.pop %v3228
        %v3230 = vadd.f32 %v2810, %v3175
        %v3231 = vadd.f32 %v2811, %v3177
        %v3232 = vadd.f32 %v2812, %v3179
        %v3233 = vadd.f32 %v2813, %v3181
        %v3234 = vadd.f32 %v2814, %v3183
        %v3235 = vadd.f32 %v2815, %v3185
        %v3236 = vadd.f32 %v2816, %v3187
        %v3237 = vadd.f32 %v2817, %v3189
        %v3238 = vadd.f32 %v2818, %v3191
        %v3239 = vadd.f32 %v2819, %v3193
        %v3240 = vadd.f32 %v2820, %v3195
        %v3241 = vadd.f32 %v2821, %v3197
        %v3242 = vadd.f32 %v2822, %v3199
        %v3243 = vadd.f32 %v2823, %v3201
        %v3244 = vadd.f32 %v2824, %v3203
        %v3245 = vadd.f32 %v2825, %v3205
        %v3246 = vadd.f32 %v2826, %v3207
        %v3247 = vadd.f32 %v2827, %v3209
        %v3248 = vadd.f32 %v2828, %v3211
        %v3249 = vadd.f32 %v2829, %v3213
        %v3250 = vadd.f32 %v2830, %v3215
        %v3251 = vadd.f32 %v2831, %v3217
        %v3252 = vadd.f32 %v2832, %v3219
        %v3253 = vadd.f32 %v2833, %v3221
        %v3254 = vadd.f32 %v2834, %v3223
        %v3255 = vadd.f32 %v2835, %v3225
        %v3256 = vadd.f32 %v2836, %v3227
        %v3257 = vadd.f32 %v2837, %v3229
        %3258 = vset.pattern.permute.xlu0 3
        %3259 = vperm.xlu0 %3258, %v1212
        %v3260 = vpop.permute.xlu0 %3259
        %3262 = vset.pattern.permute.xlu0 3
        %3263 = vperm.xlu0 %3262, %v1214
        %v3264 = vpop.permute.xlu0 %3263
        %3266 = vset.pattern.permute.xlu0 3
        %3267 = vperm.xlu0 %3266, %v1229
        %v3268 = vpop.permute.xlu0 %3267
        %3270 = vset.pattern.permute.xlu0 3
        %3271 = vperm.xlu0 %3270, %v1231
        %v3272 = vpop.permute.xlu0 %3271
        %3274 = vset.pattern.permute.xlu0 3
        %3275 = vperm.xlu0 %3274, %v1246
        %v3276 = vpop.permute.xlu0 %3275
        %3278 = vset.pattern.permute.xlu0 3
        %3279 = vperm.xlu0 %3278, %v1248
        %v3280 = vpop.permute.xlu0 %3279
        %3282 = vset.pattern.permute.xlu0 3
        %3283 = vperm.xlu0 %3282, %v1263
        %v3284 = vpop.permute.xlu0 %3283
        %3286 = vset.pattern.permute.xlu0 3
        %3287 = vperm.xlu0 %3286, %v1265
        %v3288 = vpop.permute.xlu0 %3287
        %3290 = vset.pattern.permute.xlu0 3
        %3291 = vperm.xlu0 %3290, %v1280
        %v3292 = vpop.permute.xlu0 %3291
        %3294 = vset.pattern.permute.xlu0 3
        %3295 = vperm.xlu0 %3294, %v1282
        %v3296 = vpop.permute.xlu0 %3295
        %3298 = vset.pattern.permute.xlu0 3
        %3299 = vperm.xlu0 %3298, %v1297
        %v3300 = vpop.permute.xlu0 %3299
        %3302 = vset.pattern.permute.xlu0 3
        %3303 = vperm.xlu0 %3302, %v1299
        %v3304 = vpop.permute.xlu0 %3303
        %3306 = vset.pattern.permute.xlu0 3
        %3307 = vperm.xlu0 %3306, %v1314
        %v3308 = vpop.permute.xlu0 %3307
        %3310 = vset.pattern.permute.xlu0 3
        %3311 = vperm.xlu0 %3310, %v1316
        %v3312 = vpop.permute.xlu0 %3311
        %3314 = vset.pattern.permute.xlu0 3
        %3315 = vperm.xlu0 %3314, %v1331
        %v3316 = vpop.permute.xlu0 %3315
        %3318 = vset.pattern.permute.xlu0 3
        %3319 = vperm.xlu0 %3318, %v1333
        %v3320 = vpop.permute.xlu0 %3319
        %3322 = vset.pattern.permute.xlu0 3
        %3323 = vperm.xlu0 %3322, %v1348
        %v3324 = vpop.permute.xlu0 %3323
        %3326 = vset.pattern.permute.xlu0 3
        %3327 = vperm.xlu0 %3326, %v1350
        %v3328 = vpop.permute.xlu0 %3327
        %3330 = vset.pattern.permute.xlu0 3
        %3331 = vperm.xlu0 %3330, %v1365
        %v3332 = vpop.permute.xlu0 %3331
        %3334 = vset.pattern.permute.xlu0 3
        %3335 = vperm.xlu0 %3334, %v1367
        %v3336 = vpop.permute.xlu0 %3335
        %3338 = vset.pattern.permute.xlu0 3
        %3339 = vperm.xlu0 %3338, %v1382
        %v3340 = vpop.permute.xlu0 %3339
        %3342 = vset.pattern.permute.xlu0 3
        %3343 = vperm.xlu0 %3342, %v1384
        %v3344 = vpop.permute.xlu0 %3343
        %3346 = vset.pattern.permute.xlu0 3
        %3347 = vperm.xlu0 %3346, %v1399
        %v3348 = vpop.permute.xlu0 %3347
        %3350 = vset.pattern.permute.xlu0 3
        %3351 = vperm.xlu0 %3350, %v1401
        %v3352 = vpop.permute.xlu0 %3351
        %3354 = vset.pattern.permute.xlu0 3
        %3355 = vperm.xlu0 %3354, %v1416
        %v3356 = vpop.permute.xlu0 %3355
        %3358 = vset.pattern.permute.xlu0 3
        %3359 = vperm.xlu0 %3358, %v1418
        %v3360 = vpop.permute.xlu0 %3359
        %3362 = vset.pattern.permute.xlu0 3
        %3363 = vperm.xlu0 %3362, %v1433
        %v3364 = vpop.permute.xlu0 %3363
        %3366 = vset.pattern.permute.xlu0 3
        %3367 = vperm.xlu0 %3366, %v1435
        %v3368 = vpop.permute.xlu0 %3367
        %v3370 = vmul.f32 %v3175, %v3260
        %v3371 = vmul.f32 %v3177, %v3264
        %v3372 = vmul.f32 %v3179, %v3268
        %v3373 = vmul.f32 %v3181, %v3272
        %v3374 = vmul.f32 %v3183, %v3276
        %v3375 = vmul.f32 %v3185, %v3280
        %v3376 = vmul.f32 %v3187, %v3284
        %v3377 = vmul.f32 %v3189, %v3288
        %v3378 = vmul.f32 %v3191, %v3292
        %v3379 = vmul.f32 %v3193, %v3296
        %v3380 = vmul.f32 %v3195, %v3300
        %v3381 = vmul.f32 %v3197, %v3304
        %v3382 = vmul.f32 %v3199, %v3308
        %v3383 = vmul.f32 %v3201, %v3312
        %v3384 = vmul.f32 %v3203, %v3316
        %v3385 = vmul.f32 %v3205, %v3320
        %v3386 = vmul.f32 %v3207, %v3324
        %v3387 = vmul.f32 %v3209, %v3328
        %v3388 = vmul.f32 %v3211, %v3332
        %v3389 = vmul.f32 %v3213, %v3336
        %v3390 = vmul.f32 %v3215, %v3340
        %v3391 = vmul.f32 %v3217, %v3344
        %v3392 = vmul.f32 %v3219, %v3348
        %v3393 = vmul.f32 %v3221, %v3352
        %v3394 = vmul.f32 %v3223, %v3356
        %v3395 = vmul.f32 %v3225, %v3360
        %v3396 = vmul.f32 %v3227, %v3364
        %v3397 = vmul.f32 %v3229, %v3368
        %v3398 = vadd.f32 %v2978, %v3370
        %v3399 = vadd.f32 %v2979, %v3371
        %v3400 = vadd.f32 %v2980, %v3372
        %v3401 = vadd.f32 %v2981, %v3373
        %v3402 = vadd.f32 %v2982, %v3374
        %v3403 = vadd.f32 %v2983, %v3375
        %v3404 = vadd.f32 %v2984, %v3376
        %v3405 = vadd.f32 %v2985, %v3377
        %v3406 = vadd.f32 %v2986, %v3378
        %v3407 = vadd.f32 %v2987, %v3379
        %v3408 = vadd.f32 %v2988, %v3380
        %v3409 = vadd.f32 %v2989, %v3381
        %v3410 = vadd.f32 %v2990, %v3382
        %v3411 = vadd.f32 %v2991, %v3383
        %v3412 = vadd.f32 %v2992, %v3384
        %v3413 = vadd.f32 %v2993, %v3385
        %v3414 = vadd.f32 %v2994, %v3386
        %v3415 = vadd.f32 %v2995, %v3387
        %v3416 = vadd.f32 %v2996, %v3388
        %v3417 = vadd.f32 %v2997, %v3389
        %v3418 = vadd.f32 %v2998, %v3390
        %v3419 = vadd.f32 %v2999, %v3391
        %v3420 = vadd.f32 %v3000, %v3392
        %v3421 = vadd.f32 %v3001, %v3393
        %v3422 = vadd.f32 %v3002, %v3394
        %v3423 = vadd.f32 %v3003, %v3395
        %v3424 = vadd.f32 %v3004, %v3396
        %v3425 = vadd.f32 %v3005, %v3397
        %3426 = vset.pattern.permute.xlu0 4
        %3427 = vperm.xlu0 %3426, %v960
        %v3428 = vpop.permute.xlu0 %3427
        %3430 = vset.pattern.permute.xlu0 4
        %3431 = vperm.xlu0 %3430, %v962
        %v3432 = vpop.permute.xlu0 %3431
        %3434 = vset.pattern.permute.xlu0 4
        %3435 = vperm.xlu0 %3434, %v977
        %v3436 = vpop.permute.xlu0 %3435
        %3438 = vset.pattern.permute.xlu0 4
        %3439 = vperm.xlu0 %3438, %v979
        %v3440 = vpop.permute.xlu0 %3439
        %3442 = vset.pattern.permute.xlu0 4
        %3443 = vperm.xlu0 %3442, %v994
        %v3444 = vpop.permute.xlu0 %3443
        %3446 = vset.pattern.permute.xlu0 4
        %3447 = vperm.xlu0 %3446, %v996
        %v3448 = vpop.permute.xlu0 %3447
        %3450 = vset.pattern.permute.xlu0 4
        %3451 = vperm.xlu0 %3450, %v1011
        %v3452 = vpop.permute.xlu0 %3451
        %3454 = vset.pattern.permute.xlu0 4
        %3455 = vperm.xlu0 %3454, %v1013
        %v3456 = vpop.permute.xlu0 %3455
        %3458 = vset.pattern.permute.xlu0 4
        %3459 = vperm.xlu0 %3458, %v1028
        %v3460 = vpop.permute.xlu0 %3459
        %3462 = vset.pattern.permute.xlu0 4
        %3463 = vperm.xlu0 %3462, %v1030
        %v3464 = vpop.permute.xlu0 %3463
        %3466 = vset.pattern.permute.xlu0 4
        %3467 = vperm.xlu0 %3466, %v1045
        %v3468 = vpop.permute.xlu0 %3467
        %3470 = vset.pattern.permute.xlu0 4
        %3471 = vperm.xlu0 %3470, %v1047
        %v3472 = vpop.permute.xlu0 %3471
        %3474 = vset.pattern.permute.xlu0 4
        %3475 = vperm.xlu0 %3474, %v1062
        %v3476 = vpop.permute.xlu0 %3475
        %3478 = vset.pattern.permute.xlu0 4
        %3479 = vperm.xlu0 %3478, %v1064
        %v3480 = vpop.permute.xlu0 %3479
        %3482 = vset.pattern.permute.xlu0 4
        %3483 = vperm.xlu0 %3482, %v1079
        %v3484 = vpop.permute.xlu0 %3483
        %3486 = vset.pattern.permute.xlu0 4
        %3487 = vperm.xlu0 %3486, %v1081
        %v3488 = vpop.permute.xlu0 %3487
        %3490 = vset.pattern.permute.xlu0 4
        %3491 = vperm.xlu0 %3490, %v1096
        %v3492 = vpop.permute.xlu0 %3491
        %3494 = vset.pattern.permute.xlu0 4
        %3495 = vperm.xlu0 %3494, %v1098
        %v3496 = vpop.permute.xlu0 %3495
        %3498 = vset.pattern.permute.xlu0 4
        %3499 = vperm.xlu0 %3498, %v1113
        %v3500 = vpop.permute.xlu0 %3499
        %3502 = vset.pattern.permute.xlu0 4
        %3503 = vperm.xlu0 %3502, %v1115
        %v3504 = vpop.permute.xlu0 %3503
        %3506 = vset.pattern.permute.xlu0 4
        %3507 = vperm.xlu0 %3506, %v1130
        %v3508 = vpop.permute.xlu0 %3507
        %3510 = vset.pattern.permute.xlu0 4
        %3511 = vperm.xlu0 %3510, %v1132
        %v3512 = vpop.permute.xlu0 %3511
        %3514 = vset.pattern.permute.xlu0 4
        %3515 = vperm.xlu0 %3514, %v1147
        %v3516 = vpop.permute.xlu0 %3515
        %3518 = vset.pattern.permute.xlu0 4
        %3519 = vperm.xlu0 %3518, %v1149
        %v3520 = vpop.permute.xlu0 %3519
        %3522 = vset.pattern.permute.xlu0 4
        %3523 = vperm.xlu0 %3522, %v1164
        %v3524 = vpop.permute.xlu0 %3523
        %3526 = vset.pattern.permute.xlu0 4
        %3527 = vperm.xlu0 %3526, %v1166
        %v3528 = vpop.permute.xlu0 %3527
        %3530 = vset.pattern.permute.xlu0 4
        %3531 = vperm.xlu0 %3530, %v1181
        %v3532 = vpop.permute.xlu0 %3531
        %3534 = vset.pattern.permute.xlu0 4
        %3535 = vperm.xlu0 %3534, %v1183
        %v3536 = vpop.permute.xlu0 %3535
        %v3538 = vmul.f32 %v708, %v3428
        %v3539 = vmul.f32 %v710, %v3432
        %v3540 = vmul.f32 %v725, %v3436
        %v3541 = vmul.f32 %v727, %v3440
        %v3542 = vmul.f32 %v742, %v3444
        %v3543 = vmul.f32 %v744, %v3448
        %v3544 = vmul.f32 %v759, %v3452
        %v3545 = vmul.f32 %v761, %v3456
        %v3546 = vmul.f32 %v776, %v3460
        %v3547 = vmul.f32 %v778, %v3464
        %v3548 = vmul.f32 %v793, %v3468
        %v3549 = vmul.f32 %v795, %v3472
        %v3550 = vmul.f32 %v810, %v3476
        %v3551 = vmul.f32 %v812, %v3480
        %v3552 = vmul.f32 %v827, %v3484
        %v3553 = vmul.f32 %v829, %v3488
        %v3554 = vmul.f32 %v844, %v3492
        %v3555 = vmul.f32 %v846, %v3496
        %v3556 = vmul.f32 %v861, %v3500
        %v3557 = vmul.f32 %v863, %v3504
        %v3558 = vmul.f32 %v878, %v3508
        %v3559 = vmul.f32 %v880, %v3512
        %v3560 = vmul.f32 %v895, %v3516
        %v3561 = vmul.f32 %v897, %v3520
        %v3562 = vmul.f32 %v912, %v3524
        %v3563 = vmul.f32 %v914, %v3528
        %v3564 = vmul.f32 %v929, %v3532
        %v3565 = vmul.f32 %v931, %v3536
        %v3566 = vsub.f32 %v3538, %v1662
        %v3567 = vsub.f32 %v3539, %v1663
        %v3568 = vsub.f32 %v3540, %v1664
        %v3569 = vsub.f32 %v3541, %v1665
        %v3570 = vsub.f32 %v3542, %v1666
        %v3571 = vsub.f32 %v3543, %v1667
        %v3572 = vsub.f32 %v3544, %v1668
        %v3573 = vsub.f32 %v3545, %v1669
        %v3574 = vsub.f32 %v3546, %v1670
        %v3575 = vsub.f32 %v3547, %v1671
        %v3576 = vsub.f32 %v3548, %v1672
        %v3577 = vsub.f32 %v3549, %v1673
        %v3578 = vsub.f32 %v3550, %v1674
        %v3579 = vsub.f32 %v3551, %v1675
        %v3580 = vsub.f32 %v3552, %v1676
        %v3581 = vsub.f32 %v3553, %v1677
        %v3582 = vsub.f32 %v3554, %v1678
        %v3583 = vsub.f32 %v3555, %v1679
        %v3584 = vsub.f32 %v3556, %v1680
        %v3585 = vsub.f32 %v3557, %v1681
        %v3586 = vsub.f32 %v3558, %v1682
        %v3587 = vsub.f32 %v3559, %v1683
        %v3588 = vsub.f32 %v3560, %v1684
        %v3589 = vsub.f32 %v3561, %v1685
        %v3590 = vsub.f32 %v3562, %v1686
        %v3591 = vsub.f32 %v3563, %v1687
        %v3592 = vsub.f32 %v3564, %v1688
        %v3593 = vsub.f32 %v3565, %v1689
        %v3594 = vmul.f32 %v3566, 1.442695
        %v3595 = vpow.pop %v3594
        %v3596 = vmul.f32 %v3567, 1.442695
        %v3597 = vpow.pop %v3596
        %v3598 = vmul.f32 %v3568, 1.442695
        %v3599 = vpow.pop %v3598
        %v3600 = vmul.f32 %v3569, 1.442695
        %v3601 = vpow.pop %v3600
        %v3602 = vmul.f32 %v3570, 1.442695
        %v3603 = vpow.pop %v3602
        %v3604 = vmul.f32 %v3571, 1.442695
        %v3605 = vpow.pop %v3604
        %v3606 = vmul.f32 %v3572, 1.442695
        %v3607 = vpow.pop %v3606
        %v3608 = vmul.f32 %v3573, 1.442695
        %v3609 = vpow.pop %v3608
        %v3610 = vmul.f32 %v3574, 1.442695
        %v3611 = vpow.pop %v3610
        %v3612 = vmul.f32 %v3575, 1.442695
        %v3613 = vpow.pop %v3612
        %v3614 = vmul.f32 %v3576, 1.442695
        %v3615 = vpow.pop %v3614
        %v3616 = vmul.f32 %v3577, 1.442695
        %v3617 = vpow.pop %v3616
        %v3618 = vmul.f32 %v3578, 1.442695
        %v3619 = vpow.pop %v3618
        %v3620 = vmul.f32 %v3579, 1.442695
        %v3621 = vpow.pop %v3620
        %v3622 = vmul.f32 %v3580, 1.442695
        %v3623 = vpow.pop %v3622
        %v3624 = vmul.f32 %v3581, 1.442695
        %v3625 = vpow.pop %v3624
        %v3626 = vmul.f32 %v3582, 1.442695
        %v3627 = vpow.pop %v3626
        %v3628 = vmul.f32 %v3583, 1.442695
        %v3629 = vpow.pop %v3628
        %v3630 = vmul.f32 %v3584, 1.442695
        %v3631 = vpow.pop %v3630
        %v3632 = vmul.f32 %v3585, 1.442695
        %v3633 = vpow.pop %v3632
        %v3634 = vmul.f32 %v3586, 1.442695
        %v3635 = vpow.pop %v3634
        %v3636 = vmul.f32 %v3587, 1.442695
        %v3637 = vpow.pop %v3636
        %v3638 = vmul.f32 %v3588, 1.442695
        %v3639 = vpow.pop %v3638
        %v3640 = vmul.f32 %v3589, 1.442695
        %v3641 = vpow.pop %v3640
        %v3642 = vmul.f32 %v3590, 1.442695
        %v3643 = vpow.pop %v3642
        %v3644 = vmul.f32 %v3591, 1.442695
        %v3645 = vpow.pop %v3644
        %v3646 = vmul.f32 %v3592, 1.442695
        %v3647 = vpow.pop %v3646
        %v3648 = vmul.f32 %v3593, 1.442695
        %v3649 = vpow.pop %v3648
        %v3650 = vadd.f32 %v3230, %v3595
        %v3651 = vadd.f32 %v3231, %v3597
        %v3652 = vadd.f32 %v3232, %v3599
        %v3653 = vadd.f32 %v3233, %v3601
        %v3654 = vadd.f32 %v3234, %v3603
        %v3655 = vadd.f32 %v3235, %v3605
        %v3656 = vadd.f32 %v3236, %v3607
        %v3657 = vadd.f32 %v3237, %v3609
        %v3658 = vadd.f32 %v3238, %v3611
        %v3659 = vadd.f32 %v3239, %v3613
        %v3660 = vadd.f32 %v3240, %v3615
        %v3661 = vadd.f32 %v3241, %v3617
        %v3662 = vadd.f32 %v3242, %v3619
        %v3663 = vadd.f32 %v3243, %v3621
        %v3664 = vadd.f32 %v3244, %v3623
        %v3665 = vadd.f32 %v3245, %v3625
        %v3666 = vadd.f32 %v3246, %v3627
        %v3667 = vadd.f32 %v3247, %v3629
        %v3668 = vadd.f32 %v3248, %v3631
        %v3669 = vadd.f32 %v3249, %v3633
        %v3670 = vadd.f32 %v3250, %v3635
        %v3671 = vadd.f32 %v3251, %v3637
        %v3672 = vadd.f32 %v3252, %v3639
        %v3673 = vadd.f32 %v3253, %v3641
        %v3674 = vadd.f32 %v3254, %v3643
        %v3675 = vadd.f32 %v3255, %v3645
        %v3676 = vadd.f32 %v3256, %v3647
        %v3677 = vadd.f32 %v3257, %v3649
        %3678 = vset.pattern.permute.xlu0 4
        %3679 = vperm.xlu0 %3678, %v1212
        %v3680 = vpop.permute.xlu0 %3679
        %3682 = vset.pattern.permute.xlu0 4
        %3683 = vperm.xlu0 %3682, %v1214
        %v3684 = vpop.permute.xlu0 %3683
        %3686 = vset.pattern.permute.xlu0 4
        %3687 = vperm.xlu0 %3686, %v1229
        %v3688 = vpop.permute.xlu0 %3687
        %3690 = vset.pattern.permute.xlu0 4
        %3691 = vperm.xlu0 %3690, %v1231
        %v3692 = vpop.permute.xlu0 %3691
        %3694 = vset.pattern.permute.xlu0 4
        %3695 = vperm.xlu0 %3694, %v1246
        %v3696 = vpop.permute.xlu0 %3695
        %3698 = vset.pattern.permute.xlu0 4
        %3699 = vperm.xlu0 %3698, %v1248
        %v3700 = vpop.permute.xlu0 %3699
        %3702 = vset.pattern.permute.xlu0 4
        %3703 = vperm.xlu0 %3702, %v1263
        %v3704 = vpop.permute.xlu0 %3703
        %3706 = vset.pattern.permute.xlu0 4
        %3707 = vperm.xlu0 %3706, %v1265
        %v3708 = vpop.permute.xlu0 %3707
        %3710 = vset.pattern.permute.xlu0 4
        %3711 = vperm.xlu0 %3710, %v1280
        %v3712 = vpop.permute.xlu0 %3711
        %3714 = vset.pattern.permute.xlu0 4
        %3715 = vperm.xlu0 %3714, %v1282
        %v3716 = vpop.permute.xlu0 %3715
        %3718 = vset.pattern.permute.xlu0 4
        %3719 = vperm.xlu0 %3718, %v1297
        %v3720 = vpop.permute.xlu0 %3719
        %3722 = vset.pattern.permute.xlu0 4
        %3723 = vperm.xlu0 %3722, %v1299
        %v3724 = vpop.permute.xlu0 %3723
        %3726 = vset.pattern.permute.xlu0 4
        %3727 = vperm.xlu0 %3726, %v1314
        %v3728 = vpop.permute.xlu0 %3727
        %3730 = vset.pattern.permute.xlu0 4
        %3731 = vperm.xlu0 %3730, %v1316
        %v3732 = vpop.permute.xlu0 %3731
        %3734 = vset.pattern.permute.xlu0 4
        %3735 = vperm.xlu0 %3734, %v1331
        %v3736 = vpop.permute.xlu0 %3735
        %3738 = vset.pattern.permute.xlu0 4
        %3739 = vperm.xlu0 %3738, %v1333
        %v3740 = vpop.permute.xlu0 %3739
        %3742 = vset.pattern.permute.xlu0 4
        %3743 = vperm.xlu0 %3742, %v1348
        %v3744 = vpop.permute.xlu0 %3743
        %3746 = vset.pattern.permute.xlu0 4
        %3747 = vperm.xlu0 %3746, %v1350
        %v3748 = vpop.permute.xlu0 %3747
        %3750 = vset.pattern.permute.xlu0 4
        %3751 = vperm.xlu0 %3750, %v1365
        %v3752 = vpop.permute.xlu0 %3751
        %3754 = vset.pattern.permute.xlu0 4
        %3755 = vperm.xlu0 %3754, %v1367
        %v3756 = vpop.permute.xlu0 %3755
        %3758 = vset.pattern.permute.xlu0 4
        %3759 = vperm.xlu0 %3758, %v1382
        %v3760 = vpop.permute.xlu0 %3759
        %3762 = vset.pattern.permute.xlu0 4
        %3763 = vperm.xlu0 %3762, %v1384
        %v3764 = vpop.permute.xlu0 %3763
        %3766 = vset.pattern.permute.xlu0 4
        %3767 = vperm.xlu0 %3766, %v1399
        %v3768 = vpop.permute.xlu0 %3767
        %3770 = vset.pattern.permute.xlu0 4
        %3771 = vperm.xlu0 %3770, %v1401
        %v3772 = vpop.permute.xlu0 %3771
        %3774 = vset.pattern.permute.xlu0 4
        %3775 = vperm.xlu0 %3774, %v1416
        %v3776 = vpop.permute.xlu0 %3775
        %3778 = vset.pattern.permute.xlu0 4
        %3779 = vperm.xlu0 %3778, %v1418
        %v3780 = vpop.permute.xlu0 %3779
        %3782 = vset.pattern.permute.xlu0 4
        %3783 = vperm.xlu0 %3782, %v1433
        %v3784 = vpop.permute.xlu0 %3783
        %3786 = vset.pattern.permute.xlu0 4
        %3787 = vperm.xlu0 %3786, %v1435
        %v3788 = vpop.permute.xlu0 %3787
        %v3790 = vmul.f32 %v3595, %v3680
        %v3791 = vmul.f32 %v3597, %v3684
        %v3792 = vmul.f32 %v3599, %v3688
        %v3793 = vmul.f32 %v3601, %v3692
        %v3794 = vmul.f32 %v3603, %v3696
        %v3795 = vmul.f32 %v3605, %v3700
        %v3796 = vmul.f32 %v3607, %v3704
        %v3797 = vmul.f32 %v3609, %v3708
        %v3798 = vmul.f32 %v3611, %v3712
        %v3799 = vmul.f32 %v3613, %v3716
        %v3800 = vmul.f32 %v3615, %v3720
        %v3801 = vmul.f32 %v3617, %v3724
        %v3802 = vmul.f32 %v3619, %v3728
        %v3803 = vmul.f32 %v3621, %v3732
        %v3804 = vmul.f32 %v3623, %v3736
        %v3805 = vmul.f32 %v3625, %v3740
        %v3806 = vmul.f32 %v3627, %v3744
        %v3807 = vmul.f32 %v3629, %v3748
        %v3808 = vmul.f32 %v3631, %v3752
        %v3809 = vmul.f32 %v3633, %v3756
        %v3810 = vmul.f32 %v3635, %v3760
        %v3811 = vmul.f32 %v3637, %v3764
        %v3812 = vmul.f32 %v3639, %v3768
        %v3813 = vmul.f32 %v3641, %v3772
        %v3814 = vmul.f32 %v3643, %v3776
        %v3815 = vmul.f32 %v3645, %v3780
        %v3816 = vmul.f32 %v3647, %v3784
        %v3817 = vmul.f32 %v3649, %v3788
        %v3818 = vadd.f32 %v3398, %v3790
        %v3819 = vadd.f32 %v3399, %v3791
        %v3820 = vadd.f32 %v3400, %v3792
        %v3821 = vadd.f32 %v3401, %v3793
        %v3822 = vadd.f32 %v3402, %v3794
        %v3823 = vadd.f32 %v3403, %v3795
        %v3824 = vadd.f32 %v3404, %v3796
        %v3825 = vadd.f32 %v3405, %v3797
        %v3826 = vadd.f32 %v3406, %v3798
        %v3827 = vadd.f32 %v3407, %v3799
        %v3828 = vadd.f32 %v3408, %v3800
        %v3829 = vadd.f32 %v3409, %v3801
        %v3830 = vadd.f32 %v3410, %v3802
        %v3831 = vadd.f32 %v3411, %v3803
        %v3832 = vadd.f32 %v3412, %v3804
        %v3833 = vadd.f32 %v3413, %v3805
        %v3834 = vadd.f32 %v3414, %v3806
        %v3835 = vadd.f32 %v3415, %v3807
        %v3836 = vadd.f32 %v3416, %v3808
        %v3837 = vadd.f32 %v3417, %v3809
        %v3838 = vadd.f32 %v3418, %v3810
        %v3839 = vadd.f32 %v3419, %v3811
        %v3840 = vadd.f32 %v3420, %v3812
        %v3841 = vadd.f32 %v3421, %v3813
        %v3842 = vadd.f32 %v3422, %v3814
        %v3843 = vadd.f32 %v3423, %v3815
        %v3844 = vadd.f32 %v3424, %v3816
        %v3845 = vadd.f32 %v3425, %v3817
        %3846 = vset.pattern.permute.xlu0 5
        %3847 = vperm.xlu0 %3846, %v960
        %v3848 = vpop.permute.xlu0 %3847
        %3850 = vset.pattern.permute.xlu0 5
        %3851 = vperm.xlu0 %3850, %v962
        %v3852 = vpop.permute.xlu0 %3851
        %3854 = vset.pattern.permute.xlu0 5
        %3855 = vperm.xlu0 %3854, %v977
        %v3856 = vpop.permute.xlu0 %3855
        %3858 = vset.pattern.permute.xlu0 5
        %3859 = vperm.xlu0 %3858, %v979
        %v3860 = vpop.permute.xlu0 %3859
        %3862 = vset.pattern.permute.xlu0 5
        %3863 = vperm.xlu0 %3862, %v994
        %v3864 = vpop.permute.xlu0 %3863
        %3866 = vset.pattern.permute.xlu0 5
        %3867 = vperm.xlu0 %3866, %v996
        %v3868 = vpop.permute.xlu0 %3867
        %3870 = vset.pattern.permute.xlu0 5
        %3871 = vperm.xlu0 %3870, %v1011
        %v3872 = vpop.permute.xlu0 %3871
        %3874 = vset.pattern.permute.xlu0 5
        %3875 = vperm.xlu0 %3874, %v1013
        %v3876 = vpop.permute.xlu0 %3875
        %3878 = vset.pattern.permute.xlu0 5
        %3879 = vperm.xlu0 %3878, %v1028
        %v3880 = vpop.permute.xlu0 %3879
        %3882 = vset.pattern.permute.xlu0 5
        %3883 = vperm.xlu0 %3882, %v1030
        %v3884 = vpop.permute.xlu0 %3883
        %3886 = vset.pattern.permute.xlu0 5
        %3887 = vperm.xlu0 %3886, %v1045
        %v3888 = vpop.permute.xlu0 %3887
        %3890 = vset.pattern.permute.xlu0 5
        %3891 = vperm.xlu0 %3890, %v1047
        %v3892 = vpop.permute.xlu0 %3891
        %3894 = vset.pattern.permute.xlu0 5
        %3895 = vperm.xlu0 %3894, %v1062
        %v3896 = vpop.permute.xlu0 %3895
        %3898 = vset.pattern.permute.xlu0 5
        %3899 = vperm.xlu0 %3898, %v1064
        %v3900 = vpop.permute.xlu0 %3899
        %3902 = vset.pattern.permute.xlu0 5
        %3903 = vperm.xlu0 %3902, %v1079
        %v3904 = vpop.permute.xlu0 %3903
        %3906 = vset.pattern.permute.xlu0 5
        %3907 = vperm.xlu0 %3906, %v1081
        %v3908 = vpop.permute.xlu0 %3907
        %3910 = vset.pattern.permute.xlu0 5
        %3911 = vperm.xlu0 %3910, %v1096
        %v3912 = vpop.permute.xlu0 %3911
        %3914 = vset.pattern.permute.xlu0 5
        %3915 = vperm.xlu0 %3914, %v1098
        %v3916 = vpop.permute.xlu0 %3915
        %3918 = vset.pattern.permute.xlu0 5
        %3919 = vperm.xlu0 %3918, %v1113
        %v3920 = vpop.permute.xlu0 %3919
        %3922 = vset.pattern.permute.xlu0 5
        %3923 = vperm.xlu0 %3922, %v1115
        %v3924 = vpop.permute.xlu0 %3923
        %3926 = vset.pattern.permute.xlu0 5
        %3927 = vperm.xlu0 %3926, %v1130
        %v3928 = vpop.permute.xlu0 %3927
        %3930 = vset.pattern.permute.xlu0 5
        %3931 = vperm.xlu0 %3930, %v1132
        %v3932 = vpop.permute.xlu0 %3931
        %3934 = vset.pattern.permute.xlu0 5
        %3935 = vperm.xlu0 %3934, %v1147
        %v3936 = vpop.permute.xlu0 %3935
        %3938 = vset.pattern.permute.xlu0 5
        %3939 = vperm.xlu0 %3938, %v1149
        %v3940 = vpop.permute.xlu0 %3939
        %3942 = vset.pattern.permute.xlu0 5
        %3943 = vperm.xlu0 %3942, %v1164
        %v3944 = vpop.permute.xlu0 %3943
        %3946 = vset.pattern.permute.xlu0 5
        %3947 = vperm.xlu0 %3946, %v1166
        %v3948 = vpop.permute.xlu0 %3947
        %3950 = vset.pattern.permute.xlu0 5
        %3951 = vperm.xlu0 %3950, %v1181
        %v3952 = vpop.permute.xlu0 %3951
        %3954 = vset.pattern.permute.xlu0 5
        %3955 = vperm.xlu0 %3954, %v1183
        %v3956 = vpop.permute.xlu0 %3955
        %v3958 = vmul.f32 %v708, %v3848
        %v3959 = vmul.f32 %v710, %v3852
        %v3960 = vmul.f32 %v725, %v3856
        %v3961 = vmul.f32 %v727, %v3860
        %v3962 = vmul.f32 %v742, %v3864
        %v3963 = vmul.f32 %v744, %v3868
        %v3964 = vmul.f32 %v759, %v3872
        %v3965 = vmul.f32 %v761, %v3876
        %v3966 = vmul.f32 %v776, %v3880
        %v3967 = vmul.f32 %v778, %v3884
        %v3968 = vmul.f32 %v793, %v3888
        %v3969 = vmul.f32 %v795, %v3892
        %v3970 = vmul.f32 %v810, %v3896
        %v3971 = vmul.f32 %v812, %v3900
        %v3972 = vmul.f32 %v827, %v3904
        %v3973 = vmul.f32 %v829, %v3908
        %v3974 = vmul.f32 %v844, %v3912
        %v3975 = vmul.f32 %v846, %v3916
        %v3976 = vmul.f32 %v861, %v3920
        %v3977 = vmul.f32 %v863, %v3924
        %v3978 = vmul.f32 %v878, %v3928
        %v3979 = vmul.f32 %v880, %v3932
        %v3980 = vmul.f32 %v895, %v3936
        %v3981 = vmul.f32 %v897, %v3940
        %v3982 = vmul.f32 %v912, %v3944
        %v3983 = vmul.f32 %v914, %v3948
        %v3984 = vmul.f32 %v929, %v3952
        %v3985 = vmul.f32 %v931, %v3956
        %v3986 = vsub.f32 %v3958, %v1662
        %v3987 = vsub.f32 %v3959, %v1663
        %v3988 = vsub.f32 %v3960, %v1664
        %v3989 = vsub.f32 %v3961, %v1665
        %v3990 = vsub.f32 %v3962, %v1666
        %v3991 = vsub.f32 %v3963, %v1667
        %v3992 = vsub.f32 %v3964, %v1668
        %v3993 = vsub.f32 %v3965, %v1669
        %v3994 = vsub.f32 %v3966, %v1670
        %v3995 = vsub.f32 %v3967, %v1671
        %v3996 = vsub.f32 %v3968, %v1672
        %v3997 = vsub.f32 %v3969, %v1673
        %v3998 = vsub.f32 %v3970, %v1674
        %v3999 = vsub.f32 %v3971, %v1675
        %v4000 = vsub.f32 %v3972, %v1676
        %v4001 = vsub.f32 %v3973, %v1677
        %v4002 = vsub.f32 %v3974, %v1678
        %v4003 = vsub.f32 %v3975, %v1679
        %v4004 = vsub.f32 %v3976, %v1680
        %v4005 = vsub.f32 %v3977, %v1681
        %v4006 = vsub.f32 %v3978, %v1682
        %v4007 = vsub.f32 %v3979, %v1683
        %v4008 = vsub.f32 %v3980, %v1684
        %v4009 = vsub.f32 %v3981, %v1685
        %v4010 = vsub.f32 %v3982, %v1686
        %v4011 = vsub.f32 %v3983, %v1687
        %v4012 = vsub.f32 %v3984, %v1688
        %v4013 = vsub.f32 %v3985, %v1689
        %v4014 = vmul.f32 %v3986, 1.442695
        %v4015 = vpow.pop %v4014
        %v4016 = vmul.f32 %v3987, 1.442695
        %v4017 = vpow.pop %v4016
        %v4018 = vmul.f32 %v3988, 1.442695
        %v4019 = vpow.pop %v4018
        %v4020 = vmul.f32 %v3989, 1.442695
        %v4021 = vpow.pop %v4020
        %v4022 = vmul.f32 %v3990, 1.442695
        %v4023 = vpow.pop %v4022
        %v4024 = vmul.f32 %v3991, 1.442695
        %v4025 = vpow.pop %v4024
        %v4026 = vmul.f32 %v3992, 1.442695
        %v4027 = vpow.pop %v4026
        %v4028 = vmul.f32 %v3993, 1.442695
        %v4029 = vpow.pop %v4028
        %v4030 = vmul.f32 %v3994, 1.442695
        %v4031 = vpow.pop %v4030
        %v4032 = vmul.f32 %v3995, 1.442695
        %v4033 = vpow.pop %v4032
        %v4034 = vmul.f32 %v3996, 1.442695
        %v4035 = vpow.pop %v4034
        %v4036 = vmul.f32 %v3997, 1.442695
        %v4037 = vpow.pop %v4036
        %v4038 = vmul.f32 %v3998, 1.442695
        %v4039 = vpow.pop %v4038
        %v4040 = vmul.f32 %v3999, 1.442695
        %v4041 = vpow.pop %v4040
        %v4042 = vmul.f32 %v4000, 1.442695
        %v4043 = vpow.pop %v4042
        %v4044 = vmul.f32 %v4001, 1.442695
        %v4045 = vpow.pop %v4044
        %v4046 = vmul.f32 %v4002, 1.442695
        %v4047 = vpow.pop %v4046
        %v4048 = vmul.f32 %v4003, 1.442695
        %v4049 = vpow.pop %v4048
        %v4050 = vmul.f32 %v4004, 1.442695
        %v4051 = vpow.pop %v4050
        %v4052 = vmul.f32 %v4005, 1.442695
        %v4053 = vpow.pop %v4052
        %v4054 = vmul.f32 %v4006, 1.442695
        %v4055 = vpow.pop %v4054
        %v4056 = vmul.f32 %v4007, 1.442695
        %v4057 = vpow.pop %v4056
        %v4058 = vmul.f32 %v4008, 1.442695
        %v4059 = vpow.pop %v4058
        %v4060 = vmul.f32 %v4009, 1.442695
        %v4061 = vpow.pop %v4060
        %v4062 = vmul.f32 %v4010, 1.442695
        %v4063 = vpow.pop %v4062
        %v4064 = vmul.f32 %v4011, 1.442695
        %v4065 = vpow.pop %v4064
        %v4066 = vmul.f32 %v4012, 1.442695
        %v4067 = vpow.pop %v4066
        %v4068 = vmul.f32 %v4013, 1.442695
        %v4069 = vpow.pop %v4068
        %v4070 = vadd.f32 %v3650, %v4015
        %v4071 = vadd.f32 %v3651, %v4017
        %v4072 = vadd.f32 %v3652, %v4019
        %v4073 = vadd.f32 %v3653, %v4021
        %v4074 = vadd.f32 %v3654, %v4023
        %v4075 = vadd.f32 %v3655, %v4025
        %v4076 = vadd.f32 %v3656, %v4027
        %v4077 = vadd.f32 %v3657, %v4029
        %v4078 = vadd.f32 %v3658, %v4031
        %v4079 = vadd.f32 %v3659, %v4033
        %v4080 = vadd.f32 %v3660, %v4035
        %v4081 = vadd.f32 %v3661, %v4037
        %v4082 = vadd.f32 %v3662, %v4039
        %v4083 = vadd.f32 %v3663, %v4041
        %v4084 = vadd.f32 %v3664, %v4043
        %v4085 = vadd.f32 %v3665, %v4045
        %v4086 = vadd.f32 %v3666, %v4047
        %v4087 = vadd.f32 %v3667, %v4049
        %v4088 = vadd.f32 %v3668, %v4051
        %v4089 = vadd.f32 %v3669, %v4053
        %v4090 = vadd.f32 %v3670, %v4055
        %v4091 = vadd.f32 %v3671, %v4057
        %v4092 = vadd.f32 %v3672, %v4059
        %v4093 = vadd.f32 %v3673, %v4061
        %v4094 = vadd.f32 %v3674, %v4063
        %v4095 = vadd.f32 %v3675, %v4065
        %v4096 = vadd.f32 %v3676, %v4067
        %v4097 = vadd.f32 %v3677, %v4069
        %4098 = vset.pattern.permute.xlu0 5
        %4099 = vperm.xlu0 %4098, %v1212
        %v4100 = vpop.permute.xlu0 %4099
        %4102 = vset.pattern.permute.xlu0 5
        %4103 = vperm.xlu0 %4102, %v1214
        %v4104 = vpop.permute.xlu0 %4103
        %4106 = vset.pattern.permute.xlu0 5
        %4107 = vperm.xlu0 %4106, %v1229
        %v4108 = vpop.permute.xlu0 %4107
        %4110 = vset.pattern.permute.xlu0 5
        %4111 = vperm.xlu0 %4110, %v1231
        %v4112 = vpop.permute.xlu0 %4111
        %4114 = vset.pattern.permute.xlu0 5
        %4115 = vperm.xlu0 %4114, %v1246
        %v4116 = vpop.permute.xlu0 %4115
        %4118 = vset.pattern.permute.xlu0 5
        %4119 = vperm.xlu0 %4118, %v1248
        %v4120 = vpop.permute.xlu0 %4119
        %4122 = vset.pattern.permute.xlu0 5
        %4123 = vperm.xlu0 %4122, %v1263
        %v4124 = vpop.permute.xlu0 %4123
        %4126 = vset.pattern.permute.xlu0 5
        %4127 = vperm.xlu0 %4126, %v1265
        %v4128 = vpop.permute.xlu0 %4127
        %4130 = vset.pattern.permute.xlu0 5
        %4131 = vperm.xlu0 %4130, %v1280
        %v4132 = vpop.permute.xlu0 %4131
        %4134 = vset.pattern.permute.xlu0 5
        %4135 = vperm.xlu0 %4134, %v1282
        %v4136 = vpop.permute.xlu0 %4135
        %4138 = vset.pattern.permute.xlu0 5
        %4139 = vperm.xlu0 %4138, %v1297
        %v4140 = vpop.permute.xlu0 %4139
        %4142 = vset.pattern.permute.xlu0 5
        %4143 = vperm.xlu0 %4142, %v1299
        %v4144 = vpop.permute.xlu0 %4143
        %4146 = vset.pattern.permute.xlu0 5
        %4147 = vperm.xlu0 %4146, %v1314
        %v4148 = vpop.permute.xlu0 %4147
        %4150 = vset.pattern.permute.xlu0 5
        %4151 = vperm.xlu0 %4150, %v1316
        %v4152 = vpop.permute.xlu0 %4151
        %4154 = vset.pattern.permute.xlu0 5
        %4155 = vperm.xlu0 %4154, %v1331
        %v4156 = vpop.permute.xlu0 %4155
        %4158 = vset.pattern.permute.xlu0 5
        %4159 = vperm.xlu0 %4158, %v1333
        %v4160 = vpop.permute.xlu0 %4159
        %4162 = vset.pattern.permute.xlu0 5
        %4163 = vperm.xlu0 %4162, %v1348
        %v4164 = vpop.permute.xlu0 %4163
        %4166 = vset.pattern.permute.xlu0 5
        %4167 = vperm.xlu0 %4166, %v1350
        %v4168 = vpop.permute.xlu0 %4167
        %4170 = vset.pattern.permute.xlu0 5
        %4171 = vperm.xlu0 %4170, %v1365
        %v4172 = vpop.permute.xlu0 %4171
        %4174 = vset.pattern.permute.xlu0 5
        %4175 = vperm.xlu0 %4174, %v1367
        %v4176 = vpop.permute.xlu0 %4175
        %4178 = vset.pattern.permute.xlu0 5
        %4179 = vperm.xlu0 %4178, %v1382
        %v4180 = vpop.permute.xlu0 %4179
        %4182 = vset.pattern.permute.xlu0 5
        %4183 = vperm.xlu0 %4182, %v1384
        %v4184 = vpop.permute.xlu0 %4183
        %4186 = vset.pattern.permute.xlu0 5
        %4187 = vperm.xlu0 %4186, %v1399
        %v4188 = vpop.permute.xlu0 %4187
        %4190 = vset.pattern.permute.xlu0 5
        %4191 = vperm.xlu0 %4190, %v1401
        %v4192 = vpop.permute.xlu0 %4191
        %4194 = vset.pattern.permute.xlu0 5
        %4195 = vperm.xlu0 %4194, %v1416
        %v4196 = vpop.permute.xlu0 %4195
        %4198 = vset.pattern.permute.xlu0 5
        %4199 = vperm.xlu0 %4198, %v1418
        %v4200 = vpop.permute.xlu0 %4199
        %4202 = vset.pattern.permute.xlu0 5
        %4203 = vperm.xlu0 %4202, %v1433
        %v4204 = vpop.permute.xlu0 %4203
        %4206 = vset.pattern.permute.xlu0 5
        %4207 = vperm.xlu0 %4206, %v1435
        %v4208 = vpop.permute.xlu0 %4207
        %v4210 = vmul.f32 %v4015, %v4100
        %v4211 = vmul.f32 %v4017, %v4104
        %v4212 = vmul.f32 %v4019, %v4108
        %v4213 = vmul.f32 %v4021, %v4112
        %v4214 = vmul.f32 %v4023, %v4116
        %v4215 = vmul.f32 %v4025, %v4120
        %v4216 = vmul.f32 %v4027, %v4124
        %v4217 = vmul.f32 %v4029, %v4128
        %v4218 = vmul.f32 %v4031, %v4132
        %v4219 = vmul.f32 %v4033, %v4136
        %v4220 = vmul.f32 %v4035, %v4140
        %v4221 = vmul.f32 %v4037, %v4144
        %v4222 = vmul.f32 %v4039, %v4148
        %v4223 = vmul.f32 %v4041, %v4152
        %v4224 = vmul.f32 %v4043, %v4156
        %v4225 = vmul.f32 %v4045, %v4160
        %v4226 = vmul.f32 %v4047, %v4164
        %v4227 = vmul.f32 %v4049, %v4168
        %v4228 = vmul.f32 %v4051, %v4172
        %v4229 = vmul.f32 %v4053, %v4176
        %v4230 = vmul.f32 %v4055, %v4180
        %v4231 = vmul.f32 %v4057, %v4184
        %v4232 = vmul.f32 %v4059, %v4188
        %v4233 = vmul.f32 %v4061, %v4192
        %v4234 = vmul.f32 %v4063, %v4196
        %v4235 = vmul.f32 %v4065, %v4200
        %v4236 = vmul.f32 %v4067, %v4204
        %v4237 = vmul.f32 %v4069, %v4208
        %v4238 = vadd.f32 %v3818, %v4210
        %v4239 = vadd.f32 %v3819, %v4211
        %v4240 = vadd.f32 %v3820, %v4212
        %v4241 = vadd.f32 %v3821, %v4213
        %v4242 = vadd.f32 %v3822, %v4214
        %v4243 = vadd.f32 %v3823, %v4215
        %v4244 = vadd.f32 %v3824, %v4216
        %v4245 = vadd.f32 %v3825, %v4217
        %v4246 = vadd.f32 %v3826, %v4218
        %v4247 = vadd.f32 %v3827, %v4219
        %v4248 = vadd.f32 %v3828, %v4220
        %v4249 = vadd.f32 %v3829, %v4221
        %v4250 = vadd.f32 %v3830, %v4222
        %v4251 = vadd.f32 %v3831, %v4223
        %v4252 = vadd.f32 %v3832, %v4224
        %v4253 = vadd.f32 %v3833, %v4225
        %v4254 = vadd.f32 %v3834, %v4226
        %v4255 = vadd.f32 %v3835, %v4227
        %v4256 = vadd.f32 %v3836, %v4228
        %v4257 = vadd.f32 %v3837, %v4229
        %v4258 = vadd.f32 %v3838, %v4230
        %v4259 = vadd.f32 %v3839, %v4231
        %v4260 = vadd.f32 %v3840, %v4232
        %v4261 = vadd.f32 %v3841, %v4233
        %v4262 = vadd.f32 %v3842, %v4234
        %v4263 = vadd.f32 %v3843, %v4235
        %v4264 = vadd.f32 %v3844, %v4236
        %v4265 = vadd.f32 %v3845, %v4237
        %4266 = vset.pattern.permute.xlu0 6
        %4267 = vperm.xlu0 %4266, %v960
        %v4268 = vpop.permute.xlu0 %4267
        %4270 = vset.pattern.permute.xlu0 6
        %4271 = vperm.xlu0 %4270, %v962
        %v4272 = vpop.permute.xlu0 %4271
        %4274 = vset.pattern.permute.xlu0 6
        %4275 = vperm.xlu0 %4274, %v977
        %v4276 = vpop.permute.xlu0 %4275
        %4278 = vset.pattern.permute.xlu0 6
        %4279 = vperm.xlu0 %4278, %v979
        %v4280 = vpop.permute.xlu0 %4279
        %4282 = vset.pattern.permute.xlu0 6
        %4283 = vperm.xlu0 %4282, %v994
        %v4284 = vpop.permute.xlu0 %4283
        %4286 = vset.pattern.permute.xlu0 6
        %4287 = vperm.xlu0 %4286, %v996
        %v4288 = vpop.permute.xlu0 %4287
        %4290 = vset.pattern.permute.xlu0 6
        %4291 = vperm.xlu0 %4290, %v1011
        %v4292 = vpop.permute.xlu0 %4291
        %4294 = vset.pattern.permute.xlu0 6
        %4295 = vperm.xlu0 %4294, %v1013
        %v4296 = vpop.permute.xlu0 %4295
        %4298 = vset.pattern.permute.xlu0 6
        %4299 = vperm.xlu0 %4298, %v1028
        %v4300 = vpop.permute.xlu0 %4299
        %4302 = vset.pattern.permute.xlu0 6
        %4303 = vperm.xlu0 %4302, %v1030
        %v4304 = vpop.permute.xlu0 %4303
        %4306 = vset.pattern.permute.xlu0 6
        %4307 = vperm.xlu0 %4306, %v1045
        %v4308 = vpop.permute.xlu0 %4307
        %4310 = vset.pattern.permute.xlu0 6
        %4311 = vperm.xlu0 %4310, %v1047
        %v4312 = vpop.permute.xlu0 %4311
        %4314 = vset.pattern.permute.xlu0 6
        %4315 = vperm.xlu0 %4314, %v1062
        %v4316 = vpop.permute.xlu0 %4315
        %4318 = vset.pattern.permute.xlu0 6
        %4319 = vperm.xlu0 %4318, %v1064
        %v4320 = vpop.permute.xlu0 %4319
        %4322 = vset.pattern.permute.xlu0 6
        %4323 = vperm.xlu0 %4322, %v1079
        %v4324 = vpop.permute.xlu0 %4323
        %4326 = vset.pattern.permute.xlu0 6
        %4327 = vperm.xlu0 %4326, %v1081
        %v4328 = vpop.permute.xlu0 %4327
        %4330 = vset.pattern.permute.xlu0 6
        %4331 = vperm.xlu0 %4330, %v1096
        %v4332 = vpop.permute.xlu0 %4331
        %4334 = vset.pattern.permute.xlu0 6
        %4335 = vperm.xlu0 %4334, %v1098
        %v4336 = vpop.permute.xlu0 %4335
        %4338 = vset.pattern.permute.xlu0 6
        %4339 = vperm.xlu0 %4338, %v1113
        %v4340 = vpop.permute.xlu0 %4339
        %4342 = vset.pattern.permute.xlu0 6
        %4343 = vperm.xlu0 %4342, %v1115
        %v4344 = vpop.permute.xlu0 %4343
        %4346 = vset.pattern.permute.xlu0 6
        %4347 = vperm.xlu0 %4346, %v1130
        %v4348 = vpop.permute.xlu0 %4347
        %4350 = vset.pattern.permute.xlu0 6
        %4351 = vperm.xlu0 %4350, %v1132
        %v4352 = vpop.permute.xlu0 %4351
        %4354 = vset.pattern.permute.xlu0 6
        %4355 = vperm.xlu0 %4354, %v1147
        %v4356 = vpop.permute.xlu0 %4355
        %4358 = vset.pattern.permute.xlu0 6
        %4359 = vperm.xlu0 %4358, %v1149
        %v4360 = vpop.permute.xlu0 %4359
        %4362 = vset.pattern.permute.xlu0 6
        %4363 = vperm.xlu0 %4362, %v1164
        %v4364 = vpop.permute.xlu0 %4363
        %4366 = vset.pattern.permute.xlu0 6
        %4367 = vperm.xlu0 %4366, %v1166
        %v4368 = vpop.permute.xlu0 %4367
        %4370 = vset.pattern.permute.xlu0 6
        %4371 = vperm.xlu0 %4370, %v1181
        %v4372 = vpop.permute.xlu0 %4371
        %4374 = vset.pattern.permute.xlu0 6
        %4375 = vperm.xlu0 %4374, %v1183
        %v4376 = vpop.permute.xlu0 %4375
        %v4378 = vmul.f32 %v708, %v4268
        %v4379 = vmul.f32 %v710, %v4272
        %v4380 = vmul.f32 %v725, %v4276
        %v4381 = vmul.f32 %v727, %v4280
        %v4382 = vmul.f32 %v742, %v4284
        %v4383 = vmul.f32 %v744, %v4288
        %v4384 = vmul.f32 %v759, %v4292
        %v4385 = vmul.f32 %v761, %v4296
        %v4386 = vmul.f32 %v776, %v4300
        %v4387 = vmul.f32 %v778, %v4304
        %v4388 = vmul.f32 %v793, %v4308
        %v4389 = vmul.f32 %v795, %v4312
        %v4390 = vmul.f32 %v810, %v4316
        %v4391 = vmul.f32 %v812, %v4320
        %v4392 = vmul.f32 %v827, %v4324
        %v4393 = vmul.f32 %v829, %v4328
        %v4394 = vmul.f32 %v844, %v4332
        %v4395 = vmul.f32 %v846, %v4336
        %v4396 = vmul.f32 %v861, %v4340
        %v4397 = vmul.f32 %v863, %v4344
        %v4398 = vmul.f32 %v878, %v4348
        %v4399 = vmul.f32 %v880, %v4352
        %v4400 = vmul.f32 %v895, %v4356
        %v4401 = vmul.f32 %v897, %v4360
        %v4402 = vmul.f32 %v912, %v4364
        %v4403 = vmul.f32 %v914, %v4368
        %v4404 = vmul.f32 %v929, %v4372
        %v4405 = vmul.f32 %v931, %v4376
        %v4406 = vsub.f32 %v4378, %v1662
        %v4407 = vsub.f32 %v4379, %v1663
        %v4408 = vsub.f32 %v4380, %v1664
        %v4409 = vsub.f32 %v4381, %v1665
        %v4410 = vsub.f32 %v4382, %v1666
        %v4411 = vsub.f32 %v4383, %v1667
        %v4412 = vsub.f32 %v4384, %v1668
        %v4413 = vsub.f32 %v4385, %v1669
        %v4414 = vsub.f32 %v4386, %v1670
        %v4415 = vsub.f32 %v4387, %v1671
        %v4416 = vsub.f32 %v4388, %v1672
        %v4417 = vsub.f32 %v4389, %v1673
        %v4418 = vsub.f32 %v4390, %v1674
        %v4419 = vsub.f32 %v4391, %v1675
        %v4420 = vsub.f32 %v4392, %v1676
        %v4421 = vsub.f32 %v4393, %v1677
        %v4422 = vsub.f32 %v4394, %v1678
        %v4423 = vsub.f32 %v4395, %v1679
        %v4424 = vsub.f32 %v4396, %v1680
        %v4425 = vsub.f32 %v4397, %v1681
        %v4426 = vsub.f32 %v4398, %v1682
        %v4427 = vsub.f32 %v4399, %v1683
        %v4428 = vsub.f32 %v4400, %v1684
        %v4429 = vsub.f32 %v4401, %v1685
        %v4430 = vsub.f32 %v4402, %v1686
        %v4431 = vsub.f32 %v4403, %v1687
        %v4432 = vsub.f32 %v4404, %v1688
        %v4433 = vsub.f32 %v4405, %v1689
        %v4434 = vmul.f32 %v4406, 1.442695
        %v4435 = vpow.pop %v4434
        %v4436 = vmul.f32 %v4407, 1.442695
        %v4437 = vpow.pop %v4436
        %v4438 = vmul.f32 %v4408, 1.442695
        %v4439 = vpow.pop %v4438
        %v4440 = vmul.f32 %v4409, 1.442695
        %v4441 = vpow.pop %v4440
        %v4442 = vmul.f32 %v4410, 1.442695
        %v4443 = vpow.pop %v4442
        %v4444 = vmul.f32 %v4411, 1.442695
        %v4445 = vpow.pop %v4444
        %v4446 = vmul.f32 %v4412, 1.442695
        %v4447 = vpow.pop %v4446
        %v4448 = vmul.f32 %v4413, 1.442695
        %v4449 = vpow.pop %v4448
        %v4450 = vmul.f32 %v4414, 1.442695
        %v4451 = vpow.pop %v4450
        %v4452 = vmul.f32 %v4415, 1.442695
        %v4453 = vpow.pop %v4452
        %v4454 = vmul.f32 %v4416, 1.442695
        %v4455 = vpow.pop %v4454
        %v4456 = vmul.f32 %v4417, 1.442695
        %v4457 = vpow.pop %v4456
        %v4458 = vmul.f32 %v4418, 1.442695
        %v4459 = vpow.pop %v4458
        %v4460 = vmul.f32 %v4419, 1.442695
        %v4461 = vpow.pop %v4460
        %v4462 = vmul.f32 %v4420, 1.442695
        %v4463 = vpow.pop %v4462
        %v4464 = vmul.f32 %v4421, 1.442695
        %v4465 = vpow.pop %v4464
        %v4466 = vmul.f32 %v4422, 1.442695
        %v4467 = vpow.pop %v4466
        %v4468 = vmul.f32 %v4423, 1.442695
        %v4469 = vpow.pop %v4468
        %v4470 = vmul.f32 %v4424, 1.442695
        %v4471 = vpow.pop %v4470
        %v4472 = vmul.f32 %v4425, 1.442695
        %v4473 = vpow.pop %v4472
        %v4474 = vmul.f32 %v4426, 1.442695
        %v4475 = vpow.pop %v4474
        %v4476 = vmul.f32 %v4427, 1.442695
        %v4477 = vpow.pop %v4476
        %v4478 = vmul.f32 %v4428, 1.442695
        %v4479 = vpow.pop %v4478
        %v4480 = vmul.f32 %v4429, 1.442695
        %v4481 = vpow.pop %v4480
        %v4482 = vmul.f32 %v4430, 1.442695
        %v4483 = vpow.pop %v4482
        %v4484 = vmul.f32 %v4431, 1.442695
        %v4485 = vpow.pop %v4484
        %v4486 = vmul.f32 %v4432, 1.442695
        %v4487 = vpow.pop %v4486
        %v4488 = vmul.f32 %v4433, 1.442695
        %v4489 = vpow.pop %v4488
        %v4490 = vadd.f32 %v4070, %v4435
        %v4491 = vadd.f32 %v4071, %v4437
        %v4492 = vadd.f32 %v4072, %v4439
        %v4493 = vadd.f32 %v4073, %v4441
        %v4494 = vadd.f32 %v4074, %v4443
        %v4495 = vadd.f32 %v4075, %v4445
        %v4496 = vadd.f32 %v4076, %v4447
        %v4497 = vadd.f32 %v4077, %v4449
        %v4498 = vadd.f32 %v4078, %v4451
        %v4499 = vadd.f32 %v4079, %v4453
        %v4500 = vadd.f32 %v4080, %v4455
        %v4501 = vadd.f32 %v4081, %v4457
        %v4502 = vadd.f32 %v4082, %v4459
        %v4503 = vadd.f32 %v4083, %v4461
        %v4504 = vadd.f32 %v4084, %v4463
        %v4505 = vadd.f32 %v4085, %v4465
        %v4506 = vadd.f32 %v4086, %v4467
        %v4507 = vadd.f32 %v4087, %v4469
        %v4508 = vadd.f32 %v4088, %v4471
        %v4509 = vadd.f32 %v4089, %v4473
        %v4510 = vadd.f32 %v4090, %v4475
        %v4511 = vadd.f32 %v4091, %v4477
        %v4512 = vadd.f32 %v4092, %v4479
        %v4513 = vadd.f32 %v4093, %v4481
        %v4514 = vadd.f32 %v4094, %v4483
        %v4515 = vadd.f32 %v4095, %v4485
        %v4516 = vadd.f32 %v4096, %v4487
        %v4517 = vadd.f32 %v4097, %v4489
        %4518 = vset.pattern.permute.xlu0 6
        %4519 = vperm.xlu0 %4518, %v1212
        %v4520 = vpop.permute.xlu0 %4519
        %4522 = vset.pattern.permute.xlu0 6
        %4523 = vperm.xlu0 %4522, %v1214
        %v4524 = vpop.permute.xlu0 %4523
        %4526 = vset.pattern.permute.xlu0 6
        %4527 = vperm.xlu0 %4526, %v1229
        %v4528 = vpop.permute.xlu0 %4527
        %4530 = vset.pattern.permute.xlu0 6
        %4531 = vperm.xlu0 %4530, %v1231
        %v4532 = vpop.permute.xlu0 %4531
        %4534 = vset.pattern.permute.xlu0 6
        %4535 = vperm.xlu0 %4534, %v1246
        %v4536 = vpop.permute.xlu0 %4535
        %4538 = vset.pattern.permute.xlu0 6
        %4539 = vperm.xlu0 %4538, %v1248
        %v4540 = vpop.permute.xlu0 %4539
        %4542 = vset.pattern.permute.xlu0 6
        %4543 = vperm.xlu0 %4542, %v1263
        %v4544 = vpop.permute.xlu0 %4543
        %4546 = vset.pattern.permute.xlu0 6
        %4547 = vperm.xlu0 %4546, %v1265
        %v4548 = vpop.permute.xlu0 %4547
        %4550 = vset.pattern.permute.xlu0 6
        %4551 = vperm.xlu0 %4550, %v1280
        %v4552 = vpop.permute.xlu0 %4551
        %4554 = vset.pattern.permute.xlu0 6
        %4555 = vperm.xlu0 %4554, %v1282
        %v4556 = vpop.permute.xlu0 %4555
        %4558 = vset.pattern.permute.xlu0 6
        %4559 = vperm.xlu0 %4558, %v1297
        %v4560 = vpop.permute.xlu0 %4559
        %4562 = vset.pattern.permute.xlu0 6
        %4563 = vperm.xlu0 %4562, %v1299
        %v4564 = vpop.permute.xlu0 %4563
        %4566 = vset.pattern.permute.xlu0 6
        %4567 = vperm.xlu0 %4566, %v1314
        %v4568 = vpop.permute.xlu0 %4567
        %4570 = vset.pattern.permute.xlu0 6
        %4571 = vperm.xlu0 %4570, %v1316
        %v4572 = vpop.permute.xlu0 %4571
        %4574 = vset.pattern.permute.xlu0 6
        %4575 = vperm.xlu0 %4574, %v1331
        %v4576 = vpop.permute.xlu0 %4575
        %4578 = vset.pattern.permute.xlu0 6
        %4579 = vperm.xlu0 %4578, %v1333
        %v4580 = vpop.permute.xlu0 %4579
        %4582 = vset.pattern.permute.xlu0 6
        %4583 = vperm.xlu0 %4582, %v1348
        %v4584 = vpop.permute.xlu0 %4583
        %4586 = vset.pattern.permute.xlu0 6
        %4587 = vperm.xlu0 %4586, %v1350
        %v4588 = vpop.permute.xlu0 %4587
        %4590 = vset.pattern.permute.xlu0 6
        %4591 = vperm.xlu0 %4590, %v1365
        %v4592 = vpop.permute.xlu0 %4591
        %4594 = vset.pattern.permute.xlu0 6
        %4595 = vperm.xlu0 %4594, %v1367
        %v4596 = vpop.permute.xlu0 %4595
        %4598 = vset.pattern.permute.xlu0 6
        %4599 = vperm.xlu0 %4598, %v1382
        %v4600 = vpop.permute.xlu0 %4599
        %4602 = vset.pattern.permute.xlu0 6
        %4603 = vperm.xlu0 %4602, %v1384
        %v4604 = vpop.permute.xlu0 %4603
        %4606 = vset.pattern.permute.xlu0 6
        %4607 = vperm.xlu0 %4606, %v1399
        %v4608 = vpop.permute.xlu0 %4607
        %4610 = vset.pattern.permute.xlu0 6
        %4611 = vperm.xlu0 %4610, %v1401
        %v4612 = vpop.permute.xlu0 %4611
        %4614 = vset.pattern.permute.xlu0 6
        %4615 = vperm.xlu0 %4614, %v1416
        %v4616 = vpop.permute.xlu0 %4615
        %4618 = vset.pattern.permute.xlu0 6
        %4619 = vperm.xlu0 %4618, %v1418
        %v4620 = vpop.permute.xlu0 %4619
        %4622 = vset.pattern.permute.xlu0 6
        %4623 = vperm.xlu0 %4622, %v1433
        %v4624 = vpop.permute.xlu0 %4623
        %4626 = vset.pattern.permute.xlu0 6
        %4627 = vperm.xlu0 %4626, %v1435
        %v4628 = vpop.permute.xlu0 %4627
        %v4630 = vmul.f32 %v4435, %v4520
        %v4631 = vmul.f32 %v4437, %v4524
        %v4632 = vmul.f32 %v4439, %v4528
        %v4633 = vmul.f32 %v4441, %v4532
        %v4634 = vmul.f32 %v4443, %v4536
        %v4635 = vmul.f32 %v4445, %v4540
        %v4636 = vmul.f32 %v4447, %v4544
        %v4637 = vmul.f32 %v4449, %v4548
        %v4638 = vmul.f32 %v4451, %v4552
        %v4639 = vmul.f32 %v4453, %v4556
        %v4640 = vmul.f32 %v4455, %v4560
        %v4641 = vmul.f32 %v4457, %v4564
        %v4642 = vmul.f32 %v4459, %v4568
        %v4643 = vmul.f32 %v4461, %v4572
        %v4644 = vmul.f32 %v4463, %v4576
        %v4645 = vmul.f32 %v4465, %v4580
        %v4646 = vmul.f32 %v4467, %v4584
        %v4647 = vmul.f32 %v4469, %v4588
        %v4648 = vmul.f32 %v4471, %v4592
        %v4649 = vmul.f32 %v4473, %v4596
        %v4650 = vmul.f32 %v4475, %v4600
        %v4651 = vmul.f32 %v4477, %v4604
        %v4652 = vmul.f32 %v4479, %v4608
        %v4653 = vmul.f32 %v4481, %v4612
        %v4654 = vmul.f32 %v4483, %v4616
        %v4655 = vmul.f32 %v4485, %v4620
        %v4656 = vmul.f32 %v4487, %v4624
        %v4657 = vmul.f32 %v4489, %v4628
        %v4658 = vadd.f32 %v4238, %v4630
        %v4659 = vadd.f32 %v4239, %v4631
        %v4660 = vadd.f32 %v4240, %v4632
        %v4661 = vadd.f32 %v4241, %v4633
        %v4662 = vadd.f32 %v4242, %v4634
        %v4663 = vadd.f32 %v4243, %v4635
        %v4664 = vadd.f32 %v4244, %v4636
        %v4665 = vadd.f32 %v4245, %v4637
        %v4666 = vadd.f32 %v4246, %v4638
        %v4667 = vadd.f32 %v4247, %v4639
        %v4668 = vadd.f32 %v4248, %v4640
        %v4669 = vadd.f32 %v4249, %v4641
        %v4670 = vadd.f32 %v4250, %v4642
        %v4671 = vadd.f32 %v4251, %v4643
        %v4672 = vadd.f32 %v4252, %v4644
        %v4673 = vadd.f32 %v4253, %v4645
        %v4674 = vadd.f32 %v4254, %v4646
        %v4675 = vadd.f32 %v4255, %v4647
        %v4676 = vadd.f32 %v4256, %v4648
        %v4677 = vadd.f32 %v4257, %v4649
        %v4678 = vadd.f32 %v4258, %v4650
        %v4679 = vadd.f32 %v4259, %v4651
        %v4680 = vadd.f32 %v4260, %v4652
        %v4681 = vadd.f32 %v4261, %v4653
        %v4682 = vadd.f32 %v4262, %v4654
        %v4683 = vadd.f32 %v4263, %v4655
        %v4684 = vadd.f32 %v4264, %v4656
        %v4685 = vadd.f32 %v4265, %v4657
        %4686 = vset.pattern.permute.xlu0 7
        %4687 = vperm.xlu0 %4686, %v960
        %v4688 = vpop.permute.xlu0 %4687
        %4690 = vset.pattern.permute.xlu0 7
        %4691 = vperm.xlu0 %4690, %v962
        %v4692 = vpop.permute.xlu0 %4691
        %4694 = vset.pattern.permute.xlu0 7
        %4695 = vperm.xlu0 %4694, %v977
        %v4696 = vpop.permute.xlu0 %4695
        %4698 = vset.pattern.permute.xlu0 7
        %4699 = vperm.xlu0 %4698, %v979
        %v4700 = vpop.permute.xlu0 %4699
        %4702 = vset.pattern.permute.xlu0 7
        %4703 = vperm.xlu0 %4702, %v994
        %v4704 = vpop.permute.xlu0 %4703
        %4706 = vset.pattern.permute.xlu0 7
        %4707 = vperm.xlu0 %4706, %v996
        %v4708 = vpop.permute.xlu0 %4707
        %4710 = vset.pattern.permute.xlu0 7
        %4711 = vperm.xlu0 %4710, %v1011
        %v4712 = vpop.permute.xlu0 %4711
        %4714 = vset.pattern.permute.xlu0 7
        %4715 = vperm.xlu0 %4714, %v1013
        %v4716 = vpop.permute.xlu0 %4715
        %4718 = vset.pattern.permute.xlu0 7
        %4719 = vperm.xlu0 %4718, %v1028
        %v4720 = vpop.permute.xlu0 %4719
        %4722 = vset.pattern.permute.xlu0 7
        %4723 = vperm.xlu0 %4722, %v1030
        %v4724 = vpop.permute.xlu0 %4723
        %4726 = vset.pattern.permute.xlu0 7
        %4727 = vperm.xlu0 %4726, %v1045
        %v4728 = vpop.permute.xlu0 %4727
        %4730 = vset.pattern.permute.xlu0 7
        %4731 = vperm.xlu0 %4730, %v1047
        %v4732 = vpop.permute.xlu0 %4731
        %4734 = vset.pattern.permute.xlu0 7
        %4735 = vperm.xlu0 %4734, %v1062
        %v4736 = vpop.permute.xlu0 %4735
        %4738 = vset.pattern.permute.xlu0 7
        %4739 = vperm.xlu0 %4738, %v1064
        %v4740 = vpop.permute.xlu0 %4739
        %4742 = vset.pattern.permute.xlu0 7
        %4743 = vperm.xlu0 %4742, %v1079
        %v4744 = vpop.permute.xlu0 %4743
        %4746 = vset.pattern.permute.xlu0 7
        %4747 = vperm.xlu0 %4746, %v1081
        %v4748 = vpop.permute.xlu0 %4747
        %4750 = vset.pattern.permute.xlu0 7
        %4751 = vperm.xlu0 %4750, %v1096
        %v4752 = vpop.permute.xlu0 %4751
        %4754 = vset.pattern.permute.xlu0 7
        %4755 = vperm.xlu0 %4754, %v1098
        %v4756 = vpop.permute.xlu0 %4755
        %4758 = vset.pattern.permute.xlu0 7
        %4759 = vperm.xlu0 %4758, %v1113
        %v4760 = vpop.permute.xlu0 %4759
        %4762 = vset.pattern.permute.xlu0 7
        %4763 = vperm.xlu0 %4762, %v1115
        %v4764 = vpop.permute.xlu0 %4763
        %4766 = vset.pattern.permute.xlu0 7
        %4767 = vperm.xlu0 %4766, %v1130
        %v4768 = vpop.permute.xlu0 %4767
        %4770 = vset.pattern.permute.xlu0 7
        %4771 = vperm.xlu0 %4770, %v1132
        %v4772 = vpop.permute.xlu0 %4771
        %4774 = vset.pattern.permute.xlu0 7
        %4775 = vperm.xlu0 %4774, %v1147
        %v4776 = vpop.permute.xlu0 %4775
        %4778 = vset.pattern.permute.xlu0 7
        %4779 = vperm.xlu0 %4778, %v1149
        %v4780 = vpop.permute.xlu0 %4779
        %4782 = vset.pattern.permute.xlu0 7
        %4783 = vperm.xlu0 %4782, %v1164
        %v4784 = vpop.permute.xlu0 %4783
        %4786 = vset.pattern.permute.xlu0 7
        %4787 = vperm.xlu0 %4786, %v1166
        %v4788 = vpop.permute.xlu0 %4787
        %4790 = vset.pattern.permute.xlu0 7
        %4791 = vperm.xlu0 %4790, %v1181
        %v4792 = vpop.permute.xlu0 %4791
        %4794 = vset.pattern.permute.xlu0 7
        %4795 = vperm.xlu0 %4794, %v1183
        %v4796 = vpop.permute.xlu0 %4795
        %v4798 = vmul.f32 %v708, %v4688
        %v4799 = vmul.f32 %v710, %v4692
        %v4800 = vmul.f32 %v725, %v4696
        %v4801 = vmul.f32 %v727, %v4700
        %v4802 = vmul.f32 %v742, %v4704
        %v4803 = vmul.f32 %v744, %v4708
        %v4804 = vmul.f32 %v759, %v4712
        %v4805 = vmul.f32 %v761, %v4716
        %v4806 = vmul.f32 %v776, %v4720
        %v4807 = vmul.f32 %v778, %v4724
        %v4808 = vmul.f32 %v793, %v4728
        %v4809 = vmul.f32 %v795, %v4732
        %v4810 = vmul.f32 %v810, %v4736
        %v4811 = vmul.f32 %v812, %v4740
        %v4812 = vmul.f32 %v827, %v4744
        %v4813 = vmul.f32 %v829, %v4748
        %v4814 = vmul.f32 %v844, %v4752
        %v4815 = vmul.f32 %v846, %v4756
        %v4816 = vmul.f32 %v861, %v4760
        %v4817 = vmul.f32 %v863, %v4764
        %v4818 = vmul.f32 %v878, %v4768
        %v4819 = vmul.f32 %v880, %v4772
        %v4820 = vmul.f32 %v895, %v4776
        %v4821 = vmul.f32 %v897, %v4780
        %v4822 = vmul.f32 %v912, %v4784
        %v4823 = vmul.f32 %v914, %v4788
        %v4824 = vmul.f32 %v929, %v4792
        %v4825 = vmul.f32 %v931, %v4796
        %v4826 = vsub.f32 %v4798, %v1662
        %v4827 = vsub.f32 %v4799, %v1663
        %v4828 = vsub.f32 %v4800, %v1664
        %v4829 = vsub.f32 %v4801, %v1665
        %v4830 = vsub.f32 %v4802, %v1666
        %v4831 = vsub.f32 %v4803, %v1667
        %v4832 = vsub.f32 %v4804, %v1668
        %v4833 = vsub.f32 %v4805, %v1669
        %v4834 = vsub.f32 %v4806, %v1670
        %v4835 = vsub.f32 %v4807, %v1671
        %v4836 = vsub.f32 %v4808, %v1672
        %v4837 = vsub.f32 %v4809, %v1673
        %v4838 = vsub.f32 %v4810, %v1674
        %v4839 = vsub.f32 %v4811, %v1675
        %v4840 = vsub.f32 %v4812, %v1676
        %v4841 = vsub.f32 %v4813, %v1677
        %v4842 = vsub.f32 %v4814, %v1678
        %v4843 = vsub.f32 %v4815, %v1679
        %v4844 = vsub.f32 %v4816, %v1680
        %v4845 = vsub.f32 %v4817, %v1681
        %v4846 = vsub.f32 %v4818, %v1682
        %v4847 = vsub.f32 %v4819, %v1683
        %v4848 = vsub.f32 %v4820, %v1684
        %v4849 = vsub.f32 %v4821, %v1685
        %v4850 = vsub.f32 %v4822, %v1686
        %v4851 = vsub.f32 %v4823, %v1687
        %v4852 = vsub.f32 %v4824, %v1688
        %v4853 = vsub.f32 %v4825, %v1689
        %v4854 = vmul.f32 %v4826, 1.442695
        %v4855 = vpow.pop %v4854
        %v4856 = vmul.f32 %v4827, 1.442695
        %v4857 = vpow.pop %v4856
        %v4858 = vmul.f32 %v4828, 1.442695
        %v4859 = vpow.pop %v4858
        %v4860 = vmul.f32 %v4829, 1.442695
        %v4861 = vpow.pop %v4860
        %v4862 = vmul.f32 %v4830, 1.442695
        %v4863 = vpow.pop %v4862
        %v4864 = vmul.f32 %v4831, 1.442695
        %v4865 = vpow.pop %v4864
        %v4866 = vmul.f32 %v4832, 1.442695
        %v4867 = vpow.pop %v4866
        %v4868 = vmul.f32 %v4833, 1.442695
        %v4869 = vpow.pop %v4868
        %v4870 = vmul.f32 %v4834, 1.442695
        %v4871 = vpow.pop %v4870
        %v4872 = vmul.f32 %v4835, 1.442695
        %v4873 = vpow.pop %v4872
        %v4874 = vmul.f32 %v4836, 1.442695
        %v4875 = vpow.pop %v4874
        %v4876 = vmul.f32 %v4837, 1.442695
        %v4877 = vpow.pop %v4876
        %v4878 = vmul.f32 %v4838, 1.442695
        %v4879 = vpow.pop %v4878
        %v4880 = vmul.f32 %v4839, 1.442695
        %v4881 = vpow.pop %v4880
        %v4882 = vmul.f32 %v4840, 1.442695
        %v4883 = vpow.pop %v4882
        %v4884 = vmul.f32 %v4841, 1.442695
        %v4885 = vpow.pop %v4884
        %v4886 = vmul.f32 %v4842, 1.442695
        %v4887 = vpow.pop %v4886
        %v4888 = vmul.f32 %v4843, 1.442695
        %v4889 = vpow.pop %v4888
        %v4890 = vmul.f32 %v4844, 1.442695
        %v4891 = vpow.pop %v4890
        %v4892 = vmul.f32 %v4845, 1.442695
        %v4893 = vpow.pop %v4892
        %v4894 = vmul.f32 %v4846, 1.442695
        %v4895 = vpow.pop %v4894
        %v4896 = vmul.f32 %v4847, 1.442695
        %v4897 = vpow.pop %v4896
        %v4898 = vmul.f32 %v4848, 1.442695
        %v4899 = vpow.pop %v4898
        %v4900 = vmul.f32 %v4849, 1.442695
        %v4901 = vpow.pop %v4900
        %v4902 = vmul.f32 %v4850, 1.442695
        %v4903 = vpow.pop %v4902
        %v4904 = vmul.f32 %v4851, 1.442695
        %v4905 = vpow.pop %v4904
        %v4906 = vmul.f32 %v4852, 1.442695
        %v4907 = vpow.pop %v4906
        %v4908 = vmul.f32 %v4853, 1.442695
        %v4909 = vpow.pop %v4908
        %v4910 = vadd.f32 %v4490, %v4855
        %v4911 = vadd.f32 %v4491, %v4857
        %v4912 = vadd.f32 %v4492, %v4859
        %v4913 = vadd.f32 %v4493, %v4861
        %v4914 = vadd.f32 %v4494, %v4863
        %v4915 = vadd.f32 %v4495, %v4865
        %v4916 = vadd.f32 %v4496, %v4867
        %v4917 = vadd.f32 %v4497, %v4869
        %v4918 = vadd.f32 %v4498, %v4871
        %v4919 = vadd.f32 %v4499, %v4873
        %v4920 = vadd.f32 %v4500, %v4875
        %v4921 = vadd.f32 %v4501, %v4877
        %v4922 = vadd.f32 %v4502, %v4879
        %v4923 = vadd.f32 %v4503, %v4881
        %v4924 = vadd.f32 %v4504, %v4883
        %v4925 = vadd.f32 %v4505, %v4885
        %v4926 = vadd.f32 %v4506, %v4887
        %v4927 = vadd.f32 %v4507, %v4889
        %v4928 = vadd.f32 %v4508, %v4891
        %v4929 = vadd.f32 %v4509, %v4893
        %v4930 = vadd.f32 %v4510, %v4895
        %v4931 = vadd.f32 %v4511, %v4897
        %v4932 = vadd.f32 %v4512, %v4899
        %v4933 = vadd.f32 %v4513, %v4901
        %v4934 = vadd.f32 %v4514, %v4903
        %v4935 = vadd.f32 %v4515, %v4905
        %v4936 = vadd.f32 %v4516, %v4907
        %v4937 = vadd.f32 %v4517, %v4909
        %4938 = vset.pattern.permute.xlu0 7
        %4939 = vperm.xlu0 %4938, %v1212
        %v4940 = vpop.permute.xlu0 %4939
        %4942 = vset.pattern.permute.xlu0 7
        %4943 = vperm.xlu0 %4942, %v1214
        %v4944 = vpop.permute.xlu0 %4943
        %4946 = vset.pattern.permute.xlu0 7
        %4947 = vperm.xlu0 %4946, %v1229
        %v4948 = vpop.permute.xlu0 %4947
        %4950 = vset.pattern.permute.xlu0 7
        %4951 = vperm.xlu0 %4950, %v1231
        %v4952 = vpop.permute.xlu0 %4951
        %4954 = vset.pattern.permute.xlu0 7
        %4955 = vperm.xlu0 %4954, %v1246
        %v4956 = vpop.permute.xlu0 %4955
        %4958 = vset.pattern.permute.xlu0 7
        %4959 = vperm.xlu0 %4958, %v1248
        %v4960 = vpop.permute.xlu0 %4959
        %4962 = vset.pattern.permute.xlu0 7
        %4963 = vperm.xlu0 %4962, %v1263
        %v4964 = vpop.permute.xlu0 %4963
        %4966 = vset.pattern.permute.xlu0 7
        %4967 = vperm.xlu0 %4966, %v1265
        %v4968 = vpop.permute.xlu0 %4967
        %4970 = vset.pattern.permute.xlu0 7
        %4971 = vperm.xlu0 %4970, %v1280
        %v4972 = vpop.permute.xlu0 %4971
        %4974 = vset.pattern.permute.xlu0 7
        %4975 = vperm.xlu0 %4974, %v1282
        %v4976 = vpop.permute.xlu0 %4975
        %4978 = vset.pattern.permute.xlu0 7
        %4979 = vperm.xlu0 %4978, %v1297
        %v4980 = vpop.permute.xlu0 %4979
        %4982 = vset.pattern.permute.xlu0 7
        %4983 = vperm.xlu0 %4982, %v1299
        %v4984 = vpop.permute.xlu0 %4983
        %4986 = vset.pattern.permute.xlu0 7
        %4987 = vperm.xlu0 %4986, %v1314
        %v4988 = vpop.permute.xlu0 %4987
        %4990 = vset.pattern.permute.xlu0 7
        %4991 = vperm.xlu0 %4990, %v1316
        %v4992 = vpop.permute.xlu0 %4991
        %4994 = vset.pattern.permute.xlu0 7
        %4995 = vperm.xlu0 %4994, %v1331
        %v4996 = vpop.permute.xlu0 %4995
        %4998 = vset.pattern.permute.xlu0 7
        %4999 = vperm.xlu0 %4998, %v1333
        %v5000 = vpop.permute.xlu0 %4999
        %5002 = vset.pattern.permute.xlu0 7
        %5003 = vperm.xlu0 %5002, %v1348
        %v5004 = vpop.permute.xlu0 %5003
        %5006 = vset.pattern.permute.xlu0 7
        %5007 = vperm.xlu0 %5006, %v1350
        %v5008 = vpop.permute.xlu0 %5007
        %5010 = vset.pattern.permute.xlu0 7
        %5011 = vperm.xlu0 %5010, %v1365
        %v5012 = vpop.permute.xlu0 %5011
        %5014 = vset.pattern.permute.xlu0 7
        %5015 = vperm.xlu0 %5014, %v1367
        %v5016 = vpop.permute.xlu0 %5015
        %5018 = vset.pattern.permute.xlu0 7
        %5019 = vperm.xlu0 %5018, %v1382
        %v5020 = vpop.permute.xlu0 %5019
        %5022 = vset.pattern.permute.xlu0 7
        %5023 = vperm.xlu0 %5022, %v1384
        %v5024 = vpop.permute.xlu0 %5023
        %5026 = vset.pattern.permute.xlu0 7
        %5027 = vperm.xlu0 %5026, %v1399
        %v5028 = vpop.permute.xlu0 %5027
        %5030 = vset.pattern.permute.xlu0 7
        %5031 = vperm.xlu0 %5030, %v1401
        %v5032 = vpop.permute.xlu0 %5031
        %5034 = vset.pattern.permute.xlu0 7
        %5035 = vperm.xlu0 %5034, %v1416
        %v5036 = vpop.permute.xlu0 %5035
        %5038 = vset.pattern.permute.xlu0 7
        %5039 = vperm.xlu0 %5038, %v1418
        %v5040 = vpop.permute.xlu0 %5039
        %5042 = vset.pattern.permute.xlu0 7
        %5043 = vperm.xlu0 %5042, %v1433
        %v5044 = vpop.permute.xlu0 %5043
        %5046 = vset.pattern.permute.xlu0 7
        %5047 = vperm.xlu0 %5046, %v1435
        %v5048 = vpop.permute.xlu0 %5047
        %v5050 = vmul.f32 %v4855, %v4940
        %v5051 = vmul.f32 %v4857, %v4944
        %v5052 = vmul.f32 %v4859, %v4948
        %v5053 = vmul.f32 %v4861, %v4952
        %v5054 = vmul.f32 %v4863, %v4956
        %v5055 = vmul.f32 %v4865, %v4960
        %v5056 = vmul.f32 %v4867, %v4964
        %v5057 = vmul.f32 %v4869, %v4968
        %v5058 = vmul.f32 %v4871, %v4972
        %v5059 = vmul.f32 %v4873, %v4976
        %v5060 = vmul.f32 %v4875, %v4980
        %v5061 = vmul.f32 %v4877, %v4984
        %v5062 = vmul.f32 %v4879, %v4988
        %v5063 = vmul.f32 %v4881, %v4992
        %v5064 = vmul.f32 %v4883, %v4996
        %v5065 = vmul.f32 %v4885, %v5000
        %v5066 = vmul.f32 %v4887, %v5004
        %v5067 = vmul.f32 %v4889, %v5008
        %v5068 = vmul.f32 %v4891, %v5012
        %v5069 = vmul.f32 %v4893, %v5016
        %v5070 = vmul.f32 %v4895, %v5020
        %v5071 = vmul.f32 %v4897, %v5024
        %v5072 = vmul.f32 %v4899, %v5028
        %v5073 = vmul.f32 %v4901, %v5032
        %v5074 = vmul.f32 %v4903, %v5036
        %v5075 = vmul.f32 %v4905, %v5040
        %v5076 = vmul.f32 %v4907, %v5044
        %v5077 = vmul.f32 %v4909, %v5048
        %v5078 = vadd.f32 %v4658, %v5050
        %v5079 = vadd.f32 %v4659, %v5051
        %v5080 = vadd.f32 %v4660, %v5052
        %v5081 = vadd.f32 %v4661, %v5053
        %v5082 = vadd.f32 %v4662, %v5054
        %v5083 = vadd.f32 %v4663, %v5055
        %v5084 = vadd.f32 %v4664, %v5056
        %v5085 = vadd.f32 %v4665, %v5057
        %v5086 = vadd.f32 %v4666, %v5058
        %v5087 = vadd.f32 %v4667, %v5059
        %v5088 = vadd.f32 %v4668, %v5060
        %v5089 = vadd.f32 %v4669, %v5061
        %v5090 = vadd.f32 %v4670, %v5062
        %v5091 = vadd.f32 %v4671, %v5063
        %v5092 = vadd.f32 %v4672, %v5064
        %v5093 = vadd.f32 %v4673, %v5065
        %v5094 = vadd.f32 %v4674, %v5066
        %v5095 = vadd.f32 %v4675, %v5067
        %v5096 = vadd.f32 %v4676, %v5068
        %v5097 = vadd.f32 %v4677, %v5069
        %v5098 = vadd.f32 %v4678, %v5070
        %v5099 = vadd.f32 %v4679, %v5071
        %v5100 = vadd.f32 %v4680, %v5072
        %v5101 = vadd.f32 %v4681, %v5073
        %v5102 = vadd.f32 %v4682, %v5074
        %v5103 = vadd.f32 %v4683, %v5075
        %v5104 = vadd.f32 %v4684, %v5076
        %v5105 = vadd.f32 %v4685, %v5077
        %v5106 = vrcp.pop %v4910
        %v5107 = vrcp.pop %v4911
        %v5108 = vrcp.pop %v4912
        %v5109 = vrcp.pop %v4913
        %v5110 = vrcp.pop %v4914
        %v5111 = vrcp.pop %v4915
        %v5112 = vrcp.pop %v4916
        %v5113 = vrcp.pop %v4917
        %v5114 = vrcp.pop %v4918
        %v5115 = vrcp.pop %v4919
        %v5116 = vrcp.pop %v4920
        %v5117 = vrcp.pop %v4921
        %v5118 = vrcp.pop %v4922
        %v5119 = vrcp.pop %v4923
        %v5120 = vrcp.pop %v4924
        %v5121 = vrcp.pop %v4925
        %v5122 = vrcp.pop %v4926
        %v5123 = vrcp.pop %v4927
        %v5124 = vrcp.pop %v4928
        %v5125 = vrcp.pop %v4929
        %v5126 = vrcp.pop %v4930
        %v5127 = vrcp.pop %v4931
        %v5128 = vrcp.pop %v4932
        %v5129 = vrcp.pop %v4933
        %v5130 = vrcp.pop %v4934
        %v5131 = vrcp.pop %v4935
        %v5132 = vrcp.pop %v4936
        %v5133 = vrcp.pop %v4937
        %v5134 = vmul.f32 %v5078, %v5106
        %v5135 = vmul.f32 %v5079, %v5107
        %v5136 = vmul.f32 %v5080, %v5108
        %v5137 = vmul.f32 %v5081, %v5109
        %v5138 = vmul.f32 %v5082, %v5110
        %v5139 = vmul.f32 %v5083, %v5111
        %v5140 = vmul.f32 %v5084, %v5112
        %v5141 = vmul.f32 %v5085, %v5113
        %v5142 = vmul.f32 %v5086, %v5114
        %v5143 = vmul.f32 %v5087, %v5115
        %v5144 = vmul.f32 %v5088, %v5116
        %v5145 = vmul.f32 %v5089, %v5117
        %v5146 = vmul.f32 %v5090, %v5118
        %v5147 = vmul.f32 %v5091, %v5119
        %v5148 = vmul.f32 %v5092, %v5120
        %v5149 = vmul.f32 %v5093, %v5121
        %v5150 = vmul.f32 %v5094, %v5122
        %v5151 = vmul.f32 %v5095, %v5123
        %v5152 = vmul.f32 %v5096, %v5124
        %v5153 = vmul.f32 %v5097, %v5125
        %v5154 = vmul.f32 %v5098, %v5126
        %v5155 = vmul.f32 %v5099, %v5127
        %v5156 = vmul.f32 %v5100, %v5128
        %v5157 = vmul.f32 %v5101, %v5129
        %v5158 = vmul.f32 %v5102, %v5130
        %v5159 = vmul.f32 %v5103, %v5131
        %v5160 = vmul.f32 %v5104, %v5132
        %v5161 = vmul.f32 %v5105, %v5133
        %v5162 = vpack.c.bf16 %v5135, %v5134
        %v5163 = vld [vmem:[#allocation11] sm:$0xf]
        %v5164 = vpack.c.bf16 %v5137, %v5136
        %s5165 = scalar_lea.vmem [#allocation11], 4
        %v5166 = vld [vmem:[%s5165] sm:$0xf]
        %v5168 = vsel %vm1437, %v5164, 0
        %vm5170 = vcmask 1043456
        %v5172 = vsel %vm5170, %v5166, 0
        %5174 = vmatpush.bf16.msra.mxu0 0
        %5175 = vmatpush.bf16.msra.mxu0 0
        %5176 = vmatpush.bf16.msra.mxu0 0
        %5177 = vmatpush.bf16.msra.mxu0 0
        %5178 = vmatpush.bf16.msra.mxu0 0
        %5179 = vmatpush.bf16.msra.mxu0 0
        %5180 = vmatpush.bf16.msra.mxu0 0
        %5181 = vmatpush.bf16.msra.mxu0 %v5172
        %5182 = vmatmul.bf16.gmra.mxu0 %v5168
        %v5183 = vpop.f32.mrf.mxu0
        %v5184 = vadd.f32 0.0, %v5183
        %v5185 = vpop.f32.mrf.mxu0
        %v5186 = vadd.f32 0.0, %v5185
        %5187 = vdwg.mxu0
        %v5189 = vsel %vm1437, %v5162, 0
        %v5192 = vsel %vm5170, %v5163, 0
        %5194 = vmatpush.bf16.msra.mxu0 0
        %5195 = vmatpush.bf16.msra.mxu0 0
        %5196 = vmatpush.bf16.msra.mxu0 0
        %5197 = vmatpush.bf16.msra.mxu0 0
        %5198 = vmatpush.bf16.msra.mxu0 0
        %5199 = vmatpush.bf16.msra.mxu0 0
        %5200 = vmatpush.bf16.msra.mxu0 0
        %5201 = vmatpush.bf16.msra.mxu0 %v5192
        %5202 = vmatmul.bf16.gmra.mxu0 %v5189
        %v5203 = vpop.f32.mrf.mxu0
        %v5204 = vadd.f32 %v5184, %v5203
        %v5205 = vpop.f32.mrf.mxu0
        %v5206 = vadd.f32 %v5186, %v5205
        %5207 = vdwg.mxu0
        %v5208 = vpack.c.bf16 %v5139, %v5138
        %s5209 = scalar_lea.vmem [#allocation11], 8
        %v5210 = vld [vmem:[%s5209] sm:$0xf]
        %v5212 = vsel %vm1437, %v5208, 0
        %v5215 = vsel %vm5170, %v5210, 0
        %5217 = vmatpush.bf16.msra.mxu0 0
        %5218 = vmatpush.bf16.msra.mxu0 0
        %5219 = vmatpush.bf16.msra.mxu0 0
        %5220 = vmatpush.bf16.msra.mxu0 0
        %5221 = vmatpush.bf16.msra.mxu0 0
        %5222 = vmatpush.bf16.msra.mxu0 0
        %5223 = vmatpush.bf16.msra.mxu0 0
        %5224 = vmatpush.bf16.msra.mxu0 %v5215
        %5225 = vmatmul.bf16.gmra.mxu0 %v5212
        %v5226 = vpop.f32.mrf.mxu0
        %v5227 = vadd.f32 0.0, %v5226
        %v5228 = vpop.f32.mrf.mxu0
        %v5229 = vadd.f32 0.0, %v5228
        %5230 = vdwg.mxu0
        %v5231 = vadd.f32 %v5204, %v5227
        %v5232 = vadd.f32 %v5206, %v5229
        %v5233 = vpack.c.bf16 %v5141, %v5140
        %s5234 = scalar_lea.vmem [#allocation11], 12
        %v5235 = vld [vmem:[%s5234] sm:$0xf]
        %v5237 = vsel %vm1437, %v5233, 0
        %v5240 = vsel %vm5170, %v5235, 0
        %5242 = vmatpush.bf16.msra.mxu0 0
        %5243 = vmatpush.bf16.msra.mxu0 0
        %5244 = vmatpush.bf16.msra.mxu0 0
        %5245 = vmatpush.bf16.msra.mxu0 0
        %5246 = vmatpush.bf16.msra.mxu0 0
        %5247 = vmatpush.bf16.msra.mxu0 0
        %5248 = vmatpush.bf16.msra.mxu0 0
        %5249 = vmatpush.bf16.msra.mxu0 %v5240
        %5250 = vmatmul.bf16.gmra.mxu0 %v5237
        %v5251 = vpop.f32.mrf.mxu0
        %v5252 = vadd.f32 0.0, %v5251
        %v5253 = vpop.f32.mrf.mxu0
        %v5254 = vadd.f32 0.0, %v5253
        %5255 = vdwg.mxu0
        %v5256 = vadd.f32 %v5231, %v5252
        %v5257 = vadd.f32 %v5232, %v5254
        %v5258 = vpack.c.bf16 %v5143, %v5142
        %s5259 = scalar_lea.vmem [#allocation11], 16
        %v5260 = vld [vmem:[%s5259] sm:$0xf]
        %v5262 = vsel %vm1437, %v5258, 0
        %v5265 = vsel %vm5170, %v5260, 0
        %5267 = vmatpush.bf16.msra.mxu0 0
        %5268 = vmatpush.bf16.msra.mxu0 0
        %5269 = vmatpush.bf16.msra.mxu0 0
        %5270 = vmatpush.bf16.msra.mxu0 0
        %5271 = vmatpush.bf16.msra.mxu0 0
        %5272 = vmatpush.bf16.msra.mxu0 0
        %5273 = vmatpush.bf16.msra.mxu0 0
        %5274 = vmatpush.bf16.msra.mxu0 %v5265
        %5275 = vmatmul.bf16.gmra.mxu0 %v5262
        %v5276 = vpop.f32.mrf.mxu0
        %v5277 = vadd.f32 0.0, %v5276
        %v5278 = vpop.f32.mrf.mxu0
        %v5279 = vadd.f32 0.0, %v5278
        %5280 = vdwg.mxu0
        %v5281 = vadd.f32 %v5256, %v5277
        %v5282 = vadd.f32 %v5257, %v5279
        %v5283 = vpack.c.bf16 %v5145, %v5144
        %s5284 = scalar_lea.vmem [#allocation11], 20
        %v5285 = vld [vmem:[%s5284] sm:$0xf]
        %v5287 = vsel %vm1437, %v5283, 0
        %v5290 = vsel %vm5170, %v5285, 0
        %5292 = vmatpush.bf16.msra.mxu0 0
        %5293 = vmatpush.bf16.msra.mxu0 0
        %5294 = vmatpush.bf16.msra.mxu0 0
        %5295 = vmatpush.bf16.msra.mxu0 0
        %5296 = vmatpush.bf16.msra.mxu0 0
        %5297 = vmatpush.bf16.msra.mxu0 0
        %5298 = vmatpush.bf16.msra.mxu0 0
        %5299 = vmatpush.bf16.msra.mxu0 %v5290
        %5300 = vmatmul.bf16.gmra.mxu0 %v5287
        %v5301 = vpop.f32.mrf.mxu0
        %v5302 = vadd.f32 0.0, %v5301
        %v5303 = vpop.f32.mrf.mxu0
        %v5304 = vadd.f32 0.0, %v5303
        %5305 = vdwg.mxu0
        %v5306 = vadd.f32 %v5281, %v5302
        %v5307 = vadd.f32 %v5282, %v5304
        %v5308 = vpack.c.bf16 %v5147, %v5146
        %s5309 = scalar_lea.vmem [#allocation11], 24
        %v5310 = vld [vmem:[%s5309] sm:$0xf]
        %v5312 = vsel %vm1437, %v5308, 0
        %v5315 = vsel %vm5170, %v5310, 0
        %5317 = vmatpush.bf16.msra.mxu0 0
        %5318 = vmatpush.bf16.msra.mxu0 0
        %5319 = vmatpush.bf16.msra.mxu0 0
        %5320 = vmatpush.bf16.msra.mxu0 0
        %5321 = vmatpush.bf16.msra.mxu0 0
        %5322 = vmatpush.bf16.msra.mxu0 0
        %5323 = vmatpush.bf16.msra.mxu0 0
        %5324 = vmatpush.bf16.msra.mxu0 %v5315
        %5325 = vmatmul.bf16.gmra.mxu0 %v5312
        %v5326 = vpop.f32.mrf.mxu0
        %v5327 = vadd.f32 0.0, %v5326
        %v5328 = vpop.f32.mrf.mxu0
        %v5329 = vadd.f32 0.0, %v5328
        %5330 = vdwg.mxu0
        %v5331 = vadd.f32 %v5306, %v5327
        %v5332 = vadd.f32 %v5307, %v5329
        %v5333 = vpack.c.bf16 %v5149, %v5148
        %s5334 = scalar_lea.vmem [#allocation11], 28
        %v5335 = vld [vmem:[%s5334] sm:$0xf]
        %v5337 = vsel %vm1437, %v5333, 0
        %v5340 = vsel %vm5170, %v5335, 0
        %5342 = vmatpush.bf16.msra.mxu0 0
        %5343 = vmatpush.bf16.msra.mxu0 0
        %5344 = vmatpush.bf16.msra.mxu0 0
        %5345 = vmatpush.bf16.msra.mxu0 0
        %5346 = vmatpush.bf16.msra.mxu0 0
        %5347 = vmatpush.bf16.msra.mxu0 0
        %5348 = vmatpush.bf16.msra.mxu0 0
        %5349 = vmatpush.bf16.msra.mxu0 %v5340
        %5350 = vmatmul.bf16.gmra.mxu0 %v5337
        %v5351 = vpop.f32.mrf.mxu0
        %v5352 = vadd.f32 0.0, %v5351
        %v5353 = vpop.f32.mrf.mxu0
        %v5354 = vadd.f32 0.0, %v5353
        %5355 = vdwg.mxu0
        %v5356 = vadd.f32 %v5331, %v5352
        %v5357 = vadd.f32 %v5332, %v5354
        %v5358 = vpack.c.bf16 %v5151, %v5150
        %s5359 = scalar_lea.vmem [#allocation11], 32
        %v5360 = vld [vmem:[%s5359] sm:$0xf]
        %v5362 = vsel %vm1437, %v5358, 0
        %v5365 = vsel %vm5170, %v5360, 0
        %5367 = vmatpush.bf16.msra.mxu0 0
        %5368 = vmatpush.bf16.msra.mxu0 0
        %5369 = vmatpush.bf16.msra.mxu0 0
        %5370 = vmatpush.bf16.msra.mxu0 0
        %5371 = vmatpush.bf16.msra.mxu0 0
        %5372 = vmatpush.bf16.msra.mxu0 0
        %5373 = vmatpush.bf16.msra.mxu0 0
        %5374 = vmatpush.bf16.msra.mxu0 %v5365
        %5375 = vmatmul.bf16.gmra.mxu0 %v5362
        %v5376 = vpop.f32.mrf.mxu0
        %v5377 = vadd.f32 0.0, %v5376
        %v5378 = vpop.f32.mrf.mxu0
        %v5379 = vadd.f32 0.0, %v5378
        %5380 = vdwg.mxu0
        %v5381 = vadd.f32 %v5356, %v5377
        %v5382 = vadd.f32 %v5357, %v5379
        %v5383 = vpack.c.bf16 %v5153, %v5152
        %s5384 = scalar_lea.vmem [#allocation11], 36
        %v5385 = vld [vmem:[%s5384] sm:$0xf]
        %v5387 = vsel %vm1437, %v5383, 0
        %v5390 = vsel %vm5170, %v5385, 0
        %5392 = vmatpush.bf16.msra.mxu0 0
        %5393 = vmatpush.bf16.msra.mxu0 0
        %5394 = vmatpush.bf16.msra.mxu0 0
        %5395 = vmatpush.bf16.msra.mxu0 0
        %5396 = vmatpush.bf16.msra.mxu0 0
        %5397 = vmatpush.bf16.msra.mxu0 0
        %5398 = vmatpush.bf16.msra.mxu0 0
        %5399 = vmatpush.bf16.msra.mxu0 %v5390
        %5400 = vmatmul.bf16.gmra.mxu0 %v5387
        %v5401 = vpop.f32.mrf.mxu0
        %v5402 = vadd.f32 0.0, %v5401
        %v5403 = vpop.f32.mrf.mxu0
        %v5404 = vadd.f32 0.0, %v5403
        %5405 = vdwg.mxu0
        %v5406 = vadd.f32 %v5381, %v5402
        %v5407 = vadd.f32 %v5382, %v5404
        %v5408 = vpack.c.bf16 %v5155, %v5154
        %s5409 = scalar_lea.vmem [#allocation11], 40
        %v5410 = vld [vmem:[%s5409] sm:$0xf]
        %v5412 = vsel %vm1437, %v5408, 0
        %v5415 = vsel %vm5170, %v5410, 0
        %5417 = vmatpush.bf16.msra.mxu0 0
        %5418 = vmatpush.bf16.msra.mxu0 0
        %5419 = vmatpush.bf16.msra.mxu0 0
        %5420 = vmatpush.bf16.msra.mxu0 0
        %5421 = vmatpush.bf16.msra.mxu0 0
        %5422 = vmatpush.bf16.msra.mxu0 0
        %5423 = vmatpush.bf16.msra.mxu0 0
        %5424 = vmatpush.bf16.msra.mxu0 %v5415
        %5425 = vmatmul.bf16.gmra.mxu0 %v5412
        %v5426 = vpop.f32.mrf.mxu0
        %v5427 = vadd.f32 0.0, %v5426
        %v5428 = vpop.f32.mrf.mxu0
        %v5429 = vadd.f32 0.0, %v5428
        %5430 = vdwg.mxu0
        %v5431 = vadd.f32 %v5406, %v5427
        %v5432 = vadd.f32 %v5407, %v5429
        %v5433 = vpack.c.bf16 %v5157, %v5156
        %s5434 = scalar_lea.vmem [#allocation11], 44
        %v5435 = vld [vmem:[%s5434] sm:$0xf]
        %v5437 = vsel %vm1437, %v5433, 0
        %v5440 = vsel %vm5170, %v5435, 0
        %5442 = vmatpush.bf16.msra.mxu0 0
        %5443 = vmatpush.bf16.msra.mxu0 0
        %5444 = vmatpush.bf16.msra.mxu0 0
        %5445 = vmatpush.bf16.msra.mxu0 0
        %5446 = vmatpush.bf16.msra.mxu0 0
        %5447 = vmatpush.bf16.msra.mxu0 0
        %5448 = vmatpush.bf16.msra.mxu0 0
        %5449 = vmatpush.bf16.msra.mxu0 %v5440
        %5450 = vmatmul.bf16.gmra.mxu0 %v5437
        %v5451 = vpop.f32.mrf.mxu0
        %v5452 = vadd.f32 0.0, %v5451
        %v5453 = vpop.f32.mrf.mxu0
        %v5454 = vadd.f32 0.0, %v5453
        %5455 = vdwg.mxu0
        %v5456 = vadd.f32 %v5431, %v5452
        %v5457 = vadd.f32 %v5432, %v5454
        %v5458 = vpack.c.bf16 %v5159, %v5158
        %s5459 = scalar_lea.vmem [#allocation11], 48
        %v5460 = vld [vmem:[%s5459] sm:$0xf]
        %v5462 = vsel %vm1437, %v5458, 0
        %v5465 = vsel %vm5170, %v5460, 0
        %5467 = vmatpush.bf16.msra.mxu0 0
        %5468 = vmatpush.bf16.msra.mxu0 0
        %5469 = vmatpush.bf16.msra.mxu0 0
        %5470 = vmatpush.bf16.msra.mxu0 0
        %5471 = vmatpush.bf16.msra.mxu0 0
        %5472 = vmatpush.bf16.msra.mxu0 0
        %5473 = vmatpush.bf16.msra.mxu0 0
        %5474 = vmatpush.bf16.msra.mxu0 %v5465
        %5475 = vmatmul.bf16.gmra.mxu0 %v5462
        %v5476 = vpop.f32.mrf.mxu0
        %v5477 = vadd.f32 0.0, %v5476
        %v5478 = vpop.f32.mrf.mxu0
        %v5479 = vadd.f32 0.0, %v5478
        %5480 = vdwg.mxu0
        %v5481 = vadd.f32 %v5456, %v5477
        %v5482 = vadd.f32 %v5457, %v5479
        %v5483 = vpack.c.bf16 %v5161, %v5160
        %s5484 = scalar_lea.vmem [#allocation11], 52
        %v5485 = vld [vmem:[%s5484] sm:$0xf]
        %v5487 = vsel %vm1437, %v5483, 0
        %v5490 = vsel %vm5170, %v5485, 0
        %5492 = vmatpush.bf16.msra.mxu0 0
        %5493 = vmatpush.bf16.msra.mxu0 0
        %5494 = vmatpush.bf16.msra.mxu0 0
        %5495 = vmatpush.bf16.msra.mxu0 0
        %5496 = vmatpush.bf16.msra.mxu0 0
        %5497 = vmatpush.bf16.msra.mxu0 0
        %5498 = vmatpush.bf16.msra.mxu0 0
        %5499 = vmatpush.bf16.msra.mxu0 %v5490
        %5500 = vmatmul.bf16.gmra.mxu0 %v5487
        %v5501 = vpop.f32.mrf.mxu0
        %v5502 = vadd.f32 0.0, %v5501
        %v5503 = vpop.f32.mrf.mxu0
        %v5504 = vadd.f32 0.0, %v5503
        %5505 = vdwg.mxu0
        %v5506 = vadd.f32 %v5481, %v5502
        %v5507 = vadd.f32 %v5482, %v5504
        %v5508 = vadd.f32 %v605, %v5506
        %v5509 = vadd.f32 %v606, %v5507
        %v5510 = vld [vmem:[%s7] sm:$0x1]
        %v5512 = vperm.slane %v5510, 0
        %v5514 = vadd.f32 %v5508, %v5512
        %v5515 = vadd.f32 %v5509, %v5512
        %v5516 = vld [vmem:[%s8] sm:$0x1]
        %v5517 = vld [vmem:[%s9] sm:$0x1]
        %v5518 = vsel %vm609, %v5514, 0.0
        %5519 = vadd.xlane.f32.xlu0 %v5518
        %v5520 = vpop.xlane.xlu0 %5519
        %v5521 = vsel %vm609, %v5515, 0.0
        %5522 = vadd.xlane.f32.xlu0 %v5521
        %v5523 = vpop.xlane.xlu0 %5522
        %v5524 = vmul.f32 %v5520, %v622
        %v5525 = vmul.f32 %v5523, %v622
        %v5526 = vsub.f32 %v5514, %v5524
        %v5527 = vsub.f32 %v5515, %v5525
        %v5528 = vmul.f32 %v5526, %v5526
        %v5529 = vmul.f32 %v5527, %v5527
        %v5530 = vsel %vm609, %v5528, 0.0
        %5531 = vadd.xlane.f32.xlu0 %v5530
        %v5532 = vpop.xlane.xlu0 %5531
        %v5533 = vsel %vm609, %v5529, 0.0
        %5534 = vadd.xlane.f32.xlu0 %v5533
        %v5535 = vpop.xlane.xlu0 %5534
        %v5536 = vmul.f32 %v5532, %v622
        %v5537 = vmul.f32 %v5535, %v622
        %v5538 = vadd.f32 %v5536, 1e-05
        %v5539 = vadd.f32 %v5537, 1e-05
        %v5540 = vrsqrt.pop %v5538
        %v5541 = vmul.f32 %v5540, %v5538
        %v5542 = vmul.f32 %v5541, %v5540
        %v5543 = vmul.f32 0.5, %v5542
        %v5544 = vsub.f32 1.5, %v5543
        %v5545 = vmul.f32 %v5540, %v5544
        %vm5546 = vweird.f32 %v5538
        %vm5547 = vweird.f32 %v5540
        %vm5548 = vmor %vm5546, %vm5547
        %v5549 = vsel %vm5548, %v5540, %v5545
        %v5550 = vrsqrt.pop %v5539
        %v5551 = vmul.f32 %v5550, %v5539
        %v5552 = vmul.f32 %v5551, %v5550
        %v5553 = vmul.f32 0.5, %v5552
        %v5554 = vsub.f32 1.5, %v5553
        %v5555 = vmul.f32 %v5550, %v5554
        %vm5556 = vweird.f32 %v5539
        %vm5557 = vweird.f32 %v5550
        %vm5558 = vmor %vm5556, %vm5557
        %v5559 = vsel %vm5558, %v5550, %v5555
        %v5560 = vmul.f32 %v5526, %v5549
        %v5561 = vmul.f32 %v5527, %v5559
        %v5563 = vperm.slane %v5516, 0
        %v5565 = vmul.f32 %v5560, %v5563
        %v5566 = vmul.f32 %v5561, %v5563
        %v5568 = vperm.slane %v5517, 0
        %v5570 = vadd.f32 %v5565, %v5568
        %v5571 = vadd.f32 %v5566, %v5568
        %v5572 = vpack.c.bf16 %v5571, %v5570
        %v5573 = vld [vmem:[#allocation13] sm:$0xff]
        %v5574 = vld [vmem:[#allocation13 + $0x8] sm:$0xff]
        %v5575 = vld [vmem:[#allocation13 + $0x10] sm:$0xff]
        %v5576 = vld [vmem:[#allocation13 + $0x18] sm:$0xff]
        %v5577 = vld [vmem:[#allocation13 + $0x20] sm:$0xff]
        %v5578 = vld [vmem:[#allocation13 + $0x28] sm:$0xff]
        %v5579 = vld [vmem:[#allocation13 + $0x30] sm:$0xff]
        %v5580 = vld [vmem:[#allocation13 + $0x38] sm:$0xff]
        %v5581 = vld [vmem:[#allocation13 + $0x40] sm:$0xff]
        %v5582 = vld [vmem:[#allocation13 + $0x48] sm:$0xff]
        %v5583 = vld [vmem:[#allocation13 + $0x50] sm:$0xff]
        %v5584 = vld [vmem:[#allocation13 + $0x58] sm:$0xff]
        %v5585 = vld [vmem:[#allocation13 + $0x60] sm:$0xff]
        %v5586 = vld [vmem:[#allocation13 + $0x68] sm:$0xff]
        %v5587 = vld [vmem:[#allocation13 + $0x70] sm:$0xff]
        %v5588 = vld [vmem:[#allocation13 + $0x78] sm:$0xff]
        %v5589 = vld [vmem:[#allocation13 + $0x80] sm:$0xff]
        %v5590 = vld [vmem:[#allocation13 + $0x88] sm:$0xff]
        %v5591 = vld [vmem:[#allocation13 + $0x90] sm:$0xff]
        %v5592 = vld [vmem:[#allocation13 + $0x98] sm:$0xff]
        %v5593 = vld [vmem:[#allocation13 + $0xa0] sm:$0xff]
        %v5594 = vld [vmem:[#allocation13 + $0xa8] sm:$0xff]
        %v5595 = vld [vmem:[#allocation13 + $0xb0] sm:$0xff]
        %v5596 = vld [vmem:[#allocation13 + $0xb8] sm:$0xff]
        %v5597 = vld [vmem:[#allocation13 + $0xc0] sm:$0xff]
        %v5598 = vld [vmem:[#allocation13 + $0xc8] sm:$0xff]
        %v5599 = vld [vmem:[#allocation13 + $0xd0] sm:$0xff]
        %v5600 = vld [vmem:[#allocation13 + $0xd8] sm:$0xff]
        %v5601 = vld [vmem:[%s11] sm:$0xf]
        %v5603 = vperm.slane %v5601, 0
        %v5604 = vperm.slane %v5601, 1
        %v5605 = vperm.slane %v5601, 2
        %v5606 = vperm.slane %v5601, 3
        %v5639 = vunpack.c.l.b16 %v5573
        %v5640 = vunpack.c.h.b16 %v5573
        %v5641 = vunpack.c.l.b16 %v5574
        %v5642 = vunpack.c.h.b16 %v5574
        %v5643 = vunpack.c.l.b16 %v5575
        %v5644 = vunpack.c.h.b16 %v5575
        %v5645 = vunpack.c.l.b16 %v5576
        %v5646 = vunpack.c.h.b16 %v5576
        %v5647 = vunpack.c.l.b16 %v5577
        %v5648 = vunpack.c.h.b16 %v5577
        %v5649 = vunpack.c.l.b16 %v5578
        %v5650 = vunpack.c.h.b16 %v5578
        %v5651 = vunpack.c.l.b16 %v5579
        %v5652 = vunpack.c.h.b16 %v5579
        %v5653 = vunpack.c.l.b16 %v5580
        %v5654 = vunpack.c.h.b16 %v5580
        %v5655 = vunpack.c.l.b16 %v5581
        %v5656 = vunpack.c.h.b16 %v5581
        %v5657 = vunpack.c.l.b16 %v5582
        %v5658 = vunpack.c.h.b16 %v5582
        %v5659 = vunpack.c.l.b16 %v5583
        %v5660 = vunpack.c.h.b16 %v5583
        %v5661 = vunpack.c.l.b16 %v5584
        %v5662 = vunpack.c.h.b16 %v5584
        %v5663 = vunpack.c.l.b16 %v5585
        %v5664 = vunpack.c.h.b16 %v5585
        %v5665 = vunpack.c.l.b16 %v5586
        %v5666 = vunpack.c.h.b16 %v5586
        %v5667 = vunpack.c.l.b16 %v5587
        %v5668 = vunpack.c.h.b16 %v5587
        %v5669 = vunpack.c.l.b16 %v5588
        %v5670 = vunpack.c.h.b16 %v5588
        %v5671 = vunpack.c.l.b16 %v5589
        %v5672 = vunpack.c.h.b16 %v5589
        %v5673 = vunpack.c.l.b16 %v5590
        %v5674 = vunpack.c.h.b16 %v5590
        %v5675 = vunpack.c.l.b16 %v5591
        %v5676 = vunpack.c.h.b16 %v5591
        %v5677 = vunpack.c.l.b16 %v5592
        %v5678 = vunpack.c.h.b16 %v5592
        %v5679 = vunpack.c.l.b16 %v5593
        %v5680 = vunpack.c.h.b16 %v5593
        %v5681 = vunpack.c.l.b16 %v5594
        %v5682 = vunpack.c.h.b16 %v5594
        %v5683 = vunpack.c.l.b16 %v5595
        %v5684 = vunpack.c.h.b16 %v5595
        %v5685 = vunpack.c.l.b16 %v5596
        %v5686 = vunpack.c.h.b16 %v5596
        %v5687 = vunpack.c.l.b16 %v5597
        %v5688 = vunpack.c.h.b16 %v5597
        %v5689 = vunpack.c.l.b16 %v5598
        %v5690 = vunpack.c.h.b16 %v5598
        %v5691 = vunpack.c.l.b16 %v5599
        %v5692 = vunpack.c.h.b16 %v5599
        %v5693 = vunpack.c.l.b16 %v5600
        %v5694 = vunpack.c.h.b16 %v5600
        %v5695 = vpack.c.b16 %v5643, %v5639
        %v5696 = vpack.c.b16 %v5644, %v5640
        %v5697 = vpack.c.b16 %v5645, %v5641
        %v5698 = vpack.c.b16 %v5646, %v5642
        %v5699 = vpack.c.b16 %v5651, %v5647
        %v5700 = vpack.c.b16 %v5652, %v5648
        %v5701 = vpack.c.b16 %v5653, %v5649
        %v5702 = vpack.c.b16 %v5654, %v5650
        %v5703 = vpack.c.b16 %v5659, %v5655
        %v5704 = vpack.c.b16 %v5660, %v5656
        %v5705 = vpack.c.b16 %v5661, %v5657
        %v5706 = vpack.c.b16 %v5662, %v5658
        %v5707 = vpack.c.b16 %v5667, %v5663
        %v5708 = vpack.c.b16 %v5668, %v5664
        %v5709 = vpack.c.b16 %v5669, %v5665
        %v5710 = vpack.c.b16 %v5670, %v5666
        %v5711 = vpack.c.b16 %v5675, %v5671
        %v5712 = vpack.c.b16 %v5676, %v5672
        %v5713 = vpack.c.b16 %v5677, %v5673
        %v5714 = vpack.c.b16 %v5678, %v5674
        %v5715 = vpack.c.b16 %v5683, %v5679
        %v5716 = vpack.c.b16 %v5684, %v5680
        %v5717 = vpack.c.b16 %v5685, %v5681
        %v5718 = vpack.c.b16 %v5686, %v5682
        %v5719 = vpack.c.b16 %v5691, %v5687
        %v5720 = vpack.c.b16 %v5692, %v5688
        %v5721 = vpack.c.b16 %v5693, %v5689
        %v5722 = vpack.c.b16 %v5694, %v5690
        %v5752 = vsel %vm609, %v5572, 0
        %5754 = vmatpush.bf16.msra.mxu0 0
        %5755 = vmatpush.bf16.msra.mxu0 %v5719
        %5756 = vmatpush.bf16.msra.mxu0 %v5715
        %5757 = vmatpush.bf16.msra.mxu0 %v5711
        %5758 = vmatpush.bf16.msra.mxu0 %v5707
        %5759 = vmatpush.bf16.msra.mxu0 %v5703
        %5760 = vmatpush.bf16.msra.mxu0 %v5699
        %5761 = vmatpush.bf16.msra.mxu0 %v5695
        %5762 = vmatmul.bf16.gmra.mxu0 %v5752
        %v5763 = vpop.f32.mrf.mxu0
        %v5764 = vadd.f32 %v5603, %v5763
        %v5765 = vpop.f32.mrf.mxu0
        %v5766 = vadd.f32 %v5603, %v5765
        %5767 = vdwg.mxu0
        %5768 = vmatpush.bf16.msra.mxu0 0
        %5769 = vmatpush.bf16.msra.mxu0 %v5720
        %5770 = vmatpush.bf16.msra.mxu0 %v5716
        %5771 = vmatpush.bf16.msra.mxu0 %v5712
        %5772 = vmatpush.bf16.msra.mxu0 %v5708
        %5773 = vmatpush.bf16.msra.mxu0 %v5704
        %5774 = vmatpush.bf16.msra.mxu0 %v5700
        %5775 = vmatpush.bf16.msra.mxu0 %v5696
        %5776 = vmatmul.bf16.gmra.mxu0 %v5752
        %v5777 = vpop.f32.mrf.mxu0
        %v5778 = vadd.f32 %v5604, %v5777
        %v5779 = vpop.f32.mrf.mxu0
        %v5780 = vadd.f32 %v5604, %v5779
        %5781 = vdwg.mxu0
        %5782 = vmatpush.bf16.msra.mxu0 0
        %5783 = vmatpush.bf16.msra.mxu0 %v5721
        %5784 = vmatpush.bf16.msra.mxu0 %v5717
        %5785 = vmatpush.bf16.msra.mxu0 %v5713
        %5786 = vmatpush.bf16.msra.mxu0 %v5709
        %5787 = vmatpush.bf16.msra.mxu0 %v5705
        %5788 = vmatpush.bf16.msra.mxu0 %v5701
        %5789 = vmatpush.bf16.msra.mxu0 %v5697
        %5790 = vmatmul.bf16.gmra.mxu0 %v5752
        %v5791 = vpop.f32.mrf.mxu0
        %v5792 = vadd.f32 %v5605, %v5791
        %v5793 = vpop.f32.mrf.mxu0
        %v5794 = vadd.f32 %v5605, %v5793
        %5795 = vdwg.mxu0
        %5796 = vmatpush.bf16.msra.mxu0 0
        %5797 = vmatpush.bf16.msra.mxu0 %v5722
        %5798 = vmatpush.bf16.msra.mxu0 %v5718
        %5799 = vmatpush.bf16.msra.mxu0 %v5714
        %5800 = vmatpush.bf16.msra.mxu0 %v5710
        %5801 = vmatpush.bf16.msra.mxu0 %v5706
        %5802 = vmatpush.bf16.msra.mxu0 %v5702
        %5803 = vmatpush.bf16.msra.mxu0 %v5698
        %5804 = vmatmul.bf16.gmra.mxu0 %v5752
        %v5805 = vpop.f32.mrf.mxu0
        %v5806 = vadd.f32 %v5606, %v5805
        %v5807 = vpop.f32.mrf.mxu0
        %v5808 = vadd.f32 %v5606, %v5807
        %5809 = vdwg.mxu0
        %v5810 = vmul.f32 %v5764, 0.5
        %v5811 = vmul.f32 %v5778, 0.5
        %v5812 = vmul.f32 %v5792, 0.5
        %v5813 = vmul.f32 %v5806, 0.5
        %v5814 = vmul.f32 %v5766, 0.5
        %v5815 = vmul.f32 %v5780, 0.5
        %v5816 = vmul.f32 %v5794, 0.5
        %v5817 = vmul.f32 %v5808, 0.5
        %v5818 = vmul.f32 %v5764, 0.044715
        %v5819 = vmul.f32 %v5778, 0.044715
        %v5820 = vmul.f32 %v5792, 0.044715
        %v5821 = vmul.f32 %v5806, 0.044715
        %v5822 = vmul.f32 %v5766, 0.044715
        %v5823 = vmul.f32 %v5780, 0.044715
        %v5824 = vmul.f32 %v5794, 0.044715
        %v5825 = vmul.f32 %v5808, 0.044715
        %v5826 = vmul.f32 %v5818, %v5764
        %v5827 = vmul.f32 %v5819, %v5778
        %v5828 = vmul.f32 %v5820, %v5792
        %v5829 = vmul.f32 %v5821, %v5806
        %v5830 = vmul.f32 %v5822, %v5766
        %v5831 = vmul.f32 %v5823, %v5780
        %v5832 = vmul.f32 %v5824, %v5794
        %v5833 = vmul.f32 %v5825, %v5808
        %v5834 = vmul.f32 %v5826, %v5764
        %v5835 = vmul.f32 %v5827, %v5778
        %v5836 = vmul.f32 %v5828, %v5792
        %v5837 = vmul.f32 %v5829, %v5806
        %v5838 = vmul.f32 %v5830, %v5766
        %v5839 = vmul.f32 %v5831, %v5780
        %v5840 = vmul.f32 %v5832, %v5794
        %v5841 = vmul.f32 %v5833, %v5808
        %v5842 = vadd.f32 %v5764, %v5834
        %v5843 = vadd.f32 %v5778, %v5835
        %v5844 = vadd.f32 %v5792, %v5836
        %v5845 = vadd.f32 %v5806, %v5837
        %v5846 = vadd.f32 %v5766, %v5838
        %v5847 = vadd.f32 %v5780, %v5839
        %v5848 = vadd.f32 %v5794, %v5840
        %v5849 = vadd.f32 %v5808, %v5841
        %v5850 = vmul.f32 %v5842, 0.7978846
        %v5851 = vmul.f32 %v5843, 0.7978846
        %v5852 = vmul.f32 %v5844, 0.7978846
        %v5853 = vmul.f32 %v5845, 0.7978846
        %v5854 = vmul.f32 %v5846, 0.7978846
        %v5855 = vmul.f32 %v5847, 0.7978846
        %v5856 = vmul.f32 %v5848, 0.7978846
        %v5857 = vmul.f32 %v5849, 0.7978846
        %v5858 = vtanh.pop %v5850
        %v5859 = vtanh.pop %v5851
        %v5860 = vtanh.pop %v5852
        %v5861 = vtanh.pop %v5853
        %v5862 = vtanh.pop %v5854
        %v5863 = vtanh.pop %v5855
        %v5864 = vtanh.pop %v5856
        %v5865 = vtanh.pop %v5857
        %v5866 = vadd.f32 %v5858, 1.0
        %v5867 = vadd.f32 %v5859, 1.0
        %v5868 = vadd.f32 %v5860, 1.0
        %v5869 = vadd.f32 %v5861, 1.0
        %v5870 = vadd.f32 %v5862, 1.0
        %v5871 = vadd.f32 %v5863, 1.0
        %v5872 = vadd.f32 %v5864, 1.0
        %v5873 = vadd.f32 %v5865, 1.0
        %v5874 = vmul.f32 %v5810, %v5866
        %v5875 = vmul.f32 %v5811, %v5867
        %v5876 = vmul.f32 %v5812, %v5868
        %v5877 = vmul.f32 %v5813, %v5869
        %v5878 = vmul.f32 %v5814, %v5870
        %v5879 = vmul.f32 %v5815, %v5871
        %v5880 = vmul.f32 %v5816, %v5872
        %v5881 = vmul.f32 %v5817, %v5873
        %v5882 = vpack.c.bf16 %v5878, %v5874
        %v5883 = vpack.c.bf16 %v5879, %v5875
        %v5884 = vpack.c.bf16 %v5880, %v5876
        %v5885 = vpack.c.bf16 %v5881, %v5877
        %v5886 = vld [vmem:[#allocation14] sm:$0xf]
        %v5887 = vld [vmem:[#allocation14 + $0x4] sm:$0xf]
        %v5888 = vld [vmem:[#allocation14 + $0x8] sm:$0xf]
        %v5889 = vld [vmem:[#allocation14 + $0xc] sm:$0xf]
        %v5890 = vld [vmem:[#allocation14 + $0x10] sm:$0xf]
        %v5891 = vld [vmem:[#allocation14 + $0x14] sm:$0xf]
        %v5892 = vld [vmem:[#allocation14 + $0x18] sm:$0xf]
        %v5893 = vld [vmem:[#allocation14 + $0x1c] sm:$0xf]
        %v5894 = vld [vmem:[#allocation14 + $0x20] sm:$0xf]
        %v5895 = vld [vmem:[#allocation14 + $0x24] sm:$0xf]
        %v5896 = vld [vmem:[#allocation14 + $0x28] sm:$0xf]
        %v5897 = vld [vmem:[#allocation14 + $0x2c] sm:$0xf]
        %v5898 = vld [vmem:[#allocation14 + $0x30] sm:$0xf]
        %v5899 = vld [vmem:[#allocation14 + $0x34] sm:$0xf]
        %v5900 = vld [vmem:[#allocation14 + $0x38] sm:$0xf]
        %v5901 = vld [vmem:[#allocation14 + $0x3c] sm:$0xf]
        %v5902 = vld [vmem:[#allocation14 + $0x40] sm:$0xf]
        %v5903 = vld [vmem:[#allocation14 + $0x44] sm:$0xf]
        %v5904 = vld [vmem:[#allocation14 + $0x48] sm:$0xf]
        %v5905 = vld [vmem:[#allocation14 + $0x4c] sm:$0xf]
        %v5906 = vld [vmem:[#allocation14 + $0x50] sm:$0xf]
        %v5907 = vld [vmem:[#allocation14 + $0x54] sm:$0xf]
        %v5908 = vld [vmem:[#allocation14 + $0x58] sm:$0xf]
        %v5909 = vld [vmem:[#allocation14 + $0x5c] sm:$0xf]
        %v5910 = vld [vmem:[#allocation14 + $0x60] sm:$0xf]
        %v5911 = vld [vmem:[#allocation14 + $0x64] sm:$0xf]
        %v5912 = vld [vmem:[#allocation14 + $0x68] sm:$0xf]
        %v5913 = vld [vmem:[#allocation14 + $0x6c] sm:$0xf]
        %v5914 = vld [vmem:[#allocation14 + $0x70] sm:$0xf]
        %v5915 = vld [vmem:[#allocation14 + $0x74] sm:$0xf]
        %v5916 = vld [vmem:[#allocation14 + $0x78] sm:$0xf]
        %v5917 = vld [vmem:[#allocation14 + $0x7c] sm:$0xf]
        %v5918 = vld [vmem:[#allocation14 + $0x80] sm:$0xf]
        %v5919 = vld [vmem:[#allocation14 + $0x84] sm:$0xf]
        %v5920 = vld [vmem:[#allocation14 + $0x88] sm:$0xf]
        %v5921 = vld [vmem:[#allocation14 + $0x8c] sm:$0xf]
        %v5922 = vld [vmem:[#allocation14 + $0x90] sm:$0xf]
        %v5923 = vld [vmem:[#allocation14 + $0x94] sm:$0xf]
        %v5924 = vld [vmem:[#allocation14 + $0x98] sm:$0xf]
        %v5925 = vld [vmem:[#allocation14 + $0x9c] sm:$0xf]
        %v5926 = vld [vmem:[#allocation14 + $0xa0] sm:$0xf]
        %v5927 = vld [vmem:[#allocation14 + $0xa4] sm:$0xf]
        %v5928 = vld [vmem:[#allocation14 + $0xa8] sm:$0xf]
        %v5929 = vld [vmem:[#allocation14 + $0xac] sm:$0xf]
        %v5930 = vld [vmem:[#allocation14 + $0xb0] sm:$0xf]
        %v5931 = vld [vmem:[#allocation14 + $0xb4] sm:$0xf]
        %v5932 = vld [vmem:[#allocation14 + $0xb8] sm:$0xf]
        %v5933 = vld [vmem:[#allocation14 + $0xbc] sm:$0xf]
        %v5934 = vld [vmem:[#allocation14 + $0xc0] sm:$0xf]
        %v5935 = vld [vmem:[#allocation14 + $0xc4] sm:$0xf]
        %v5936 = vld [vmem:[#allocation14 + $0xc8] sm:$0xf]
        %v5937 = vld [vmem:[#allocation14 + $0xcc] sm:$0xf]
        %v5938 = vld [vmem:[#allocation14 + $0xd0] sm:$0xf]
        %v5939 = vld [vmem:[#allocation14 + $0xd4] sm:$0xf]
        %v5940 = vld [vmem:[#allocation14 + $0xd8] sm:$0xf]
        %v5941 = vld [vmem:[#allocation14 + $0xdc] sm:$0xf]
        %v5998 = vunpack.c.l.b16 %v5886
        %v5999 = vunpack.c.l.b16 %v5887
        %v6000 = vunpack.c.l.b16 %v5888
        %v6001 = vunpack.c.l.b16 %v5889
        %v6002 = vunpack.c.l.b16 %v5890
        %v6003 = vunpack.c.l.b16 %v5891
        %v6004 = vunpack.c.l.b16 %v5892
        %v6005 = vunpack.c.l.b16 %v5893
        %v6006 = vunpack.c.l.b16 %v5894
        %v6007 = vunpack.c.l.b16 %v5895
        %v6008 = vunpack.c.l.b16 %v5896
        %v6009 = vunpack.c.l.b16 %v5897
        %v6010 = vunpack.c.l.b16 %v5898
        %v6011 = vunpack.c.l.b16 %v5899
        %v6012 = vunpack.c.l.b16 %v5900
        %v6013 = vunpack.c.l.b16 %v5901
        %v6014 = vunpack.c.l.b16 %v5902
        %v6015 = vunpack.c.l.b16 %v5903
        %v6016 = vunpack.c.l.b16 %v5904
        %v6017 = vunpack.c.l.b16 %v5905
        %v6018 = vunpack.c.l.b16 %v5906
        %v6019 = vunpack.c.l.b16 %v5907
        %v6020 = vunpack.c.l.b16 %v5908
        %v6021 = vunpack.c.l.b16 %v5909
        %v6022 = vunpack.c.l.b16 %v5910
        %v6023 = vunpack.c.l.b16 %v5911
        %v6024 = vunpack.c.l.b16 %v5912
        %v6025 = vunpack.c.l.b16 %v5913
        %v6026 = vunpack.c.l.b16 %v5914
        %v6027 = vunpack.c.l.b16 %v5915
        %v6028 = vunpack.c.l.b16 %v5916
        %v6029 = vunpack.c.l.b16 %v5917
        %v6030 = vunpack.c.l.b16 %v5918
        %v6031 = vunpack.c.l.b16 %v5919
        %v6032 = vunpack.c.l.b16 %v5920
        %v6033 = vunpack.c.l.b16 %v5921
        %v6034 = vunpack.c.l.b16 %v5922
        %v6035 = vunpack.c.l.b16 %v5923
        %v6036 = vunpack.c.l.b16 %v5924
        %v6037 = vunpack.c.l.b16 %v5925
        %v6038 = vunpack.c.l.b16 %v5926
        %v6039 = vunpack.c.l.b16 %v5927
        %v6040 = vunpack.c.l.b16 %v5928
        %v6041 = vunpack.c.l.b16 %v5929
        %v6042 = vunpack.c.l.b16 %v5930
        %v6043 = vunpack.c.l.b16 %v5931
        %v6044 = vunpack.c.l.b16 %v5932
        %v6045 = vunpack.c.l.b16 %v5933
        %v6046 = vunpack.c.l.b16 %v5934
        %v6047 = vunpack.c.l.b16 %v5935
        %v6048 = vunpack.c.l.b16 %v5936
        %v6049 = vunpack.c.l.b16 %v5937
        %v6050 = vunpack.c.l.b16 %v5938
        %v6051 = vunpack.c.l.b16 %v5939
        %v6052 = vunpack.c.l.b16 %v5940
        %v6053 = vunpack.c.l.b16 %v5941
        %v6054 = vpack.c.b16 %v5999, %v5998
        %v6055 = vpack.c.b16 %v6001, %v6000
        %v6056 = vpack.c.b16 %v6003, %v6002
        %v6057 = vpack.c.b16 %v6005, %v6004
        %v6058 = vpack.c.b16 %v6007, %v6006
        %v6059 = vpack.c.b16 %v6009, %v6008
        %v6060 = vpack.c.b16 %v6011, %v6010
        %v6061 = vpack.c.b16 %v6013, %v6012
        %v6062 = vpack.c.b16 %v6015, %v6014
        %v6063 = vpack.c.b16 %v6017, %v6016
        %v6064 = vpack.c.b16 %v6019, %v6018
        %v6065 = vpack.c.b16 %v6021, %v6020
        %v6066 = vpack.c.b16 %v6023, %v6022
        %v6067 = vpack.c.b16 %v6025, %v6024
        %v6068 = vpack.c.b16 %v6027, %v6026
        %v6069 = vpack.c.b16 %v6029, %v6028
        %v6070 = vpack.c.b16 %v6031, %v6030
        %v6071 = vpack.c.b16 %v6033, %v6032
        %v6072 = vpack.c.b16 %v6035, %v6034
        %v6073 = vpack.c.b16 %v6037, %v6036
        %v6074 = vpack.c.b16 %v6039, %v6038
        %v6075 = vpack.c.b16 %v6041, %v6040
        %v6076 = vpack.c.b16 %v6043, %v6042
        %v6077 = vpack.c.b16 %v6045, %v6044
        %v6078 = vpack.c.b16 %v6047, %v6046
        %v6079 = vpack.c.b16 %v6049, %v6048
        %v6080 = vpack.c.b16 %v6051, %v6050
        %v6081 = vpack.c.b16 %v6053, %v6052
        %vm6110 = vcmask 523264
        %v6112 = vsel %vm6110, %v5885, 0
        %6114 = vmatpush.bf16.msra.mxu0 %v6061
        %6115 = vmatpush.bf16.msra.mxu0 %v6060
        %6116 = vmatpush.bf16.msra.mxu0 %v6059
        %6117 = vmatpush.bf16.msra.mxu0 %v6058
        %6118 = vmatpush.bf16.msra.mxu0 %v6057
        %6119 = vmatpush.bf16.msra.mxu0 %v6056
        %6120 = vmatpush.bf16.msra.mxu0 %v6055
        %6121 = vmatpush.bf16.msra.mxu0 %v6054
        %6122 = vmatmul.bf16.gmra.mxu0 %v5882
        %v6123 = vpop.f32.mrf.mxu0
        %v6124 = vadd.f32 0.0, %v6123
        %v6125 = vpop.f32.mrf.mxu0
        %v6126 = vadd.f32 0.0, %v6125
        %6127 = vdwg.mxu0
        %6128 = vmatpush.bf16.msra.mxu0 %v6069
        %6129 = vmatpush.bf16.msra.mxu0 %v6068
        %6130 = vmatpush.bf16.msra.mxu0 %v6067
        %6131 = vmatpush.bf16.msra.mxu0 %v6066
        %6132 = vmatpush.bf16.msra.mxu0 %v6065
        %6133 = vmatpush.bf16.msra.mxu0 %v6064
        %6134 = vmatpush.bf16.msra.mxu0 %v6063
        %6135 = vmatpush.bf16.msra.mxu0 %v6062
        %6136 = vmatmul.bf16.gmra.mxu0 %v5883
        %v6137 = vpop.f32.mrf.mxu0
        %v6138 = vadd.f32 %v6124, %v6137
        %v6139 = vpop.f32.mrf.mxu0
        %v6140 = vadd.f32 %v6126, %v6139
        %6141 = vdwg.mxu0
        %6142 = vmatpush.bf16.msra.mxu0 %v6077
        %6143 = vmatpush.bf16.msra.mxu0 %v6076
        %6144 = vmatpush.bf16.msra.mxu0 %v6075
        %6145 = vmatpush.bf16.msra.mxu0 %v6074
        %6146 = vmatpush.bf16.msra.mxu0 %v6073
        %6147 = vmatpush.bf16.msra.mxu0 %v6072
        %6148 = vmatpush.bf16.msra.mxu0 %v6071
        %6149 = vmatpush.bf16.msra.mxu0 %v6070
        %6150 = vmatmul.bf16.gmra.mxu0 %v5884
        %v6151 = vpop.f32.mrf.mxu0
        %v6152 = vadd.f32 %v6138, %v6151
        %v6153 = vpop.f32.mrf.mxu0
        %v6154 = vadd.f32 %v6140, %v6153
        %6155 = vdwg.mxu0
        %6156 = vmatpush.bf16.msra.mxu0 0
        %6157 = vmatpush.bf16.msra.mxu0 0
        %6158 = vmatpush.bf16.msra.mxu0 0
        %6159 = vmatpush.bf16.msra.mxu0 0
        %6160 = vmatpush.bf16.msra.mxu0 %v6081
        %6161 = vmatpush.bf16.msra.mxu0 %v6080
        %6162 = vmatpush.bf16.msra.mxu0 %v6079
        %6163 = vmatpush.bf16.msra.mxu0 %v6078
        %6164 = vmatmul.bf16.gmra.mxu0 %v6112
        %v6165 = vpop.f32.mrf.mxu0
        %v6166 = vadd.f32 %v6152, %v6165
        %v6167 = vpop.f32.mrf.mxu0
        %v6168 = vadd.f32 %v6154, %v6167
        %6169 = vdwg.mxu0
        %v6170 = vadd.f32 %v5514, %v6166
        %v6171 = vadd.f32 %v5515, %v6168
        %v6172 = vld [vmem:[%s13] sm:$0x1]
        %v6174 = vperm.slane %v6172, 0
        %v6176 = vadd.f32 %v6170, %v6174
        %v6177 = vadd.f32 %v6171, %v6174
        %6178 = vst.msk [vmem:[%s601] sm:$0xff] %vm609, %v6176
        %6179 = vst.msk [vmem:[%s601 + $0x8] sm:$0xff] %vm609, %v6177
        %s6180 = sand.u32 %s342, 1
        %s6181 = scalar_lea.sflag [#allocation4], %s6180
        %s6182 = sand.u32 %s342, 1
        %s6183 = smul.addr %s6182, 16
        %s6184 = scalar_lea.vmem [#allocation16], %s6183
        // Predicated region
        $region109: #{tpu_custom_call.1} parent=75 // pred_check
          %p6185 = pneg %p352
        $region110: #{tpu_custom_call.1} parent=75 // pred_check_branch
          %6187 = sbr.rel (%p6185) target = $region112
        $region111: #{tpu_custom_call.1} parent=75 // pred_region
          %s6188 = smul.u32 2, %s35
          %6190 = vsyncadd %s6181, 0
          %s6191 = smul.addr %s6188, 8
          %s6192 = scalar_lea.hbm %s14, %s6191
          %s6193 = sshll.u32 %s6184, 4
          %s6194 = int_to_ptr.vmem [resolvable:$true] %s6193
          %s6195 = sshll.u32 %s6192, 4
          %s6196 = int_to_ptr.hbm [resolvable:$true] %s6195
          %6201 = dma.vmem_to_hbm [thread:$0]  %s6194, 256, %s6196, %s6181, 128, 128, 8
        $region112: #{tpu_custom_call.1} parent=75 // pred_fallthru
          _
      $region76: #{tpu_custom_call.1} parent=5 // pred_fallthru
        _
      %p6202 = scmp.le.s32.totalorder 2, %s30
      // Predicated region
      $region113: #{tpu_custom_call.1} parent=5 // pred_check
        %p6203 = pneg %p6202
      $region114: #{tpu_custom_call.1} parent=5 // pred_check_branch
        %6205 = sbr.rel (%p6203) target = $region116
      $region115: #{tpu_custom_call.1} parent=5 // pred_region
        %s6206 = ssub.s32 %s30, 2
        // Predicated region
        $region117: #{tpu_custom_call.1} parent=115 // pred_check
          %p6207 = pneg %p358
        $region118: #{tpu_custom_call.1} parent=115 // pred_check_branch
          %6209 = sbr.rel (%p6207) target = $region120
        $region119: #{tpu_custom_call.1} parent=115 // pred_region
          %s6210 = sand.u32 %s343, 1
          %s6211 = scalar_lea.sflag [#allocation4], %s6210
          %s6212 = sand.u32 %s343, 1
          %s6213 = smul.addr %s6212, 16
          %s6214 = scalar_lea.vmem [#allocation16], %s6213
          %6216 = dma.done %s6211, 256
        $region120: #{tpu_custom_call.1} parent=115 // pred_fallthru
          _
      $region116: #{tpu_custom_call.1} parent=5 // pred_fallthru
        _
    $region6: #{tpu_custom_call.1} parent=1 // loop_footer
      %s34 = sadd.s32 1, %s30
    $region7: #{tpu_custom_call.1} parent=1 // loop_footer_branch
      %29 = sbr.rel target = $region3
    $region8: #{tpu_custom_call.1} parent=1 // loop_exit
      _
    %6217 = vsyncpa [#allocation3], 1
    %s6218 = scalar_lea.sflag [#allocation3], 1
    %6219 = vsyncpa %s6218, 1
    %6220 = vsyncpa [#allocation6], 1
    %6221 = vsyncpa [#allocation9], 1
    %6222 = vsyncpa [#allocation12], 1
    %6223 = vsyncpa [#allocation15], 1
    %6224 = vsyncpa [#allocation4], 1
    %s6225 = scalar_lea.sflag [#allocation4], 1
    %6226 = vsyncpa %s6225, 1

</llo_original>
